<compile_context>
chip_gen: v6e
topology: v6e:2x2x1
jax: 0.10.0
libtpu: 0.0.40
codegen_flags: <defaults>
</compile_context>

<pallas_src>
import functools

import jax
import jax.numpy as jnp
from jax import lax
from jax.experimental import pallas as pl
from jax.experimental.pallas import tpu as pltpu


def _round_up(n, m):
    return ((n + m - 1) // m) * m


def _vmem_limit_bytes():
    # v5e/v6e: 128 MiB physical VMEM, v7x: 64 MiB per TensorCore.
    try:
        cap = pltpu.get_tpu_info().vmem_capacity_bytes
        return int(min(cap * 3 // 4, 96 * 1024 * 1024))
    except Exception:
        return 48 * 1024 * 1024


# ----------------------------------------------------------------------------
# Pass 1: fused QKV projection, written in head-major layout (B, H, T, hs).
# Grid: (B, T // t)
# ----------------------------------------------------------------------------
def _qkv_proj_kernel(x_ref, wq_ref, wk_ref, wv_ref, q_ref, k_ref, v_ref,
                     *, num_heads, head_size):
    H, hs = num_heads, head_size
    x = x_ref[0]                                                       # (t, C) bf16
    q = jnp.dot(x, wq_ref[...], preferred_element_type=jnp.float32)   # (t, D) f32
    k = jnp.dot(x, wk_ref[...], preferred_element_type=jnp.float32)
    v = jnp.dot(x, wv_ref[...], preferred_element_type=jnp.float32)
    q = (q * (hs ** -0.5)).astype(q_ref.dtype)   # fold 1/sqrt(hs) into q
    k = k.astype(k_ref.dtype)
    v = v.astype(v_ref.dtype)
    # Split head-concat columns into head-major whole blocks (once per token tile).
    for h in range(H):
        sl = slice(h * hs, (h + 1) * hs)
        q_ref[0, h] = q[:, sl]
        k_ref[0, h] = k[:, sl]
        v_ref[0, h] = v[:, sl]


# ----------------------------------------------------------------------------
# Pass 2: causal flash attention (all heads batched) + fused output projection.
# Grid: (B, T // tq, T // tkv)   (kv axis innermost, "arbitrary")
# ----------------------------------------------------------------------------
def _flash_attn_kernel(q_ref, k_ref, v_ref, wp_ref, bp_ref, o_ref,
                       m_sc, l_sc, acc_sc, *, num_heads, head_size):
    H, hs = num_heads, head_size
    qi = pl.program_id(1)
    ki = pl.program_id(2)
    tq = q_ref.shape[2]
    tkv = k_ref.shape[2]

    @pl.when(ki == 0)
    def _init():
        m_sc[...] = jnp.full_like(m_sc, -jnp.inf)
        l_sc[...] = jnp.zeros_like(l_sc)
        acc_sc[...] = jnp.zeros_like(acc_sc)

    def _attend(masked):
        q = q_ref[0]                                                   # (H, tq, hs) bf16
        k = k_ref[0]                                                   # (H, tkv, hs)
        v = v_ref[0]
        # One H-batched MXU push instead of a per-head Python unroll.
        s = jnp.einsum('hqd,hkd->hqk', q, k,
                       preferred_element_type=jnp.float32)             # (H, tq, tkv) f32
        if masked:
            # Diagonal block only (qi == ki, tq == tkv): static causal mask.
            row = lax.broadcasted_iota(jnp.int32, (H, tq, tkv), 1)
            col = lax.broadcasted_iota(jnp.int32, (H, tq, tkv), 2)
            s = jnp.where(row >= col, s, -jnp.inf)

        m_prev = m_sc[...]                                             # (H, tq, 1)
        m_new = jnp.maximum(m_prev, jnp.max(s, axis=-1, keepdims=True))
        alpha = jnp.exp(m_prev - m_new)
        p = jnp.exp(s - m_new)                                         # (H, tq, tkv)
        l_sc[...] = alpha * l_sc[...] + jnp.sum(p, axis=-1, keepdims=True)
        acc_sc[...] = alpha * acc_sc[...] + jnp.einsum(
            'hqk,hkd->hqd', p.astype(v.dtype), v,
            preferred_element_type=jnp.float32)                        # (H, tq, hs)
        m_sc[...] = m_new

    # kv blocks strictly below the diagonal: fully visible, no mask needed.
    @pl.when(ki < qi)
    def _():
        _attend(masked=False)

    # Diagonal block: apply causal mask, then run the epilogue immediately —
    # this is the last kv block that contributes to this q tile.  For ki > qi
    # the step is a pure no-op (and the clamped k/v index_map means no DMA).
    @pl.when(ki == qi)
    def _():
        _attend(masked=True)
        # approx=True trades a few ULPs; fine for inference.
        inv_l = pl.reciprocal(l_sc[...], approx=True)                  # (H, tq, 1)
        o = acc_sc[...] * inv_l                                        # (H, tq, hs) f32
        # Concat heads back to (tq, D) once per q tile.
        o_cat = jnp.concatenate([o[h] for h in range(H)], axis=-1)     # (tq, D)
        proj = jnp.dot(o_cat.astype(jnp.bfloat16), wp_ref[...],
                       preferred_element_type=jnp.float32) + bp_ref[...]
        o_ref[0] = proj.astype(o_ref.dtype)


# ----------------------------------------------------------------------------
# Wrapper
# ----------------------------------------------------------------------------
def multi_head_attention(x, wq, wk, wv, w_proj, b_proj, *, block_q=128):
    """x: (B, T, C); wq/wk/wv: (H, C, hs); w_proj: (H*hs, C); b_proj: (C,).

    block_q: token tile; 128 is safe on all generations (256 is preferable on
    v6e/v7x's 256x256 MXU for large T — re-derive VMEM budget on v7x's 64 MiB).
    """
    B, T, C = x.shape
    H, C_, hs = wq.shape
    assert C_ == C
    D = H * hs

    # Head-concat weights: columns of head h occupy [h*hs, (h+1)*hs).
    wq_cat = jnp.transpose(wq, (1, 0, 2)).reshape(C, D)
    wk_cat = jnp.transpose(wk, (1, 0, 2)).reshape(C, D)
    wv_cat = jnp.transpose(wv, (1, 0, 2)).reshape(C, D)

    # Pad T so the flash tiling/pipelining survives non-multiple-of-128 lengths.
    tile = block_q if T >= block_q else _round_up(max(T, 8), 8)
    T_pad = _round_up(T, tile)
    if T_pad != T:
        x = jnp.pad(x, ((0, 0), (0, T_pad - T), (0, 0)))
    n_t = T_pad // tile

    # bf16 MXU operands; f32 accumulation inside the kernels.
    x_bf = x.astype(jnp.bfloat16)
    wq_bf = wq_cat.astype(jnp.bfloat16)
    wk_bf = wk_cat.astype(jnp.bfloat16)
    wv_bf = wv_cat.astype(jnp.bfloat16)
    wp_bf = w_proj.astype(jnp.bfloat16)
    bp = b_proj.reshape(1, C).astype(jnp.float32)

    vmem_limit = _vmem_limit_bytes()

    # ---- pass 1: QKV projection (once per token tile), head-major outputs ----
    qkv_shape = jax.ShapeDtypeStruct((B, H, T_pad, hs), jnp.bfloat16)
    q, k, v = pl.pallas_call(
        functools.partial(_qkv_proj_kernel, num_heads=H, head_size=hs),
        out_shape=(qkv_shape, qkv_shape, qkv_shape),
        grid_spec=pltpu.PrefetchScalarGridSpec(
            num_scalar_prefetch=0,
            grid=(B, n_t),
            in_specs=[
                pl.BlockSpec((1, tile, C), lambda b, i: (b, i, 0)),   # x tile
                pl.BlockSpec((C, D), lambda b, i: (0, 0)),            # Wq (resident)
                pl.BlockSpec((C, D), lambda b, i: (0, 0)),            # Wk (resident)
                pl.BlockSpec((C, D), lambda b, i: (0, 0)),            # Wv (resident)
            ],
            out_specs=[
                pl.BlockSpec((1, H, tile, hs), lambda b, i: (b, 0, i, 0)),
                pl.BlockSpec((1, H, tile, hs), lambda b, i: (b, 0, i, 0)),
                pl.BlockSpec((1, H, tile, hs), lambda b, i: (b, 0, i, 0)),
            ],
        ),
        compiler_params=pltpu.CompilerParams(
            dimension_semantics=("parallel", "parallel"),
            vmem_limit_bytes=vmem_limit,
        ),
    )(x_bf, wq_bf, wk_bf, wv_bf)

    # ---- pass 2: causal flash attention + fused output projection ----
    out_pad = pl.pallas_call(
        functools.partial(_flash_attn_kernel, num_heads=H, head_size=hs),
        out_shape=jax.ShapeDtypeStruct((B, T_pad, C), x.dtype),
        grid_spec=pltpu.PrefetchScalarGridSpec(
            num_scalar_prefetch=0,
            grid=(B, n_t, n_t),
            in_specs=[
                # q tile: constant across ki -> DMA'd once per q tile.
                pl.BlockSpec((1, H, tile, hs), lambda b, qi, ki: (b, 0, qi, 0)),
                # k/v tiles: clamp index to min(ki, qi) so skipped upper-triangle
                # steps reuse the resident block (no HBM traffic).
                pl.BlockSpec((1, H, tile, hs),
                             lambda b, qi, ki: (b, 0, jnp.minimum(ki, qi), 0)),
                pl.BlockSpec((1, H, tile, hs),
                             lambda b, qi, ki: (b, 0, jnp.minimum(ki, qi), 0)),
                pl.BlockSpec((D, C), lambda b, qi, ki: (0, 0)),        # W_proj (resident)
                pl.BlockSpec((1, C), lambda b, qi, ki: (0, 0)),        # b_proj
            ],
            out_specs=pl.BlockSpec((1, tile, C), lambda b, qi, ki: (b, qi, 0)),
            scratch_shapes=[
                pltpu.VMEM((H, tile, 1), jnp.float32),   # running max (head-major)
                pltpu.VMEM((H, tile, 1), jnp.float32),   # running sum
                pltpu.VMEM((H, tile, hs), jnp.float32),  # accumulator
            ],
        ),
        compiler_params=pltpu.CompilerParams(
            dimension_semantics=("parallel", "parallel", "arbitrary"),
            vmem_limit_bytes=vmem_limit,
        ),
    )(q, k, v, wp_bf, bp)

    return out_pad[:, :T, :] if T_pad != T else out_pad


# ----------------------------------------------------------------------------
# Pure-JAX reference (mirrors the PyTorch forward in eval mode)
# ----------------------------------------------------------------------------
def _reference(x, wq, wk, wv, w_proj, b_proj):
    B, T, C = x.shape
    H, _, hs = wq.shape
    outs = []
    tril = jnp.tril(jnp.ones((T, T), dtype=bool))
    for h in range(H):
        q = x @ wq[h]
        k = x @ wk[h]
        v = x @ wv[h]
        wei = (q @ jnp.swapaxes(k, -2, -1)) * (hs ** -0.5)
        wei = jnp.where(tril, wei, -jnp.inf)
        wei = jax.nn.softmax(wei, axis=-1)
        outs.append(wei @ v)
    cat = jnp.concatenate(outs, axis=-1)
    return cat @ w_proj + b_proj


if __name__ == "__main__":
    # Small shapes consistent with the module structure (n_embd = H * hs).
    # T = 200 is deliberately NOT a multiple of 128 to exercise padding + the
    # multi-tile causal flash path (grid (B, 2, 2) at tile 128).
    B, T = 2, 200
    n_embd = 64
    num_heads = 4
    head_size = 16

    key = jax.random.PRNGKey(0)
    kx, kq, kk, kv_, kp, kb = jax.random.split(key, 6)

    x = jax.random.normal(kx, (B, T, n_embd), dtype=jnp.float32)
    wq = jax.random.normal(kq, (num_heads, n_embd, head_size), jnp.float32) * 0.05
    wk = jax.random.normal(kk, (num_heads, n_embd, head_size), jnp.float32) * 0.05
    wv = jax.random.normal(kv_, (num_heads, n_embd, head_size), jnp.float32) * 0.05
    w_proj = jax.random.normal(kp, (num_heads * head_size, n_embd), jnp.float32) * 0.05
    b_proj = jax.random.normal(kb, (n_embd,), jnp.float32) * 0.05

    out = multi_head_attention(x, wq, wk, wv, w_proj, b_proj)
    out = jax.block_until_ready(out)

    ref = _reference(x, wq, wk, wv, w_proj, b_proj)
    assert out.shape == (B, T, n_embd)
    # bf16 MXU operands + approx reciprocal: widened tolerance vs f32 reference.
    assert jnp.allclose(out, ref, atol=3e-2, rtol=3e-2), "mismatch vs reference"

    print("KERNEL_OK")
</pallas_src>

<mosaic_0001>
module attributes {stable_mosaic.version = 11 : i64} {
  func.func @_qkv_proj_kernel(%arg0: i32, %arg1: i32, %arg2: memref<1x128x64xbf16, #tpu.memory_space<vmem>>, %arg3: memref<64x64xbf16, #tpu.memory_space<vmem>>, %arg4: memref<64x64xbf16, #tpu.memory_space<vmem>>, %arg5: memref<64x64xbf16, #tpu.memory_space<vmem>>, %arg6: memref<1x4x128x16xbf16, #tpu.memory_space<vmem>>, %arg7: memref<1x4x128x16xbf16, #tpu.memory_space<vmem>>, %arg8: memref<1x4x128x16xbf16, #tpu.memory_space<vmem>>) attributes {dimension_semantics = [#tpu.dimension_semantics<parallel>, #tpu.dimension_semantics<parallel>], iteration_bounds = array<i64: 2, 2>, scalar_prefetch = 0 : i64, scratch_operands = 0 : i64, tpu.core_type = #tpu.core_type<tc>, window_params = [{transform_indices = @transform_0, window_bounds = array<i64: 1, 128, 64>}, {pipeline_mode = #tpu.pipeline_mode<synchronous>, transform_indices = @transform_1, window_bounds = array<i64: 64, 64>}, {pipeline_mode = #tpu.pipeline_mode<synchronous>, transform_indices = @transform_2, window_bounds = array<i64: 64, 64>}, {pipeline_mode = #tpu.pipeline_mode<synchronous>, transform_indices = @transform_3, window_bounds = array<i64: 64, 64>}, {transform_indices = @transform_4, window_bounds = array<i64: 1, 4, 128, 16>}, {transform_indices = @transform_5, window_bounds = array<i64: 1, 4, 128, 16>}, {transform_indices = @transform_6, window_bounds = array<i64: 1, 4, 128, 16>}]} {
    %c0 = arith.constant 0 : index
    %c0_0 = arith.constant 0 : index
    %c0_1 = arith.constant 0 : index
    %0 = vector.load %arg2[%c0, %c0_0, %c0_1] : memref<1x128x64xbf16, #tpu.memory_space<vmem>>, vector<1x128x64xbf16>
    %1 = vector.shape_cast %0 : vector<1x128x64xbf16> to vector<128x64xbf16>
    %c0_2 = arith.constant 0 : index
    %c0_3 = arith.constant 0 : index
    %2 = vector.load %arg3[%c0_2, %c0_3] : memref<64x64xbf16, #tpu.memory_space<vmem>>, vector<64x64xbf16>
    %cst = arith.constant dense<0.000000e+00> : vector<128x64xf32>
    %3 = tpu.matmul %1, %2, %cst {dimension_numbers = #tpu.dot_dimension_numbers<[1], [0], [0], [1], [0, 0, 1, 1], [], []>} : vector<128x64xbf16>, vector<64x64xbf16>, vector<128x64xf32> -> vector<128x64xf32>
    %c0_4 = arith.constant 0 : index
    %c0_5 = arith.constant 0 : index
    %4 = vector.load %arg4[%c0_4, %c0_5] : memref<64x64xbf16, #tpu.memory_space<vmem>>, vector<64x64xbf16>
    %cst_6 = arith.constant dense<0.000000e+00> : vector<128x64xf32>
    %5 = tpu.matmul %1, %4, %cst_6 {dimension_numbers = #tpu.dot_dimension_numbers<[1], [0], [0], [1], [0, 0, 1, 1], [], []>} : vector<128x64xbf16>, vector<64x64xbf16>, vector<128x64xf32> -> vector<128x64xf32>
    %c0_7 = arith.constant 0 : index
    %c0_8 = arith.constant 0 : index
    %6 = vector.load %arg5[%c0_7, %c0_8] : memref<64x64xbf16, #tpu.memory_space<vmem>>, vector<64x64xbf16>
    %cst_9 = arith.constant dense<0.000000e+00> : vector<128x64xf32>
    %7 = tpu.matmul %1, %6, %cst_9 {dimension_numbers = #tpu.dot_dimension_numbers<[1], [0], [0], [1], [0, 0, 1, 1], [], []>} : vector<128x64xbf16>, vector<64x64xbf16>, vector<128x64xf32> -> vector<128x64xf32>
    %cst_10 = arith.constant 2.500000e-01 : f32
    %8 = vector.broadcast %cst_10 : f32 to vector<128x64xf32>
    %9 = arith.mulf %3, %8 : vector<128x64xf32>
    %10 = arith.truncf %9 : vector<128x64xf32> to vector<128x64xbf16>
    %11 = arith.truncf %5 : vector<128x64xf32> to vector<128x64xbf16>
    %12 = arith.truncf %7 : vector<128x64xf32> to vector<128x64xbf16>
    %13 = vector.extract_strided_slice %10 {offsets = [0, 0], sizes = [128, 16], strides = [1, 1]} : vector<128x64xbf16> to vector<128x16xbf16>
    %c0_11 = arith.constant 0 : index
    %c0_12 = arith.constant 0 : index
    %c0_13 = arith.constant 0 : index
    %c0_14 = arith.constant 0 : index
    %14 = vector.load %arg6[%c0_11, %c0_12, %c0_13, %c0_14] : memref<1x4x128x16xbf16, #tpu.memory_space<vmem>>, vector<1x1x128x16xbf16>
    %15 = vector.shape_cast %14 : vector<1x1x128x16xbf16> to vector<128x16xbf16>
    %16 = vector.shape_cast %13 : vector<128x16xbf16> to vector<1x1x128x16xbf16>
    tpu.vector_store %arg6[%c0_11, %c0_12, %c0_13, %c0_14], %16 {strides = array<i32>} : memref<1x4x128x16xbf16, #tpu.memory_space<vmem>>, vector<1x1x128x16xbf16>,
    %17 = vector.extract_strided_slice %11 {offsets = [0, 0], sizes = [128, 16], strides = [1, 1]} : vector<128x64xbf16> to vector<128x16xbf16>
    %c0_15 = arith.constant 0 : index
    %c0_16 = arith.constant 0 : index
    %c0_17 = arith.constant 0 : index
    %c0_18 = arith.constant 0 : index
    %18 = vector.load %arg7[%c0_15, %c0_16, %c0_17, %c0_18] : memref<1x4x128x16xbf16, #tpu.memory_space<vmem>>, vector<1x1x128x16xbf16>
    %19 = vector.shape_cast %18 : vector<1x1x128x16xbf16> to vector<128x16xbf16>
    %20 = vector.shape_cast %17 : vector<128x16xbf16> to vector<1x1x128x16xbf16>
    tpu.vector_store %arg7[%c0_15, %c0_16, %c0_17, %c0_18], %20 {strides = array<i32>} : memref<1x4x128x16xbf16, #tpu.memory_space<vmem>>, vector<1x1x128x16xbf16>,
    %21 = vector.extract_strided_slice %12 {offsets = [0, 0], sizes = [128, 16], strides = [1, 1]} : vector<128x64xbf16> to vector<128x16xbf16>
    %c0_19 = arith.constant 0 : index
    %c0_20 = arith.constant 0 : index
    %c0_21 = arith.constant 0 : index
    %c0_22 = arith.constant 0 : index
    %22 = vector.load %arg8[%c0_19, %c0_20, %c0_21, %c0_22] : memref<1x4x128x16xbf16, #tpu.memory_space<vmem>>, vector<1x1x128x16xbf16>
    %23 = vector.shape_cast %22 : vector<1x1x128x16xbf16> to vector<128x16xbf16>
    %24 = vector.shape_cast %21 : vector<128x16xbf16> to vector<1x1x128x16xbf16>
    tpu.vector_store %arg8[%c0_19, %c0_20, %c0_21, %c0_22], %24 {strides = array<i32>} : memref<1x4x128x16xbf16, #tpu.memory_space<vmem>>, vector<1x1x128x16xbf16>,
    %25 = vector.extract_strided_slice %10 {offsets = [0, 16], sizes = [128, 16], strides = [1, 1]} : vector<128x64xbf16> to vector<128x16xbf16>
    %c0_23 = arith.constant 0 : index
    %c1 = arith.constant 1 : index
    %c0_24 = arith.constant 0 : index
    %c0_25 = arith.constant 0 : index
    %26 = vector.load %arg6[%c0_23, %c1, %c0_24, %c0_25] : memref<1x4x128x16xbf16, #tpu.memory_space<vmem>>, vector<1x1x128x16xbf16>
    %27 = vector.shape_cast %26 : vector<1x1x128x16xbf16> to vector<128x16xbf16>
    %28 = vector.shape_cast %25 : vector<128x16xbf16> to vector<1x1x128x16xbf16>
    tpu.vector_store %arg6[%c0_23, %c1, %c0_24, %c0_25], %28 {strides = array<i32>} : memref<1x4x128x16xbf16, #tpu.memory_space<vmem>>, vector<1x1x128x16xbf16>,
    %29 = vector.extract_strided_slice %11 {offsets = [0, 16], sizes = [128, 16], strides = [1, 1]} : vector<128x64xbf16> to vector<128x16xbf16>
    %c0_26 = arith.constant 0 : index
    %c1_27 = arith.constant 1 : index
    %c0_28 = arith.constant 0 : index
    %c0_29 = arith.constant 0 : index
    %30 = vector.load %arg7[%c0_26, %c1_27, %c0_28, %c0_29] : memref<1x4x128x16xbf16, #tpu.memory_space<vmem>>, vector<1x1x128x16xbf16>
    %31 = vector.shape_cast %30 : vector<1x1x128x16xbf16> to vector<128x16xbf16>
    %32 = vector.shape_cast %29 : vector<128x16xbf16> to vector<1x1x128x16xbf16>
    tpu.vector_store %arg7[%c0_26, %c1_27, %c0_28, %c0_29], %32 {strides = array<i32>} : memref<1x4x128x16xbf16, #tpu.memory_space<vmem>>, vector<1x1x128x16xbf16>,
    %33 = vector.extract_strided_slice %12 {offsets = [0, 16], sizes = [128, 16], strides = [1, 1]} : vector<128x64xbf16> to vector<128x16xbf16>
    %c0_30 = arith.constant 0 : index
    %c1_31 = arith.constant 1 : index
    %c0_32 = arith.constant 0 : index
    %c0_33 = arith.constant 0 : index
    %34 = vector.load %arg8[%c0_30, %c1_31, %c0_32, %c0_33] : memref<1x4x128x16xbf16, #tpu.memory_space<vmem>>, vector<1x1x128x16xbf16>
    %35 = vector.shape_cast %34 : vector<1x1x128x16xbf16> to vector<128x16xbf16>
    %36 = vector.shape_cast %33 : vector<128x16xbf16> to vector<1x1x128x16xbf16>
    tpu.vector_store %arg8[%c0_30, %c1_31, %c0_32, %c0_33], %36 {strides = array<i32>} : memref<1x4x128x16xbf16, #tpu.memory_space<vmem>>, vector<1x1x128x16xbf16>,
    %37 = vector.extract_strided_slice %10 {offsets = [0, 32], sizes = [128, 16], strides = [1, 1]} : vector<128x64xbf16> to vector<128x16xbf16>
    %c0_34 = arith.constant 0 : index
    %c2 = arith.constant 2 : index
    %c0_35 = arith.constant 0 : index
    %c0_36 = arith.constant 0 : index
    %38 = vector.load %arg6[%c0_34, %c2, %c0_35, %c0_36] : memref<1x4x128x16xbf16, #tpu.memory_space<vmem>>, vector<1x1x128x16xbf16>
    %39 = vector.shape_cast %38 : vector<1x1x128x16xbf16> to vector<128x16xbf16>
    %40 = vector.shape_cast %37 : vector<128x16xbf16> to vector<1x1x128x16xbf16>
    tpu.vector_store %arg6[%c0_34, %c2, %c0_35, %c0_36], %40 {strides = array<i32>} : memref<1x4x128x16xbf16, #tpu.memory_space<vmem>>, vector<1x1x128x16xbf16>,
    %41 = vector.extract_strided_slice %11 {offsets = [0, 32], sizes = [128, 16], strides = [1, 1]} : vector<128x64xbf16> to vector<128x16xbf16>
    %c0_37 = arith.constant 0 : index
    %c2_38 = arith.constant 2 : index
    %c0_39 = arith.constant 0 : index
    %c0_40 = arith.constant 0 : index
    %42 = vector.load %arg7[%c0_37, %c2_38, %c0_39, %c0_40] : memref<1x4x128x16xbf16, #tpu.memory_space<vmem>>, vector<1x1x128x16xbf16>
    %43 = vector.shape_cast %42 : vector<1x1x128x16xbf16> to vector<128x16xbf16>
    %44 = vector.shape_cast %41 : vector<128x16xbf16> to vector<1x1x128x16xbf16>
    tpu.vector_store %arg7[%c0_37, %c2_38, %c0_39, %c0_40], %44 {strides = array<i32>} : memref<1x4x128x16xbf16, #tpu.memory_space<vmem>>, vector<1x1x128x16xbf16>,
    %45 = vector.extract_strided_slice %12 {offsets = [0, 32], sizes = [128, 16], strides = [1, 1]} : vector<128x64xbf16> to vector<128x16xbf16>
    %c0_41 = arith.constant 0 : index
    %c2_42 = arith.constant 2 : index
    %c0_43 = arith.constant 0 : index
    %c0_44 = arith.constant 0 : index
    %46 = vector.load %arg8[%c0_41, %c2_42, %c0_43, %c0_44] : memref<1x4x128x16xbf16, #tpu.memory_space<vmem>>, vector<1x1x128x16xbf16>
    %47 = vector.shape_cast %46 : vector<1x1x128x16xbf16> to vector<128x16xbf16>
    %48 = vector.shape_cast %45 : vector<128x16xbf16> to vector<1x1x128x16xbf16>
    tpu.vector_store %arg8[%c0_41, %c2_42, %c0_43, %c0_44], %48 {strides = array<i32>} : memref<1x4x128x16xbf16, #tpu.memory_space<vmem>>, vector<1x1x128x16xbf16>,
    %49 = vector.extract_strided_slice %10 {offsets = [0, 48], sizes = [128, 16], strides = [1, 1]} : vector<128x64xbf16> to vector<128x16xbf16>
    %c0_45 = arith.constant 0 : index
    %c3 = arith.constant 3 : index
    %c0_46 = arith.constant 0 : index
    %c0_47 = arith.constant 0 : index
    %50 = vector.load %arg6[%c0_45, %c3, %c0_46, %c0_47] : memref<1x4x128x16xbf16, #tpu.memory_space<vmem>>, vector<1x1x128x16xbf16>
    %51 = vector.shape_cast %50 : vector<1x1x128x16xbf16> to vector<128x16xbf16>
    %52 = vector.shape_cast %49 : vector<128x16xbf16> to vector<1x1x128x16xbf16>
    tpu.vector_store %arg6[%c0_45, %c3, %c0_46, %c0_47], %52 {strides = array<i32>} : memref<1x4x128x16xbf16, #tpu.memory_space<vmem>>, vector<1x1x128x16xbf16>,
    %53 = vector.extract_strided_slice %11 {offsets = [0, 48], sizes = [128, 16], strides = [1, 1]} : vector<128x64xbf16> to vector<128x16xbf16>
    %c0_48 = arith.constant 0 : index
    %c3_49 = arith.constant 3 : index
    %c0_50 = arith.constant 0 : index
    %c0_51 = arith.constant 0 : index
    %54 = vector.load %arg7[%c0_48, %c3_49, %c0_50, %c0_51] : memref<1x4x128x16xbf16, #tpu.memory_space<vmem>>, vector<1x1x128x16xbf16>
    %55 = vector.shape_cast %54 : vector<1x1x128x16xbf16> to vector<128x16xbf16>
    %56 = vector.shape_cast %53 : vector<128x16xbf16> to vector<1x1x128x16xbf16>
    tpu.vector_store %arg7[%c0_48, %c3_49, %c0_50, %c0_51], %56 {strides = array<i32>} : memref<1x4x128x16xbf16, #tpu.memory_space<vmem>>, vector<1x1x128x16xbf16>,
    %57 = vector.extract_strided_slice %12 {offsets = [0, 48], sizes = [128, 16], strides = [1, 1]} : vector<128x64xbf16> to vector<128x16xbf16>
    %c0_52 = arith.constant 0 : index
    %c3_53 = arith.constant 3 : index
    %c0_54 = arith.constant 0 : index
    %c0_55 = arith.constant 0 : index
    %58 = vector.load %arg8[%c0_52, %c3_53, %c0_54, %c0_55] : memref<1x4x128x16xbf16, #tpu.memory_space<vmem>>, vector<1x1x128x16xbf16>
    %59 = vector.shape_cast %58 : vector<1x1x128x16xbf16> to vector<128x16xbf16>
    %60 = vector.shape_cast %57 : vector<128x16xbf16> to vector<1x1x128x16xbf16>
    tpu.vector_store %arg8[%c0_52, %c3_53, %c0_54, %c0_55], %60 {strides = array<i32>} : memref<1x4x128x16xbf16, #tpu.memory_space<vmem>>, vector<1x1x128x16xbf16>,
    return
  }
  func.func @transform_0(%arg0: i32, %arg1: i32) -> (i32, i32, i32) {
    %c0_i32 = arith.constant 0 : i32
    %c0_i32_0 = arith.constant 0 : i32
    return %arg0, %arg1, %c0_i32 : i32, i32, i32
  }
  func.func @transform_1(%arg0: i32, %arg1: i32) -> (i32, i32) {
    %c0_i32 = arith.constant 0 : i32
    %c0_i32_0 = arith.constant 0 : i32
    %c0_i32_1 = arith.constant 0 : i32
    return %c0_i32, %c0_i32_0 : i32, i32
  }
  func.func @transform_2(%arg0: i32, %arg1: i32) -> (i32, i32) {
    %c0_i32 = arith.constant 0 : i32
    %c0_i32_0 = arith.constant 0 : i32
    %c0_i32_1 = arith.constant 0 : i32
    return %c0_i32, %c0_i32_0 : i32, i32
  }
  func.func @transform_3(%arg0: i32, %arg1: i32) -> (i32, i32) {
    %c0_i32 = arith.constant 0 : i32
    %c0_i32_0 = arith.constant 0 : i32
    %c0_i32_1 = arith.constant 0 : i32
    return %c0_i32, %c0_i32_0 : i32, i32
  }
  func.func @transform_4(%arg0: i32, %arg1: i32) -> (i32, i32, i32, i32) {
    %c0_i32 = arith.constant 0 : i32
    %c0_i32_0 = arith.constant 0 : i32
    %c0_i32_1 = arith.constant 0 : i32
    return %arg0, %c0_i32, %arg1, %c0_i32_0 : i32, i32, i32, i32
  }
  func.func @transform_5(%arg0: i32, %arg1: i32) -> (i32, i32, i32, i32) {
    %c0_i32 = arith.constant 0 : i32
    %c0_i32_0 = arith.constant 0 : i32
    %c0_i32_1 = arith.constant 0 : i32
    return %arg0, %c0_i32, %arg1, %c0_i32_0 : i32, i32, i32, i32
  }
  func.func @transform_6(%arg0: i32, %arg1: i32) -> (i32, i32, i32, i32) {
    %c0_i32 = arith.constant 0 : i32
    %c0_i32_0 = arith.constant 0 : i32
    %c0_i32_1 = arith.constant 0 : i32
    return %arg0, %c0_i32, %arg1, %c0_i32_0 : i32, i32, i32, i32
  }
}

</mosaic_0001>

<llo_original>
// kernel: tpu_custom_call.1
$region0: #{tpu_custom_call.1}
  #allocation0 [shape = 'u32[]', space=smem, size = 0x4, offset = 0x4, fixed_abs, tag = 'smem constant byte address 0x4 - core index']
  #allocation1 [shape = 'u32[144,128]{1,0:T(1,128)}', space=vmem, size = 0x12000, scoped, tag = 'internal scratch']
  %s0 = inlined_call_operand.vmem [shape: bf16[2,256,64], index: 0, kind: input, shape index: {}]
  %s1 = inlined_call_operand.vmem [shape: bf16[64,64], index: 1, kind: input, shape index: {}]
  %s2 = inlined_call_operand.vmem [shape: bf16[64,64], index: 2, kind: input, shape index: {}]
  %s3 = inlined_call_operand.vmem [shape: bf16[64,64], index: 3, kind: input, shape index: {}]
  %s4 = inlined_call_operand.vmem [shape: bf16[2,4,256,16], index: 4, kind: output, shape index: {0}]
  %s5 = inlined_call_operand.vmem [shape: bf16[2,4,256,16], index: 5, kind: output, shape index: {1}]
  %s6 = inlined_call_operand.vmem [shape: bf16[2,4,256,16], index: 6, kind: output, shape index: {2}]
  %7 = xla_tuple %s4, %s5, %s6
  %s8 = sld [smem:[#allocation0]]
  $region176: #{tpu_custom_call.1} parent=0
    _
  %s10 = ssub.s32 1, %s8
  %s11 = scalar_select 0, %s10, %s8
  $region1: #{tpu_custom_call.1} parent=0
    #allocation2 [shape = 'u8[262144]{0}', space=vmem, size = 0x40000, scoped, tag = 'output window, operand 0']
    #allocation3 [shape = 'u8[262144]{0}', space=vmem, size = 0x40000, scoped, tag = 'output window, operand 1']
    #allocation4 [shape = 'u8[262144]{0}', space=vmem, size = 0x40000, scoped, tag = 'output window, operand 2']
    loop: start=0, step=1, limit=6
    $region2: #{tpu_custom_call.1} parent=1 // loop_pre_header
      _
    $region3: #{tpu_custom_call.1} parent=1 // loop_header
      %s13 = sphi 0, %s17
      %p14 = scmp.ge.s32.totalorder %s13, 6
      %s20 = sphi 0, %s32
      %s21 = sphi 0, %s28
      %s22 = sphi 0, %s20
      %s23 = sphi 0, %s21
      %s24 = sphi 0, %s22
      %s25 = sphi 0, %s23
      %s37 = sphi 0, %s39
      %s40 = sphi 0, %s37
      %s41 = sphi 0, %s40
      %s57 = sphi 0, %s41
      %s61 = sphi 0, %s61
      %s63 = sphi 0, %s61
      %s64 = sphi 0, %s63
      %s78 = sphi 0, %s64
      %s82 = sphi 0, %s82
      %s84 = sphi 0, %s82
      %s85 = sphi 0, %s84
      %s99 = sphi 0, %s85
      %s103 = sphi 0, %s103
      %s105 = sphi 0, %s103
      %s106 = sphi 0, %s105
      %s120 = sphi 0, %s106
      %s128 = sphi 0, %s130
      %s131 = sphi 0, %s128
      %s132 = sphi 0, %s131
      %s148 = sphi 0, %s132
      %s156 = sphi 0, %s158
      %s159 = sphi 0, %s156
      %s160 = sphi 0, %s159
      %s176 = sphi 0, %s160
      %s184 = sphi 0, %s186
      %s187 = sphi 0, %s184
      %s188 = sphi 0, %s187
      %s204 = sphi 0, %s188
    $region4: #{tpu_custom_call.1} parent=1 // loop_header_branch
      %16 = sbr.rel (%p14) target = $region8
    $region5: #{tpu_custom_call.1} parent=1 // loop_body
      %s18 = ssub.s32 %s13, 1
      %s19 = ssub.s32 %s13, 2
      %s26 = sadd.s32 1, %s21
      %p27 = scmp.ge.s32.totalorder %s26, 2
      %s28 = scalar_select %p27, 0, %s26
      %s29 = sadd.s32 1, %s20
      %s30 = scalar_select %p27, %s29, %s20
      %p31 = scmp.ge.s32.totalorder %s30, 2
      %s32 = scalar_select %p31, 0, %s30
      %s33 = ssub.s32 %s20, %s32
      %s34 = ssub.s32 %s21, %s28
      %s35 = sor.u32 %s33, %s34
      %p36 = scmp.eq.s32.totalorder %s35, 0
      %s38 = sadd.s32 %s37, 1
      %s39 = scalar_select %p36, %s37, %s38
      %p42 = pneg %p36
      %p43 = scmp.eq.s32.totalorder %s13, 3
      %p44 = por %p42, %p43
      %p45 = scmp.ne.s32.totalorder %s37, %s40
      %p46 = scmp.eq.s32.totalorder %s13, 0
      %p47 = por %p45, %p46
      %p48 = scmp.ne.s32.totalorder %s37, %s40
      %p49 = scmp.eq.s32.totalorder %s18, 3
      %p50 = por %p48, %p49
      %p51 = scmp.ne.s32.totalorder %s40, %s41
      %p52 = scmp.eq.s32.totalorder %s18, 0
      %p53 = por %p51, %p52
      %p54 = scmp.ne.s32.totalorder %s40, %s41
      %p55 = scmp.eq.s32.totalorder %s19, 3
      %p56 = por %p54, %p55
      %p58 = scmp.ne.s32.totalorder %s41, %s57
      %p59 = scmp.eq.s32.totalorder %s19, 0
      %p60 = por %p58, %p59
      %s62 = sadd.s32 %s61, 1
      %p65 = scmp.eq.s32.totalorder %s13, 3
      %p66 = scmp.ne.s32.totalorder %s61, %s63
      %p67 = scmp.eq.s32.totalorder %s13, 0
      %p68 = por %p66, %p67
      %p69 = scmp.ne.s32.totalorder %s61, %s63
      %p70 = scmp.eq.s32.totalorder %s18, 3
      %p71 = por %p69, %p70
      %p72 = scmp.ne.s32.totalorder %s63, %s64
      %p73 = scmp.eq.s32.totalorder %s18, 0
      %p74 = por %p72, %p73
      %p75 = scmp.ne.s32.totalorder %s63, %s64
      %p76 = scmp.eq.s32.totalorder %s19, 3
      %p77 = por %p75, %p76
      %p79 = scmp.ne.s32.totalorder %s64, %s78
      %p80 = scmp.eq.s32.totalorder %s19, 0
      %p81 = por %p79, %p80
      %s83 = sadd.s32 %s82, 1
      %p86 = scmp.eq.s32.totalorder %s13, 3
      %p87 = scmp.ne.s32.totalorder %s82, %s84
      %p88 = scmp.eq.s32.totalorder %s13, 0
      %p89 = por %p87, %p88
      %p90 = scmp.ne.s32.totalorder %s82, %s84
      %p91 = scmp.eq.s32.totalorder %s18, 3
      %p92 = por %p90, %p91
      %p93 = scmp.ne.s32.totalorder %s84, %s85
      %p94 = scmp.eq.s32.totalorder %s18, 0
      %p95 = por %p93, %p94
      %p96 = scmp.ne.s32.totalorder %s84, %s85
      %p97 = scmp.eq.s32.totalorder %s19, 3
      %p98 = por %p96, %p97
      %p100 = scmp.ne.s32.totalorder %s85, %s99
      %p101 = scmp.eq.s32.totalorder %s19, 0
      %p102 = por %p100, %p101
      %s104 = sadd.s32 %s103, 1
      %p107 = scmp.eq.s32.totalorder %s13, 3
      %p108 = scmp.ne.s32.totalorder %s103, %s105
      %p109 = scmp.eq.s32.totalorder %s13, 0
      %p110 = por %p108, %p109
      %p111 = scmp.ne.s32.totalorder %s103, %s105
      %p112 = scmp.eq.s32.totalorder %s18, 3
      %p113 = por %p111, %p112
      %p114 = scmp.ne.s32.totalorder %s105, %s106
      %p115 = scmp.eq.s32.totalorder %s18, 0
      %p116 = por %p114, %p115
      %p117 = scmp.ne.s32.totalorder %s105, %s106
      %p118 = scmp.eq.s32.totalorder %s19, 3
      %p119 = por %p117, %p118
      %p121 = scmp.ne.s32.totalorder %s106, %s120
      %p122 = scmp.eq.s32.totalorder %s19, 0
      %p123 = por %p121, %p122
      %s124 = ssub.s32 %s20, %s32
      %s125 = ssub.s32 %s21, %s28
      %s126 = sor.u32 %s124, %s125
      %p127 = scmp.eq.s32.totalorder %s126, 0
      %s129 = sadd.s32 %s128, 1
      %s130 = scalar_select %p127, %s128, %s129
      %p133 = pneg %p127
      %p134 = scmp.eq.s32.totalorder %s13, 3
      %p135 = por %p133, %p134
      %p136 = scmp.ne.s32.totalorder %s128, %s131
      %p137 = scmp.eq.s32.totalorder %s13, 0
      %p138 = por %p136, %p137
      %p139 = scmp.ne.s32.totalorder %s128, %s131
      %p140 = scmp.eq.s32.totalorder %s18, 3
      %p141 = por %p139, %p140
      %p142 = scmp.ne.s32.totalorder %s131, %s132
      %p143 = scmp.eq.s32.totalorder %s18, 0
      %p144 = por %p142, %p143
      %p145 = scmp.ne.s32.totalorder %s131, %s132
      %p146 = scmp.eq.s32.totalorder %s19, 3
      %p147 = por %p145, %p146
      %p149 = scmp.ne.s32.totalorder %s132, %s148
      %p150 = scmp.eq.s32.totalorder %s19, 0
      %p151 = por %p149, %p150
      %s152 = ssub.s32 %s20, %s32
      %s153 = ssub.s32 %s21, %s28
      %s154 = sor.u32 %s152, %s153
      %p155 = scmp.eq.s32.totalorder %s154, 0
      %s157 = sadd.s32 %s156, 1
      %s158 = scalar_select %p155, %s156, %s157
      %p161 = pneg %p155
      %p162 = scmp.eq.s32.totalorder %s13, 3
      %p163 = por %p161, %p162
      %p164 = scmp.ne.s32.totalorder %s156, %s159
      %p165 = scmp.eq.s32.totalorder %s13, 0
      %p166 = por %p164, %p165
      %p167 = scmp.ne.s32.totalorder %s156, %s159
      %p168 = scmp.eq.s32.totalorder %s18, 3
      %p169 = por %p167, %p168
      %p170 = scmp.ne.s32.totalorder %s159, %s160
      %p171 = scmp.eq.s32.totalorder %s18, 0
      %p172 = por %p170, %p171
      %p173 = scmp.ne.s32.totalorder %s159, %s160
      %p174 = scmp.eq.s32.totalorder %s19, 3
      %p175 = por %p173, %p174
      %p177 = scmp.ne.s32.totalorder %s160, %s176
      %p178 = scmp.eq.s32.totalorder %s19, 0
      %p179 = por %p177, %p178
      %s180 = ssub.s32 %s20, %s32
      %s181 = ssub.s32 %s21, %s28
      %s182 = sor.u32 %s180, %s181
      %p183 = scmp.eq.s32.totalorder %s182, 0
      %s185 = sadd.s32 %s184, 1
      %s186 = scalar_select %p183, %s184, %s185
      %p189 = pneg %p183
      %p190 = scmp.eq.s32.totalorder %s13, 3
      %p191 = por %p189, %p190
      %p192 = scmp.ne.s32.totalorder %s184, %s187
      %p193 = scmp.eq.s32.totalorder %s13, 0
      %p194 = por %p192, %p193
      %p195 = scmp.ne.s32.totalorder %s184, %s187
      %p196 = scmp.eq.s32.totalorder %s18, 3
      %p197 = por %p195, %p196
      %p198 = scmp.ne.s32.totalorder %s187, %s188
      %p199 = scmp.eq.s32.totalorder %s18, 0
      %p200 = por %p198, %p199
      %p201 = scmp.ne.s32.totalorder %s187, %s188
      %p202 = scmp.eq.s32.totalorder %s19, 3
      %p203 = por %p201, %p202
      %p205 = scmp.ne.s32.totalorder %s188, %s204
      %p206 = scmp.eq.s32.totalorder %s19, 0
      %p207 = por %p205, %p206
      %p208 = scmp.le.s32.totalorder 1, %s13
      %p209 = scmp.lt.s32.totalorder %s13, 5
      %p210 = pnand %p208, %p209
      %p211 = pneg %p210
      // Predicated region
      $region9: #{tpu_custom_call.1} parent=5 // pred_check
        _
      $region10: #{tpu_custom_call.1} parent=5 // pred_check_branch
        %213 = sbr.rel (%p210) target = $region12
      $region11: #{tpu_custom_call.1} parent=5 // pred_region
        %s214 = ssub.s32 %s13, 1
        // Predicated region
        $region13: #{tpu_custom_call.1} parent=11 // pred_check
          %p215 = pneg %p74
        $region14: #{tpu_custom_call.1} parent=11 // pred_check_branch
          %217 = sbr.rel (%p215) target = $region16
        $region15: #{tpu_custom_call.1} parent=11 // pred_region
          _
        $region16: #{tpu_custom_call.1} parent=11 // pred_fallthru
          _
        // Predicated region
        $region17: #{tpu_custom_call.1} parent=11 // pred_check
          %p218 = pneg %p95
        $region18: #{tpu_custom_call.1} parent=11 // pred_check_branch
          %220 = sbr.rel (%p218) target = $region20
        $region19: #{tpu_custom_call.1} parent=11 // pred_region
          _
        $region20: #{tpu_custom_call.1} parent=11 // pred_fallthru
          _
        // Predicated region
        $region21: #{tpu_custom_call.1} parent=11 // pred_check
          %p221 = pneg %p116
        $region22: #{tpu_custom_call.1} parent=11 // pred_check_branch
          %223 = sbr.rel (%p221) target = $region24
        $region23: #{tpu_custom_call.1} parent=11 // pred_region
          _
        $region24: #{tpu_custom_call.1} parent=11 // pred_fallthru
          _
      $region12: #{tpu_custom_call.1} parent=5 // pred_fallthru
        _
      %p224 = scmp.lt.s32.totalorder %s13, 4
      // Predicated region
      $region25: #{tpu_custom_call.1} parent=5 // pred_check
        %p225 = pneg %p224
      $region26: #{tpu_custom_call.1} parent=5 // pred_check_branch
        %227 = sbr.rel (%p225) target = $region28
      $region27: #{tpu_custom_call.1} parent=5 // pred_region
        // Predicated region
        $region29: #{tpu_custom_call.1} parent=27 // pred_check
          %p228 = pneg %p47
        $region30: #{tpu_custom_call.1} parent=27 // pred_check_branch
          %230 = sbr.rel (%p228) target = $region32
        $region31: #{tpu_custom_call.1} parent=27 // pred_region
          %s231 = smul.u32 16, %s21
          %p232 = scmp.lt.s32.totalorder %s20, 1
          %s233 = scalar_select %p232, %s20, 1
          %p234 = scmp.lt.s32.totalorder %s231, 31
          %s235 = scalar_select %p234, %s231, 31
          %s236 = smul.addr %s233, 32
          %s237 = sadd.s32 %s235, %s236
          %s238 = smul.addr %s237, 4
          %s239 = scalar_lea.vmem %s0, %s238
          %s240 = smul.u32 16, %s21
        $region32: #{tpu_custom_call.1} parent=27 // pred_fallthru
          _
      $region28: #{tpu_custom_call.1} parent=5 // pred_fallthru
        _
      %p241 = scmp.le.s32.totalorder 1, %s13
      %p242 = scmp.lt.s32.totalorder %s13, 5
      %p243 = pnand %p241, %p242
      %p244 = pneg %p243
      // Predicated region
      $region33: #{tpu_custom_call.1} parent=5 // pred_check
        _
      $region34: #{tpu_custom_call.1} parent=5 // pred_check_branch
        %246 = sbr.rel (%p243) target = $region36
      $region35: #{tpu_custom_call.1} parent=5 // pred_region
        %s247 = ssub.s32 %s13, 1
        %s248 = smul.u32 16, %s23
        %p249 = scmp.lt.s32.totalorder %s22, 1
        %s250 = scalar_select %p249, %s22, 1
        %p251 = scmp.lt.s32.totalorder %s248, 31
        %s252 = scalar_select %p251, %s248, 31
        %s253 = smul.addr %s250, 32
        %s254 = sadd.s32 %s252, %s253
        %s255 = smul.addr %s254, 4
        %s256 = scalar_lea.vmem %s0, %s255
        %p257 = pneg %p53
        %p258 = pneg %p50
        %p259 = pneg %p74
        %p260 = pneg %p71
        %p261 = pneg %p95
        %p262 = pneg %p92
        %p263 = pneg %p116
        %p264 = pneg %p113
        %p265 = pneg %p144
        %p266 = pneg %p141
        %s267 = sand.u32 %s131, 1
        %s268 = sand.u32 %s131, 1
        %s269 = smul.addr %s268, 256
        %s270 = scalar_lea.vmem [#allocation2], %s269
        %p271 = pneg %p172
        %p272 = pneg %p169
        %s273 = sand.u32 %s159, 1
        %s274 = sand.u32 %s159, 1
        %s275 = smul.addr %s274, 256
        %s276 = scalar_lea.vmem [#allocation3], %s275
        %p277 = pneg %p200
        %p278 = pneg %p197
        %s279 = sand.u32 %s187, 1
        %s280 = sand.u32 %s187, 1
        %s281 = smul.addr %s280, 256
        %s282 = scalar_lea.vmem [#allocation4], %s281
        %s283 = smul.u32 16, %s23
        %p284 = scmp.lt.s32.totalorder %s22, 1
        %s285 = scalar_select %p284, %s22, 1
        %p286 = scmp.lt.s32.totalorder %s283, 31
        %s287 = scalar_select %p286, %s283, 31
        %s288 = smul.addr %s285, 32
        %s289 = sadd.s32 %s287, %s288
        %s290 = smul.addr %s289, 4
        %s291 = scalar_lea.vmem %s0, %s290
        %s292 = smul.u32 16, %s23
        %s293 = smul.u32 16, %s23
        %s294 = smul.u32 16, %s23
        %s295 = smul.u32 16, %s23
        %v297 = vld [vmem:[%s291] sm:$0xf]
        %v298 = vld [vmem:[%s291 + $0x4] sm:$0xf]
        %v299 = vld [vmem:[%s291 + $0x8] sm:$0xf]
        %v300 = vld [vmem:[%s291 + $0xc] sm:$0xf]
        %v301 = vld [vmem:[%s291 + $0x10] sm:$0xf]
        %v302 = vld [vmem:[%s291 + $0x14] sm:$0xf]
        %v303 = vld [vmem:[%s291 + $0x18] sm:$0xf]
        %v304 = vld [vmem:[%s291 + $0x1c] sm:$0xf]
        %v305 = vld [vmem:[%s291 + $0x20] sm:$0xf]
        %v306 = vld [vmem:[%s291 + $0x24] sm:$0xf]
        %v307 = vld [vmem:[%s291 + $0x28] sm:$0xf]
        %v308 = vld [vmem:[%s291 + $0x2c] sm:$0xf]
        %v309 = vld [vmem:[%s291 + $0x30] sm:$0xf]
        %v310 = vld [vmem:[%s291 + $0x34] sm:$0xf]
        %v311 = vld [vmem:[%s291 + $0x38] sm:$0xf]
        %v312 = vld [vmem:[%s291 + $0x3c] sm:$0xf]
        %v313 = vld [vmem:[%s1] sm:$0xf]
        %v314 = vld [vmem:[%s1 + $0x4] sm:$0xf]
        %v315 = vld [vmem:[%s1 + $0x8] sm:$0xf]
        %v316 = vld [vmem:[%s1 + $0xc] sm:$0xf]
        %v317 = vld [vmem:[%s1 + $0x10] sm:$0xf]
        %v318 = vld [vmem:[%s1 + $0x14] sm:$0xf]
        %v319 = vld [vmem:[%s1 + $0x18] sm:$0xf]
        %v320 = vld [vmem:[%s1 + $0x1c] sm:$0xf]
        %v337 = vunpack.c.l.b16 %v297
        %v338 = vunpack.c.l.b16 %v298
        %v339 = vunpack.c.l.b16 %v299
        %v340 = vunpack.c.l.b16 %v300
        %v341 = vunpack.c.l.b16 %v301
        %v342 = vunpack.c.l.b16 %v302
        %v343 = vunpack.c.l.b16 %v303
        %v344 = vunpack.c.l.b16 %v304
        %v345 = vunpack.c.l.b16 %v305
        %v346 = vunpack.c.l.b16 %v306
        %v347 = vunpack.c.l.b16 %v307
        %v348 = vunpack.c.l.b16 %v308
        %v349 = vunpack.c.l.b16 %v309
        %v350 = vunpack.c.l.b16 %v310
        %v351 = vunpack.c.l.b16 %v311
        %v352 = vunpack.c.l.b16 %v312
        %v353 = vpack.c.b16 %v338, %v337
        %v354 = vpack.c.b16 %v340, %v339
        %v355 = vpack.c.b16 %v342, %v341
        %v356 = vpack.c.b16 %v344, %v343
        %v357 = vpack.c.b16 %v346, %v345
        %v358 = vpack.c.b16 %v348, %v347
        %v359 = vpack.c.b16 %v350, %v349
        %v360 = vpack.c.b16 %v352, %v351
        %v369 = vunpack.c.l.b16 %v313
        %v370 = vunpack.c.l.b16 %v314
        %v371 = vunpack.c.l.b16 %v315
        %v372 = vunpack.c.l.b16 %v316
        %v373 = vunpack.c.l.b16 %v317
        %v374 = vunpack.c.l.b16 %v318
        %v375 = vunpack.c.l.b16 %v319
        %v376 = vunpack.c.l.b16 %v320
        %v377 = vpack.c.b16 %v370, %v369
        %v378 = vpack.c.b16 %v372, %v371
        %v379 = vpack.c.b16 %v374, %v373
        %v380 = vpack.c.b16 %v376, %v375
        %vm385 = vcmask 523264
        %v387 = vsel %vm385, %v353, 0
        %v390 = vsel %vm385, %v354, 0
        %v393 = vsel %vm385, %v355, 0
        %v396 = vsel %vm385, %v356, 0
        %v399 = vsel %vm385, %v357, 0
        %v402 = vsel %vm385, %v358, 0
        %v405 = vsel %vm385, %v359, 0
        %v408 = vsel %vm385, %v360, 0
        %410 = vmatprep.subr.bf16.mxu0 0
        %411 = vmatpush1.bf16.msra.mxu0 0
        %412 = vmatprep.subr.bf16.mxu0 0
        %413 = vmatpush1.bf16.msra.mxu0 0
        %414 = vmatprep.subr.bf16.mxu0 0
        %415 = vmatpush1.bf16.msra.mxu0 0
        %416 = vmatprep.subr.bf16.mxu0 0
        %417 = vmatpush1.bf16.msra.mxu0 0
        %418 = vmatprep.subr.bf16.mxu0 0
        %419 = vmatpush1.bf16.msra.mxu0 %v380
        %420 = vmatprep.subr.bf16.mxu0 0
        %421 = vmatpush1.bf16.msra.mxu0 %v379
        %422 = vmatprep.subr.bf16.mxu0 0
        %423 = vmatpush1.bf16.msra.mxu0 %v378
        %424 = vmatprep.subr.bf16.mxu0 0
        %425 = vmatpush1.bf16.msra.mxu0 %v377
        %426 = vmatprep.subr.bf16.mxu0 0
        %427 = vmatpush2.bf16.msra.mxu0 0
        %428 = vmatprep.subr.bf16.mxu0 0
        %429 = vmatpush2.bf16.msra.mxu0 0
        %430 = vmatprep.subr.bf16.mxu0 0
        %431 = vmatpush2.bf16.msra.mxu0 0
        %432 = vmatprep.subr.bf16.mxu0 0
        %433 = vmatpush2.bf16.msra.mxu0 0
        %434 = vmatprep.subr.bf16.mxu0 0
        %435 = vmatpush2.bf16.msra.mxu0 0
        %436 = vmatprep.subr.bf16.mxu0 0
        %437 = vmatpush2.bf16.msra.mxu0 0
        %438 = vmatprep.subr.bf16.mxu0 0
        %439 = vmatpush2.bf16.msra.mxu0 0
        %440 = vmatprep.subr.bf16.mxu0 0
        %441 = vmatpush2.bf16.msra.mxu0 0
        %442 = vmatprep.mubr.bf16.mxu0 0
        %443 = vmatmul.mubr.bf16.gmra.mxu0 %v387
        %v444 = vpop.f32.mrf.mxu0
        %v445 = vadd.f32 0.0, %v444
        %v446 = vpop.f32.mrf.mxu0
        %v447 = vpop.f32.mrf.mxu0
        %v448 = vadd.f32 0.0, %v447
        %v449 = vpop.f32.mrf.mxu0
        %450 = vmatprep.mubr.bf16.mxu0 0
        %451 = vmatmul.mubr.bf16.gmra.mxu0 %v390
        %v452 = vpop.f32.mrf.mxu0
        %v453 = vadd.f32 0.0, %v452
        %v454 = vpop.f32.mrf.mxu0
        %v455 = vpop.f32.mrf.mxu0
        %v456 = vadd.f32 0.0, %v455
        %v457 = vpop.f32.mrf.mxu0
        %458 = vmatprep.mubr.bf16.mxu0 0
        %459 = vmatmul.mubr.bf16.gmra.mxu0 %v393
        %v460 = vpop.f32.mrf.mxu0
        %v461 = vadd.f32 0.0, %v460
        %v462 = vpop.f32.mrf.mxu0
        %v463 = vpop.f32.mrf.mxu0
        %v464 = vadd.f32 0.0, %v463
        %v465 = vpop.f32.mrf.mxu0
        %466 = vmatprep.mubr.bf16.mxu0 0
        %467 = vmatmul.mubr.bf16.gmra.mxu0 %v396
        %v468 = vpop.f32.mrf.mxu0
        %v469 = vadd.f32 0.0, %v468
        %v470 = vpop.f32.mrf.mxu0
        %v471 = vpop.f32.mrf.mxu0
        %v472 = vadd.f32 0.0, %v471
        %v473 = vpop.f32.mrf.mxu0
        %474 = vmatprep.mubr.bf16.mxu0 0
        %475 = vmatmul.mubr.bf16.gmra.mxu0 %v399
        %v476 = vpop.f32.mrf.mxu0
        %v477 = vadd.f32 0.0, %v476
        %v478 = vpop.f32.mrf.mxu0
        %v479 = vpop.f32.mrf.mxu0
        %v480 = vadd.f32 0.0, %v479
        %v481 = vpop.f32.mrf.mxu0
        %482 = vmatprep.mubr.bf16.mxu0 0
        %483 = vmatmul.mubr.bf16.gmra.mxu0 %v402
        %v484 = vpop.f32.mrf.mxu0
        %v485 = vadd.f32 0.0, %v484
        %v486 = vpop.f32.mrf.mxu0
        %v487 = vpop.f32.mrf.mxu0
        %v488 = vadd.f32 0.0, %v487
        %v489 = vpop.f32.mrf.mxu0
        %490 = vmatprep.mubr.bf16.mxu0 0
        %491 = vmatmul.mubr.bf16.gmra.mxu0 %v405
        %v492 = vpop.f32.mrf.mxu0
        %v493 = vadd.f32 0.0, %v492
        %v494 = vpop.f32.mrf.mxu0
        %v495 = vpop.f32.mrf.mxu0
        %v496 = vadd.f32 0.0, %v495
        %v497 = vpop.f32.mrf.mxu0
        %498 = vmatprep.mubr.bf16.mxu0 0
        %499 = vmatmul.mubr.bf16.gmra.mxu0 %v408
        %v500 = vpop.f32.mrf.mxu0
        %v501 = vadd.f32 0.0, %v500
        %v502 = vpop.f32.mrf.mxu0
        %v503 = vpop.f32.mrf.mxu0
        %v504 = vadd.f32 0.0, %v503
        %v505 = vpop.f32.mrf.mxu0
        %506 = vdwg.mxu0
        %v507 = vld [vmem:[%s2] sm:$0xf]
        %v508 = vld [vmem:[%s2 + $0x4] sm:$0xf]
        %v509 = vld [vmem:[%s2 + $0x8] sm:$0xf]
        %v510 = vld [vmem:[%s2 + $0xc] sm:$0xf]
        %v511 = vld [vmem:[%s2 + $0x10] sm:$0xf]
        %v512 = vld [vmem:[%s2 + $0x14] sm:$0xf]
        %v513 = vld [vmem:[%s2 + $0x18] sm:$0xf]
        %v514 = vld [vmem:[%s2 + $0x1c] sm:$0xf]
        %v523 = vunpack.c.l.b16 %v507
        %v524 = vunpack.c.l.b16 %v508
        %v525 = vunpack.c.l.b16 %v509
        %v526 = vunpack.c.l.b16 %v510
        %v527 = vunpack.c.l.b16 %v511
        %v528 = vunpack.c.l.b16 %v512
        %v529 = vunpack.c.l.b16 %v513
        %v530 = vunpack.c.l.b16 %v514
        %v531 = vpack.c.b16 %v524, %v523
        %v532 = vpack.c.b16 %v526, %v525
        %v533 = vpack.c.b16 %v528, %v527
        %v534 = vpack.c.b16 %v530, %v529
        %539 = vmatprep.subr.bf16.mxu0 0
        %540 = vmatpush1.bf16.msra.mxu0 0
        %541 = vmatprep.subr.bf16.mxu0 0
        %542 = vmatpush1.bf16.msra.mxu0 0
        %543 = vmatprep.subr.bf16.mxu0 0
        %544 = vmatpush1.bf16.msra.mxu0 0
        %545 = vmatprep.subr.bf16.mxu0 0
        %546 = vmatpush1.bf16.msra.mxu0 0
        %547 = vmatprep.subr.bf16.mxu0 0
        %548 = vmatpush1.bf16.msra.mxu0 %v534
        %549 = vmatprep.subr.bf16.mxu0 0
        %550 = vmatpush1.bf16.msra.mxu0 %v533
        %551 = vmatprep.subr.bf16.mxu0 0
        %552 = vmatpush1.bf16.msra.mxu0 %v532
        %553 = vmatprep.subr.bf16.mxu0 0
        %554 = vmatpush1.bf16.msra.mxu0 %v531
        %555 = vmatprep.subr.bf16.mxu0 0
        %556 = vmatpush2.bf16.msra.mxu0 0
        %557 = vmatprep.subr.bf16.mxu0 0
        %558 = vmatpush2.bf16.msra.mxu0 0
        %559 = vmatprep.subr.bf16.mxu0 0
        %560 = vmatpush2.bf16.msra.mxu0 0
        %561 = vmatprep.subr.bf16.mxu0 0
        %562 = vmatpush2.bf16.msra.mxu0 0
        %563 = vmatprep.subr.bf16.mxu0 0
        %564 = vmatpush2.bf16.msra.mxu0 0
        %565 = vmatprep.subr.bf16.mxu0 0
        %566 = vmatpush2.bf16.msra.mxu0 0
        %567 = vmatprep.subr.bf16.mxu0 0
        %568 = vmatpush2.bf16.msra.mxu0 0
        %569 = vmatprep.subr.bf16.mxu0 0
        %570 = vmatpush2.bf16.msra.mxu0 0
        %571 = vmatprep.mubr.bf16.mxu0 0
        %572 = vmatmul.mubr.bf16.gmra.mxu0 %v387
        %v573 = vpop.f32.mrf.mxu0
        %v574 = vadd.f32 0.0, %v573
        %v575 = vpop.f32.mrf.mxu0
        %v576 = vpop.f32.mrf.mxu0
        %v577 = vadd.f32 0.0, %v576
        %v578 = vpop.f32.mrf.mxu0
        %579 = vmatprep.mubr.bf16.mxu0 0
        %580 = vmatmul.mubr.bf16.gmra.mxu0 %v390
        %v581 = vpop.f32.mrf.mxu0
        %v582 = vadd.f32 0.0, %v581
        %v583 = vpop.f32.mrf.mxu0
        %v584 = vpop.f32.mrf.mxu0
        %v585 = vadd.f32 0.0, %v584
        %v586 = vpop.f32.mrf.mxu0
        %587 = vmatprep.mubr.bf16.mxu0 0
        %588 = vmatmul.mubr.bf16.gmra.mxu0 %v393
        %v589 = vpop.f32.mrf.mxu0
        %v590 = vadd.f32 0.0, %v589
        %v591 = vpop.f32.mrf.mxu0
        %v592 = vpop.f32.mrf.mxu0
        %v593 = vadd.f32 0.0, %v592
        %v594 = vpop.f32.mrf.mxu0
        %595 = vmatprep.mubr.bf16.mxu0 0
        %596 = vmatmul.mubr.bf16.gmra.mxu0 %v396
        %v597 = vpop.f32.mrf.mxu0
        %v598 = vadd.f32 0.0, %v597
        %v599 = vpop.f32.mrf.mxu0
        %v600 = vpop.f32.mrf.mxu0
        %v601 = vadd.f32 0.0, %v600
        %v602 = vpop.f32.mrf.mxu0
        %603 = vmatprep.mubr.bf16.mxu0 0
        %604 = vmatmul.mubr.bf16.gmra.mxu0 %v399
        %v605 = vpop.f32.mrf.mxu0
        %v606 = vadd.f32 0.0, %v605
        %v607 = vpop.f32.mrf.mxu0
        %v608 = vpop.f32.mrf.mxu0
        %v609 = vadd.f32 0.0, %v608
        %v610 = vpop.f32.mrf.mxu0
        %611 = vmatprep.mubr.bf16.mxu0 0
        %612 = vmatmul.mubr.bf16.gmra.mxu0 %v402
        %v613 = vpop.f32.mrf.mxu0
        %v614 = vadd.f32 0.0, %v613
        %v615 = vpop.f32.mrf.mxu0
        %v616 = vpop.f32.mrf.mxu0
        %v617 = vadd.f32 0.0, %v616
        %v618 = vpop.f32.mrf.mxu0
        %619 = vmatprep.mubr.bf16.mxu0 0
        %620 = vmatmul.mubr.bf16.gmra.mxu0 %v405
        %v621 = vpop.f32.mrf.mxu0
        %v622 = vadd.f32 0.0, %v621
        %v623 = vpop.f32.mrf.mxu0
        %v624 = vpop.f32.mrf.mxu0
        %v625 = vadd.f32 0.0, %v624
        %v626 = vpop.f32.mrf.mxu0
        %627 = vmatprep.mubr.bf16.mxu0 0
        %628 = vmatmul.mubr.bf16.gmra.mxu0 %v408
        %v629 = vpop.f32.mrf.mxu0
        %v630 = vadd.f32 0.0, %v629
        %v631 = vpop.f32.mrf.mxu0
        %v632 = vpop.f32.mrf.mxu0
        %v633 = vadd.f32 0.0, %v632
        %v634 = vpop.f32.mrf.mxu0
        %635 = vdwg.mxu0
        %v636 = vld [vmem:[%s3] sm:$0xf]
        %v637 = vld [vmem:[%s3 + $0x4] sm:$0xf]
        %v638 = vld [vmem:[%s3 + $0x8] sm:$0xf]
        %v639 = vld [vmem:[%s3 + $0xc] sm:$0xf]
        %v640 = vld [vmem:[%s3 + $0x10] sm:$0xf]
        %v641 = vld [vmem:[%s3 + $0x14] sm:$0xf]
        %v642 = vld [vmem:[%s3 + $0x18] sm:$0xf]
        %v643 = vld [vmem:[%s3 + $0x1c] sm:$0xf]
        %v652 = vunpack.c.l.b16 %v636
        %v653 = vunpack.c.l.b16 %v637
        %v654 = vunpack.c.l.b16 %v638
        %v655 = vunpack.c.l.b16 %v639
        %v656 = vunpack.c.l.b16 %v640
        %v657 = vunpack.c.l.b16 %v641
        %v658 = vunpack.c.l.b16 %v642
        %v659 = vunpack.c.l.b16 %v643
        %v660 = vpack.c.b16 %v653, %v652
        %v661 = vpack.c.b16 %v655, %v654
        %v662 = vpack.c.b16 %v657, %v656
        %v663 = vpack.c.b16 %v659, %v658
        %668 = vmatprep.subr.bf16.mxu0 0
        %669 = vmatpush1.bf16.msra.mxu0 0
        %670 = vmatprep.subr.bf16.mxu0 0
        %671 = vmatpush1.bf16.msra.mxu0 0
        %672 = vmatprep.subr.bf16.mxu0 0
        %673 = vmatpush1.bf16.msra.mxu0 0
        %674 = vmatprep.subr.bf16.mxu0 0
        %675 = vmatpush1.bf16.msra.mxu0 0
        %676 = vmatprep.subr.bf16.mxu0 0
        %677 = vmatpush1.bf16.msra.mxu0 %v663
        %678 = vmatprep.subr.bf16.mxu0 0
        %679 = vmatpush1.bf16.msra.mxu0 %v662
        %680 = vmatprep.subr.bf16.mxu0 0
        %681 = vmatpush1.bf16.msra.mxu0 %v661
        %682 = vmatprep.subr.bf16.mxu0 0
        %683 = vmatpush1.bf16.msra.mxu0 %v660
        %684 = vmatprep.subr.bf16.mxu0 0
        %685 = vmatpush2.bf16.msra.mxu0 0
        %686 = vmatprep.subr.bf16.mxu0 0
        %687 = vmatpush2.bf16.msra.mxu0 0
        %688 = vmatprep.subr.bf16.mxu0 0
        %689 = vmatpush2.bf16.msra.mxu0 0
        %690 = vmatprep.subr.bf16.mxu0 0
        %691 = vmatpush2.bf16.msra.mxu0 0
        %692 = vmatprep.subr.bf16.mxu0 0
        %693 = vmatpush2.bf16.msra.mxu0 0
        %694 = vmatprep.subr.bf16.mxu0 0
        %695 = vmatpush2.bf16.msra.mxu0 0
        %696 = vmatprep.subr.bf16.mxu0 0
        %697 = vmatpush2.bf16.msra.mxu0 0
        %698 = vmatprep.subr.bf16.mxu0 0
        %699 = vmatpush2.bf16.msra.mxu0 0
        %700 = vmatprep.mubr.bf16.mxu0 0
        %701 = vmatmul.mubr.bf16.gmra.mxu0 %v387
        %v702 = vpop.f32.mrf.mxu0
        %v703 = vadd.f32 0.0, %v702
        %v704 = vpop.f32.mrf.mxu0
        %v705 = vpop.f32.mrf.mxu0
        %v706 = vadd.f32 0.0, %v705
        %v707 = vpop.f32.mrf.mxu0
        %708 = vmatprep.mubr.bf16.mxu0 0
        %709 = vmatmul.mubr.bf16.gmra.mxu0 %v390
        %v710 = vpop.f32.mrf.mxu0
        %v711 = vadd.f32 0.0, %v710
        %v712 = vpop.f32.mrf.mxu0
        %v713 = vpop.f32.mrf.mxu0
        %v714 = vadd.f32 0.0, %v713
        %v715 = vpop.f32.mrf.mxu0
        %716 = vmatprep.mubr.bf16.mxu0 0
        %717 = vmatmul.mubr.bf16.gmra.mxu0 %v393
        %v718 = vpop.f32.mrf.mxu0
        %v719 = vadd.f32 0.0, %v718
        %v720 = vpop.f32.mrf.mxu0
        %v721 = vpop.f32.mrf.mxu0
        %v722 = vadd.f32 0.0, %v721
        %v723 = vpop.f32.mrf.mxu0
        %724 = vmatprep.mubr.bf16.mxu0 0
        %725 = vmatmul.mubr.bf16.gmra.mxu0 %v396
        %v726 = vpop.f32.mrf.mxu0
        %v727 = vadd.f32 0.0, %v726
        %v728 = vpop.f32.mrf.mxu0
        %v729 = vpop.f32.mrf.mxu0
        %v730 = vadd.f32 0.0, %v729
        %v731 = vpop.f32.mrf.mxu0
        %732 = vmatprep.mubr.bf16.mxu0 0
        %733 = vmatmul.mubr.bf16.gmra.mxu0 %v399
        %v734 = vpop.f32.mrf.mxu0
        %v735 = vadd.f32 0.0, %v734
        %v736 = vpop.f32.mrf.mxu0
        %v737 = vpop.f32.mrf.mxu0
        %v738 = vadd.f32 0.0, %v737
        %v739 = vpop.f32.mrf.mxu0
        %740 = vmatprep.mubr.bf16.mxu0 0
        %741 = vmatmul.mubr.bf16.gmra.mxu0 %v402
        %v742 = vpop.f32.mrf.mxu0
        %v743 = vadd.f32 0.0, %v742
        %v744 = vpop.f32.mrf.mxu0
        %v745 = vpop.f32.mrf.mxu0
        %v746 = vadd.f32 0.0, %v745
        %v747 = vpop.f32.mrf.mxu0
        %748 = vmatprep.mubr.bf16.mxu0 0
        %749 = vmatmul.mubr.bf16.gmra.mxu0 %v405
        %v750 = vpop.f32.mrf.mxu0
        %v751 = vadd.f32 0.0, %v750
        %v752 = vpop.f32.mrf.mxu0
        %v753 = vpop.f32.mrf.mxu0
        %v754 = vadd.f32 0.0, %v753
        %v755 = vpop.f32.mrf.mxu0
        %756 = vmatprep.mubr.bf16.mxu0 0
        %757 = vmatmul.mubr.bf16.gmra.mxu0 %v408
        %v758 = vpop.f32.mrf.mxu0
        %v759 = vadd.f32 0.0, %v758
        %v760 = vpop.f32.mrf.mxu0
        %v761 = vpop.f32.mrf.mxu0
        %v762 = vadd.f32 0.0, %v761
        %v763 = vpop.f32.mrf.mxu0
        %764 = vdwg.mxu0
        %v765 = vmul.f32 %v445, 0.25
        %v766 = vmul.f32 %v448, 0.25
        %v767 = vmul.f32 %v453, 0.25
        %v768 = vmul.f32 %v456, 0.25
        %v769 = vmul.f32 %v461, 0.25
        %v770 = vmul.f32 %v464, 0.25
        %v771 = vmul.f32 %v469, 0.25
        %v772 = vmul.f32 %v472, 0.25
        %v773 = vmul.f32 %v477, 0.25
        %v774 = vmul.f32 %v480, 0.25
        %v775 = vmul.f32 %v485, 0.25
        %v776 = vmul.f32 %v488, 0.25
        %v777 = vmul.f32 %v493, 0.25
        %v778 = vmul.f32 %v496, 0.25
        %v779 = vmul.f32 %v501, 0.25
        %v780 = vmul.f32 %v504, 0.25
        %v781 = vpack.c.bf16 %v766, %v765
        %v782 = vpack.c.bf16 %v768, %v767
        %v783 = vpack.c.bf16 %v770, %v769
        %v784 = vpack.c.bf16 %v772, %v771
        %v785 = vpack.c.bf16 %v774, %v773
        %v786 = vpack.c.bf16 %v776, %v775
        %v787 = vpack.c.bf16 %v778, %v777
        %v788 = vpack.c.bf16 %v780, %v779
        %v789 = vpack.c.bf16 %v577, %v574
        %v790 = vpack.c.bf16 %v585, %v582
        %v791 = vpack.c.bf16 %v593, %v590
        %v792 = vpack.c.bf16 %v601, %v598
        %v793 = vpack.c.bf16 %v609, %v606
        %v794 = vpack.c.bf16 %v617, %v614
        %v795 = vpack.c.bf16 %v625, %v622
        %v796 = vpack.c.bf16 %v633, %v630
        %v797 = vpack.c.bf16 %v706, %v703
        %v798 = vpack.c.bf16 %v714, %v711
        %v799 = vpack.c.bf16 %v722, %v719
        %v800 = vpack.c.bf16 %v730, %v727
        %v801 = vpack.c.bf16 %v738, %v735
        %v802 = vpack.c.bf16 %v746, %v743
        %v803 = vpack.c.bf16 %v754, %v751
        %v804 = vpack.c.bf16 %v762, %v759
        %v813 = vunpack.c.l.b16 %v781
        %v814 = vunpack.c.h.b16 %v781
        %v815 = vunpack.c.l.b16 %v782
        %v816 = vunpack.c.h.b16 %v782
        %v817 = vunpack.c.l.b16 %v783
        %v818 = vunpack.c.h.b16 %v783
        %v819 = vunpack.c.l.b16 %v784
        %v820 = vunpack.c.h.b16 %v784
        %v821 = vunpack.c.l.b16 %v785
        %v822 = vunpack.c.h.b16 %v785
        %v823 = vunpack.c.l.b16 %v786
        %v824 = vunpack.c.h.b16 %v786
        %v825 = vunpack.c.l.b16 %v787
        %v826 = vunpack.c.h.b16 %v787
        %v827 = vunpack.c.l.b16 %v788
        %v828 = vunpack.c.h.b16 %v788
        %v829 = vpack.c.b16 %v813, %v813
        %v830 = vpack.c.b16 %v814, %v814
        %v831 = vpack.c.b16 %v815, %v815
        %v832 = vpack.c.b16 %v816, %v816
        %v833 = vpack.c.b16 %v817, %v817
        %v834 = vpack.c.b16 %v818, %v818
        %v835 = vpack.c.b16 %v819, %v819
        %v836 = vpack.c.b16 %v820, %v820
        %v837 = vpack.c.b16 %v821, %v821
        %v838 = vpack.c.b16 %v822, %v822
        %v839 = vpack.c.b16 %v823, %v823
        %v840 = vpack.c.b16 %v824, %v824
        %v841 = vpack.c.b16 %v825, %v825
        %v842 = vpack.c.b16 %v826, %v826
        %v843 = vpack.c.b16 %v827, %v827
        %v844 = vpack.c.b16 %v828, %v828
        %vm861 = vcmask 125952
        %862 = vst.msk [vmem:[%s270] sm:$0xf] %vm861, %v829
        %863 = vst.msk [vmem:[%s270 + $0x4] sm:$0xf] %vm861, %v830
        %864 = vst.msk [vmem:[%s270 + $0x8] sm:$0xf] %vm861, %v831
        %865 = vst.msk [vmem:[%s270 + $0xc] sm:$0xf] %vm861, %v832
        %866 = vst.msk [vmem:[%s270 + $0x10] sm:$0xf] %vm861, %v833
        %867 = vst.msk [vmem:[%s270 + $0x14] sm:$0xf] %vm861, %v834
        %868 = vst.msk [vmem:[%s270 + $0x18] sm:$0xf] %vm861, %v835
        %869 = vst.msk [vmem:[%s270 + $0x1c] sm:$0xf] %vm861, %v836
        %870 = vst.msk [vmem:[%s270 + $0x20] sm:$0xf] %vm861, %v837
        %871 = vst.msk [vmem:[%s270 + $0x24] sm:$0xf] %vm861, %v838
        %872 = vst.msk [vmem:[%s270 + $0x28] sm:$0xf] %vm861, %v839
        %873 = vst.msk [vmem:[%s270 + $0x2c] sm:$0xf] %vm861, %v840
        %874 = vst.msk [vmem:[%s270 + $0x30] sm:$0xf] %vm861, %v841
        %875 = vst.msk [vmem:[%s270 + $0x34] sm:$0xf] %vm861, %v842
        %876 = vst.msk [vmem:[%s270 + $0x38] sm:$0xf] %vm861, %v843
        %877 = vst.msk [vmem:[%s270 + $0x3c] sm:$0xf] %vm861, %v844
        %v886 = vunpack.c.l.b16 %v789
        %v887 = vunpack.c.h.b16 %v789
        %v888 = vunpack.c.l.b16 %v790
        %v889 = vunpack.c.h.b16 %v790
        %v890 = vunpack.c.l.b16 %v791
        %v891 = vunpack.c.h.b16 %v791
        %v892 = vunpack.c.l.b16 %v792
        %v893 = vunpack.c.h.b16 %v792
        %v894 = vunpack.c.l.b16 %v793
        %v895 = vunpack.c.h.b16 %v793
        %v896 = vunpack.c.l.b16 %v794
        %v897 = vunpack.c.h.b16 %v794
        %v898 = vunpack.c.l.b16 %v795
        %v899 = vunpack.c.h.b16 %v795
        %v900 = vunpack.c.l.b16 %v796
        %v901 = vunpack.c.h.b16 %v796
        %v902 = vpack.c.b16 %v886, %v886
        %v903 = vpack.c.b16 %v887, %v887
        %v904 = vpack.c.b16 %v888, %v888
        %v905 = vpack.c.b16 %v889, %v889
        %v906 = vpack.c.b16 %v890, %v890
        %v907 = vpack.c.b16 %v891, %v891
        %v908 = vpack.c.b16 %v892, %v892
        %v909 = vpack.c.b16 %v893, %v893
        %v910 = vpack.c.b16 %v894, %v894
        %v911 = vpack.c.b16 %v895, %v895
        %v912 = vpack.c.b16 %v896, %v896
        %v913 = vpack.c.b16 %v897, %v897
        %v914 = vpack.c.b16 %v898, %v898
        %v915 = vpack.c.b16 %v899, %v899
        %v916 = vpack.c.b16 %v900, %v900
        %v917 = vpack.c.b16 %v901, %v901
        %934 = vst.msk [vmem:[%s276] sm:$0xf] %vm861, %v902
        %935 = vst.msk [vmem:[%s276 + $0x4] sm:$0xf] %vm861, %v903
        %936 = vst.msk [vmem:[%s276 + $0x8] sm:$0xf] %vm861, %v904
        %937 = vst.msk [vmem:[%s276 + $0xc] sm:$0xf] %vm861, %v905
        %938 = vst.msk [vmem:[%s276 + $0x10] sm:$0xf] %vm861, %v906
        %939 = vst.msk [vmem:[%s276 + $0x14] sm:$0xf] %vm861, %v907
        %940 = vst.msk [vmem:[%s276 + $0x18] sm:$0xf] %vm861, %v908
        %941 = vst.msk [vmem:[%s276 + $0x1c] sm:$0xf] %vm861, %v909
        %942 = vst.msk [vmem:[%s276 + $0x20] sm:$0xf] %vm861, %v910
        %943 = vst.msk [vmem:[%s276 + $0x24] sm:$0xf] %vm861, %v911
        %944 = vst.msk [vmem:[%s276 + $0x28] sm:$0xf] %vm861, %v912
        %945 = vst.msk [vmem:[%s276 + $0x2c] sm:$0xf] %vm861, %v913
        %946 = vst.msk [vmem:[%s276 + $0x30] sm:$0xf] %vm861, %v914
        %947 = vst.msk [vmem:[%s276 + $0x34] sm:$0xf] %vm861, %v915
        %948 = vst.msk [vmem:[%s276 + $0x38] sm:$0xf] %vm861, %v916
        %949 = vst.msk [vmem:[%s276 + $0x3c] sm:$0xf] %vm861, %v917
        %v958 = vunpack.c.l.b16 %v797
        %v959 = vunpack.c.h.b16 %v797
        %v960 = vunpack.c.l.b16 %v798
        %v961 = vunpack.c.h.b16 %v798
        %v962 = vunpack.c.l.b16 %v799
        %v963 = vunpack.c.h.b16 %v799
        %v964 = vunpack.c.l.b16 %v800
        %v965 = vunpack.c.h.b16 %v800
        %v966 = vunpack.c.l.b16 %v801
        %v967 = vunpack.c.h.b16 %v801
        %v968 = vunpack.c.l.b16 %v802
        %v969 = vunpack.c.h.b16 %v802
        %v970 = vunpack.c.l.b16 %v803
        %v971 = vunpack.c.h.b16 %v803
        %v972 = vunpack.c.l.b16 %v804
        %v973 = vunpack.c.h.b16 %v804
        %v974 = vpack.c.b16 %v958, %v958
        %v975 = vpack.c.b16 %v959, %v959
        %v976 = vpack.c.b16 %v960, %v960
        %v977 = vpack.c.b16 %v961, %v961
        %v978 = vpack.c.b16 %v962, %v962
        %v979 = vpack.c.b16 %v963, %v963
        %v980 = vpack.c.b16 %v964, %v964
        %v981 = vpack.c.b16 %v965, %v965
        %v982 = vpack.c.b16 %v966, %v966
        %v983 = vpack.c.b16 %v967, %v967
        %v984 = vpack.c.b16 %v968, %v968
        %v985 = vpack.c.b16 %v969, %v969
        %v986 = vpack.c.b16 %v970, %v970
        %v987 = vpack.c.b16 %v971, %v971
        %v988 = vpack.c.b16 %v972, %v972
        %v989 = vpack.c.b16 %v973, %v973
        %1006 = vst.msk [vmem:[%s282] sm:$0xf] %vm861, %v974
        %1007 = vst.msk [vmem:[%s282 + $0x4] sm:$0xf] %vm861, %v975
        %1008 = vst.msk [vmem:[%s282 + $0x8] sm:$0xf] %vm861, %v976
        %1009 = vst.msk [vmem:[%s282 + $0xc] sm:$0xf] %vm861, %v977
        %1010 = vst.msk [vmem:[%s282 + $0x10] sm:$0xf] %vm861, %v978
        %1011 = vst.msk [vmem:[%s282 + $0x14] sm:$0xf] %vm861, %v979
        %1012 = vst.msk [vmem:[%s282 + $0x18] sm:$0xf] %vm861, %v980
        %1013 = vst.msk [vmem:[%s282 + $0x1c] sm:$0xf] %vm861, %v981
        %1014 = vst.msk [vmem:[%s282 + $0x20] sm:$0xf] %vm861, %v982
        %1015 = vst.msk [vmem:[%s282 + $0x24] sm:$0xf] %vm861, %v983
        %1016 = vst.msk [vmem:[%s282 + $0x28] sm:$0xf] %vm861, %v984
        %1017 = vst.msk [vmem:[%s282 + $0x2c] sm:$0xf] %vm861, %v985
        %1018 = vst.msk [vmem:[%s282 + $0x30] sm:$0xf] %vm861, %v986
        %1019 = vst.msk [vmem:[%s282 + $0x34] sm:$0xf] %vm861, %v987
        %1020 = vst.msk [vmem:[%s282 + $0x38] sm:$0xf] %vm861, %v988
        %1021 = vst.msk [vmem:[%s282 + $0x3c] sm:$0xf] %vm861, %v989
        %1022 = vrot.lane.b32.xlu0 %v829, 112
        %v1023 = vpop.permute.xlu0 %1022
        %1024 = vrot.lane.b32.xlu0 %v830, 112
        %v1025 = vpop.permute.xlu0 %1024
        %1026 = vrot.lane.b32.xlu0 %v831, 112
        %v1027 = vpop.permute.xlu0 %1026
        %1028 = vrot.lane.b32.xlu0 %v832, 112
        %v1029 = vpop.permute.xlu0 %1028
        %1030 = vrot.lane.b32.xlu0 %v833, 112
        %v1031 = vpop.permute.xlu0 %1030
        %1032 = vrot.lane.b32.xlu0 %v834, 112
        %v1033 = vpop.permute.xlu0 %1032
        %1034 = vrot.lane.b32.xlu0 %v835, 112
        %v1035 = vpop.permute.xlu0 %1034
        %1036 = vrot.lane.b32.xlu0 %v836, 112
        %v1037 = vpop.permute.xlu0 %1036
        %1038 = vrot.lane.b32.xlu0 %v837, 112
        %v1039 = vpop.permute.xlu0 %1038
        %1040 = vrot.lane.b32.xlu0 %v838, 112
        %v1041 = vpop.permute.xlu0 %1040
        %1042 = vrot.lane.b32.xlu0 %v839, 112
        %v1043 = vpop.permute.xlu0 %1042
        %1044 = vrot.lane.b32.xlu0 %v840, 112
        %v1045 = vpop.permute.xlu0 %1044
        %1046 = vrot.lane.b32.xlu0 %v841, 112
        %v1047 = vpop.permute.xlu0 %1046
        %1048 = vrot.lane.b32.xlu0 %v842, 112
        %v1049 = vpop.permute.xlu0 %1048
        %1050 = vrot.lane.b32.xlu0 %v843, 112
        %v1051 = vpop.permute.xlu0 %1050
        %1052 = vrot.lane.b32.xlu0 %v844, 112
        %v1053 = vpop.permute.xlu0 %1052
        %s1070 = scalar_lea.vmem %s270, 64 [#allocation2]
        %1071 = vst.msk [vmem:[%s1070] sm:$0xf] %vm861, %v1023
        %1072 = vst.msk [vmem:[%s1070 + $0x4] sm:$0xf] %vm861, %v1025
        %1073 = vst.msk [vmem:[%s1070 + $0x8] sm:$0xf] %vm861, %v1027
        %1074 = vst.msk [vmem:[%s1070 + $0xc] sm:$0xf] %vm861, %v1029
        %1075 = vst.msk [vmem:[%s1070 + $0x10] sm:$0xf] %vm861, %v1031
        %1076 = vst.msk [vmem:[%s1070 + $0x14] sm:$0xf] %vm861, %v1033
        %1077 = vst.msk [vmem:[%s1070 + $0x18] sm:$0xf] %vm861, %v1035
        %1078 = vst.msk [vmem:[%s1070 + $0x1c] sm:$0xf] %vm861, %v1037
        %1079 = vst.msk [vmem:[%s1070 + $0x20] sm:$0xf] %vm861, %v1039
        %1080 = vst.msk [vmem:[%s1070 + $0x24] sm:$0xf] %vm861, %v1041
        %1081 = vst.msk [vmem:[%s1070 + $0x28] sm:$0xf] %vm861, %v1043
        %1082 = vst.msk [vmem:[%s1070 + $0x2c] sm:$0xf] %vm861, %v1045
        %1083 = vst.msk [vmem:[%s1070 + $0x30] sm:$0xf] %vm861, %v1047
        %1084 = vst.msk [vmem:[%s1070 + $0x34] sm:$0xf] %vm861, %v1049
        %1085 = vst.msk [vmem:[%s1070 + $0x38] sm:$0xf] %vm861, %v1051
        %1086 = vst.msk [vmem:[%s1070 + $0x3c] sm:$0xf] %vm861, %v1053
        %1087 = vrot.lane.b32.xlu0 %v902, 112
        %v1088 = vpop.permute.xlu0 %1087
        %1089 = vrot.lane.b32.xlu0 %v903, 112
        %v1090 = vpop.permute.xlu0 %1089
        %1091 = vrot.lane.b32.xlu0 %v904, 112
        %v1092 = vpop.permute.xlu0 %1091
        %1093 = vrot.lane.b32.xlu0 %v905, 112
        %v1094 = vpop.permute.xlu0 %1093
        %1095 = vrot.lane.b32.xlu0 %v906, 112
        %v1096 = vpop.permute.xlu0 %1095
        %1097 = vrot.lane.b32.xlu0 %v907, 112
        %v1098 = vpop.permute.xlu0 %1097
        %1099 = vrot.lane.b32.xlu0 %v908, 112
        %v1100 = vpop.permute.xlu0 %1099
        %1101 = vrot.lane.b32.xlu0 %v909, 112
        %v1102 = vpop.permute.xlu0 %1101
        %1103 = vrot.lane.b32.xlu0 %v910, 112
        %v1104 = vpop.permute.xlu0 %1103
        %1105 = vrot.lane.b32.xlu0 %v911, 112
        %v1106 = vpop.permute.xlu0 %1105
        %1107 = vrot.lane.b32.xlu0 %v912, 112
        %v1108 = vpop.permute.xlu0 %1107
        %1109 = vrot.lane.b32.xlu0 %v913, 112
        %v1110 = vpop.permute.xlu0 %1109
        %1111 = vrot.lane.b32.xlu0 %v914, 112
        %v1112 = vpop.permute.xlu0 %1111
        %1113 = vrot.lane.b32.xlu0 %v915, 112
        %v1114 = vpop.permute.xlu0 %1113
        %1115 = vrot.lane.b32.xlu0 %v916, 112
        %v1116 = vpop.permute.xlu0 %1115
        %1117 = vrot.lane.b32.xlu0 %v917, 112
        %v1118 = vpop.permute.xlu0 %1117
        %s1135 = scalar_lea.vmem %s276, 64 [#allocation3]
        %1136 = vst.msk [vmem:[%s1135] sm:$0xf] %vm861, %v1088
        %1137 = vst.msk [vmem:[%s1135 + $0x4] sm:$0xf] %vm861, %v1090
        %1138 = vst.msk [vmem:[%s1135 + $0x8] sm:$0xf] %vm861, %v1092
        %1139 = vst.msk [vmem:[%s1135 + $0xc] sm:$0xf] %vm861, %v1094
        %1140 = vst.msk [vmem:[%s1135 + $0x10] sm:$0xf] %vm861, %v1096
        %1141 = vst.msk [vmem:[%s1135 + $0x14] sm:$0xf] %vm861, %v1098
        %1142 = vst.msk [vmem:[%s1135 + $0x18] sm:$0xf] %vm861, %v1100
        %1143 = vst.msk [vmem:[%s1135 + $0x1c] sm:$0xf] %vm861, %v1102
        %1144 = vst.msk [vmem:[%s1135 + $0x20] sm:$0xf] %vm861, %v1104
        %1145 = vst.msk [vmem:[%s1135 + $0x24] sm:$0xf] %vm861, %v1106
        %1146 = vst.msk [vmem:[%s1135 + $0x28] sm:$0xf] %vm861, %v1108
        %1147 = vst.msk [vmem:[%s1135 + $0x2c] sm:$0xf] %vm861, %v1110
        %1148 = vst.msk [vmem:[%s1135 + $0x30] sm:$0xf] %vm861, %v1112
        %1149 = vst.msk [vmem:[%s1135 + $0x34] sm:$0xf] %vm861, %v1114
        %1150 = vst.msk [vmem:[%s1135 + $0x38] sm:$0xf] %vm861, %v1116
        %1151 = vst.msk [vmem:[%s1135 + $0x3c] sm:$0xf] %vm861, %v1118
        %1152 = vrot.lane.b32.xlu0 %v974, 112
        %v1153 = vpop.permute.xlu0 %1152
        %1154 = vrot.lane.b32.xlu0 %v975, 112
        %v1155 = vpop.permute.xlu0 %1154
        %1156 = vrot.lane.b32.xlu0 %v976, 112
        %v1157 = vpop.permute.xlu0 %1156
        %1158 = vrot.lane.b32.xlu0 %v977, 112
        %v1159 = vpop.permute.xlu0 %1158
        %1160 = vrot.lane.b32.xlu0 %v978, 112
        %v1161 = vpop.permute.xlu0 %1160
        %1162 = vrot.lane.b32.xlu0 %v979, 112
        %v1163 = vpop.permute.xlu0 %1162
        %1164 = vrot.lane.b32.xlu0 %v980, 112
        %v1165 = vpop.permute.xlu0 %1164
        %1166 = vrot.lane.b32.xlu0 %v981, 112
        %v1167 = vpop.permute.xlu0 %1166
        %1168 = vrot.lane.b32.xlu0 %v982, 112
        %v1169 = vpop.permute.xlu0 %1168
        %1170 = vrot.lane.b32.xlu0 %v983, 112
        %v1171 = vpop.permute.xlu0 %1170
        %1172 = vrot.lane.b32.xlu0 %v984, 112
        %v1173 = vpop.permute.xlu0 %1172
        %1174 = vrot.lane.b32.xlu0 %v985, 112
        %v1175 = vpop.permute.xlu0 %1174
        %1176 = vrot.lane.b32.xlu0 %v986, 112
        %v1177 = vpop.permute.xlu0 %1176
        %1178 = vrot.lane.b32.xlu0 %v987, 112
        %v1179 = vpop.permute.xlu0 %1178
        %1180 = vrot.lane.b32.xlu0 %v988, 112
        %v1181 = vpop.permute.xlu0 %1180
        %1182 = vrot.lane.b32.xlu0 %v989, 112
        %v1183 = vpop.permute.xlu0 %1182
        %s1200 = scalar_lea.vmem %s282, 64 [#allocation4]
        %1201 = vst.msk [vmem:[%s1200] sm:$0xf] %vm861, %v1153
        %1202 = vst.msk [vmem:[%s1200 + $0x4] sm:$0xf] %vm861, %v1155
        %1203 = vst.msk [vmem:[%s1200 + $0x8] sm:$0xf] %vm861, %v1157
        %1204 = vst.msk [vmem:[%s1200 + $0xc] sm:$0xf] %vm861, %v1159
        %1205 = vst.msk [vmem:[%s1200 + $0x10] sm:$0xf] %vm861, %v1161
        %1206 = vst.msk [vmem:[%s1200 + $0x14] sm:$0xf] %vm861, %v1163
        %1207 = vst.msk [vmem:[%s1200 + $0x18] sm:$0xf] %vm861, %v1165
        %1208 = vst.msk [vmem:[%s1200 + $0x1c] sm:$0xf] %vm861, %v1167
        %1209 = vst.msk [vmem:[%s1200 + $0x20] sm:$0xf] %vm861, %v1169
        %1210 = vst.msk [vmem:[%s1200 + $0x24] sm:$0xf] %vm861, %v1171
        %1211 = vst.msk [vmem:[%s1200 + $0x28] sm:$0xf] %vm861, %v1173
        %1212 = vst.msk [vmem:[%s1200 + $0x2c] sm:$0xf] %vm861, %v1175
        %1213 = vst.msk [vmem:[%s1200 + $0x30] sm:$0xf] %vm861, %v1177
        %1214 = vst.msk [vmem:[%s1200 + $0x34] sm:$0xf] %vm861, %v1179
        %1215 = vst.msk [vmem:[%s1200 + $0x38] sm:$0xf] %vm861, %v1181
        %1216 = vst.msk [vmem:[%s1200 + $0x3c] sm:$0xf] %vm861, %v1183
        %1217 = vrot.lane.b32.xlu0 %v829, 96
        %v1218 = vpop.permute.xlu0 %1217
        %1219 = vrot.lane.b32.xlu0 %v830, 96
        %v1220 = vpop.permute.xlu0 %1219
        %1221 = vrot.lane.b32.xlu0 %v831, 96
        %v1222 = vpop.permute.xlu0 %1221
        %1223 = vrot.lane.b32.xlu0 %v832, 96
        %v1224 = vpop.permute.xlu0 %1223
        %1225 = vrot.lane.b32.xlu0 %v833, 96
        %v1226 = vpop.permute.xlu0 %1225
        %1227 = vrot.lane.b32.xlu0 %v834, 96
        %v1228 = vpop.permute.xlu0 %1227
        %1229 = vrot.lane.b32.xlu0 %v835, 96
        %v1230 = vpop.permute.xlu0 %1229
        %1231 = vrot.lane.b32.xlu0 %v836, 96
        %v1232 = vpop.permute.xlu0 %1231
        %1233 = vrot.lane.b32.xlu0 %v837, 96
        %v1234 = vpop.permute.xlu0 %1233
        %1235 = vrot.lane.b32.xlu0 %v838, 96
        %v1236 = vpop.permute.xlu0 %1235
        %1237 = vrot.lane.b32.xlu0 %v839, 96
        %v1238 = vpop.permute.xlu0 %1237
        %1239 = vrot.lane.b32.xlu0 %v840, 96
        %v1240 = vpop.permute.xlu0 %1239
        %1241 = vrot.lane.b32.xlu0 %v841, 96
        %v1242 = vpop.permute.xlu0 %1241
        %1243 = vrot.lane.b32.xlu0 %v842, 96
        %v1244 = vpop.permute.xlu0 %1243
        %1245 = vrot.lane.b32.xlu0 %v843, 96
        %v1246 = vpop.permute.xlu0 %1245
        %1247 = vrot.lane.b32.xlu0 %v844, 96
        %v1248 = vpop.permute.xlu0 %1247
        %s1265 = scalar_lea.vmem %s270, 128 [#allocation2]
        %1266 = vst.msk [vmem:[%s1265] sm:$0xf] %vm861, %v1218
        %1267 = vst.msk [vmem:[%s1265 + $0x4] sm:$0xf] %vm861, %v1220
        %1268 = vst.msk [vmem:[%s1265 + $0x8] sm:$0xf] %vm861, %v1222
        %1269 = vst.msk [vmem:[%s1265 + $0xc] sm:$0xf] %vm861, %v1224
        %1270 = vst.msk [vmem:[%s1265 + $0x10] sm:$0xf] %vm861, %v1226
        %1271 = vst.msk [vmem:[%s1265 + $0x14] sm:$0xf] %vm861, %v1228
        %1272 = vst.msk [vmem:[%s1265 + $0x18] sm:$0xf] %vm861, %v1230
        %1273 = vst.msk [vmem:[%s1265 + $0x1c] sm:$0xf] %vm861, %v1232
        %1274 = vst.msk [vmem:[%s1265 + $0x20] sm:$0xf] %vm861, %v1234
        %1275 = vst.msk [vmem:[%s1265 + $0x24] sm:$0xf] %vm861, %v1236
        %1276 = vst.msk [vmem:[%s1265 + $0x28] sm:$0xf] %vm861, %v1238
        %1277 = vst.msk [vmem:[%s1265 + $0x2c] sm:$0xf] %vm861, %v1240
        %1278 = vst.msk [vmem:[%s1265 + $0x30] sm:$0xf] %vm861, %v1242
        %1279 = vst.msk [vmem:[%s1265 + $0x34] sm:$0xf] %vm861, %v1244
        %1280 = vst.msk [vmem:[%s1265 + $0x38] sm:$0xf] %vm861, %v1246
        %1281 = vst.msk [vmem:[%s1265 + $0x3c] sm:$0xf] %vm861, %v1248
        %1282 = vrot.lane.b32.xlu0 %v902, 96
        %v1283 = vpop.permute.xlu0 %1282
        %1284 = vrot.lane.b32.xlu0 %v903, 96
        %v1285 = vpop.permute.xlu0 %1284
        %1286 = vrot.lane.b32.xlu0 %v904, 96
        %v1287 = vpop.permute.xlu0 %1286
        %1288 = vrot.lane.b32.xlu0 %v905, 96
        %v1289 = vpop.permute.xlu0 %1288
        %1290 = vrot.lane.b32.xlu0 %v906, 96
        %v1291 = vpop.permute.xlu0 %1290
        %1292 = vrot.lane.b32.xlu0 %v907, 96
        %v1293 = vpop.permute.xlu0 %1292
        %1294 = vrot.lane.b32.xlu0 %v908, 96
        %v1295 = vpop.permute.xlu0 %1294
        %1296 = vrot.lane.b32.xlu0 %v909, 96
        %v1297 = vpop.permute.xlu0 %1296
        %1298 = vrot.lane.b32.xlu0 %v910, 96
        %v1299 = vpop.permute.xlu0 %1298
        %1300 = vrot.lane.b32.xlu0 %v911, 96
        %v1301 = vpop.permute.xlu0 %1300
        %1302 = vrot.lane.b32.xlu0 %v912, 96
        %v1303 = vpop.permute.xlu0 %1302
        %1304 = vrot.lane.b32.xlu0 %v913, 96
        %v1305 = vpop.permute.xlu0 %1304
        %1306 = vrot.lane.b32.xlu0 %v914, 96
        %v1307 = vpop.permute.xlu0 %1306
        %1308 = vrot.lane.b32.xlu0 %v915, 96
        %v1309 = vpop.permute.xlu0 %1308
        %1310 = vrot.lane.b32.xlu0 %v916, 96
        %v1311 = vpop.permute.xlu0 %1310
        %1312 = vrot.lane.b32.xlu0 %v917, 96
        %v1313 = vpop.permute.xlu0 %1312
        %s1330 = scalar_lea.vmem %s276, 128 [#allocation3]
        %1331 = vst.msk [vmem:[%s1330] sm:$0xf] %vm861, %v1283
        %1332 = vst.msk [vmem:[%s1330 + $0x4] sm:$0xf] %vm861, %v1285
        %1333 = vst.msk [vmem:[%s1330 + $0x8] sm:$0xf] %vm861, %v1287
        %1334 = vst.msk [vmem:[%s1330 + $0xc] sm:$0xf] %vm861, %v1289
        %1335 = vst.msk [vmem:[%s1330 + $0x10] sm:$0xf] %vm861, %v1291
        %1336 = vst.msk [vmem:[%s1330 + $0x14] sm:$0xf] %vm861, %v1293
        %1337 = vst.msk [vmem:[%s1330 + $0x18] sm:$0xf] %vm861, %v1295
        %1338 = vst.msk [vmem:[%s1330 + $0x1c] sm:$0xf] %vm861, %v1297
        %1339 = vst.msk [vmem:[%s1330 + $0x20] sm:$0xf] %vm861, %v1299
        %1340 = vst.msk [vmem:[%s1330 + $0x24] sm:$0xf] %vm861, %v1301
        %1341 = vst.msk [vmem:[%s1330 + $0x28] sm:$0xf] %vm861, %v1303
        %1342 = vst.msk [vmem:[%s1330 + $0x2c] sm:$0xf] %vm861, %v1305
        %1343 = vst.msk [vmem:[%s1330 + $0x30] sm:$0xf] %vm861, %v1307
        %1344 = vst.msk [vmem:[%s1330 + $0x34] sm:$0xf] %vm861, %v1309
        %1345 = vst.msk [vmem:[%s1330 + $0x38] sm:$0xf] %vm861, %v1311
        %1346 = vst.msk [vmem:[%s1330 + $0x3c] sm:$0xf] %vm861, %v1313
        %1347 = vrot.lane.b32.xlu0 %v974, 96
        %v1348 = vpop.permute.xlu0 %1347
        %1349 = vrot.lane.b32.xlu0 %v975, 96
        %v1350 = vpop.permute.xlu0 %1349
        %1351 = vrot.lane.b32.xlu0 %v976, 96
        %v1352 = vpop.permute.xlu0 %1351
        %1353 = vrot.lane.b32.xlu0 %v977, 96
        %v1354 = vpop.permute.xlu0 %1353
        %1355 = vrot.lane.b32.xlu0 %v978, 96
        %v1356 = vpop.permute.xlu0 %1355
        %1357 = vrot.lane.b32.xlu0 %v979, 96
        %v1358 = vpop.permute.xlu0 %1357
        %1359 = vrot.lane.b32.xlu0 %v980, 96
        %v1360 = vpop.permute.xlu0 %1359
        %1361 = vrot.lane.b32.xlu0 %v981, 96
        %v1362 = vpop.permute.xlu0 %1361
        %1363 = vrot.lane.b32.xlu0 %v982, 96
        %v1364 = vpop.permute.xlu0 %1363
        %1365 = vrot.lane.b32.xlu0 %v983, 96
        %v1366 = vpop.permute.xlu0 %1365
        %1367 = vrot.lane.b32.xlu0 %v984, 96
        %v1368 = vpop.permute.xlu0 %1367
        %1369 = vrot.lane.b32.xlu0 %v985, 96
        %v1370 = vpop.permute.xlu0 %1369
        %1371 = vrot.lane.b32.xlu0 %v986, 96
        %v1372 = vpop.permute.xlu0 %1371
        %1373 = vrot.lane.b32.xlu0 %v987, 96
        %v1374 = vpop.permute.xlu0 %1373
        %1375 = vrot.lane.b32.xlu0 %v988, 96
        %v1376 = vpop.permute.xlu0 %1375
        %1377 = vrot.lane.b32.xlu0 %v989, 96
        %v1378 = vpop.permute.xlu0 %1377
        %s1395 = scalar_lea.vmem %s282, 128 [#allocation4]
        %1396 = vst.msk [vmem:[%s1395] sm:$0xf] %vm861, %v1348
        %1397 = vst.msk [vmem:[%s1395 + $0x4] sm:$0xf] %vm861, %v1350
        %1398 = vst.msk [vmem:[%s1395 + $0x8] sm:$0xf] %vm861, %v1352
        %1399 = vst.msk [vmem:[%s1395 + $0xc] sm:$0xf] %vm861, %v1354
        %1400 = vst.msk [vmem:[%s1395 + $0x10] sm:$0xf] %vm861, %v1356
        %1401 = vst.msk [vmem:[%s1395 + $0x14] sm:$0xf] %vm861, %v1358
        %1402 = vst.msk [vmem:[%s1395 + $0x18] sm:$0xf] %vm861, %v1360
        %1403 = vst.msk [vmem:[%s1395 + $0x1c] sm:$0xf] %vm861, %v1362
        %1404 = vst.msk [vmem:[%s1395 + $0x20] sm:$0xf] %vm861, %v1364
        %1405 = vst.msk [vmem:[%s1395 + $0x24] sm:$0xf] %vm861, %v1366
        %1406 = vst.msk [vmem:[%s1395 + $0x28] sm:$0xf] %vm861, %v1368
        %1407 = vst.msk [vmem:[%s1395 + $0x2c] sm:$0xf] %vm861, %v1370
        %1408 = vst.msk [vmem:[%s1395 + $0x30] sm:$0xf] %vm861, %v1372
        %1409 = vst.msk [vmem:[%s1395 + $0x34] sm:$0xf] %vm861, %v1374
        %1410 = vst.msk [vmem:[%s1395 + $0x38] sm:$0xf] %vm861, %v1376
        %1411 = vst.msk [vmem:[%s1395 + $0x3c] sm:$0xf] %vm861, %v1378
        %1412 = vrot.lane.b32.xlu0 %v829, 80
        %v1413 = vpop.permute.xlu0 %1412
        %1414 = vrot.lane.b32.xlu0 %v830, 80
        %v1415 = vpop.permute.xlu0 %1414
        %1416 = vrot.lane.b32.xlu0 %v831, 80
        %v1417 = vpop.permute.xlu0 %1416
        %1418 = vrot.lane.b32.xlu0 %v832, 80
        %v1419 = vpop.permute.xlu0 %1418
        %1420 = vrot.lane.b32.xlu0 %v833, 80
        %v1421 = vpop.permute.xlu0 %1420
        %1422 = vrot.lane.b32.xlu0 %v834, 80
        %v1423 = vpop.permute.xlu0 %1422
        %1424 = vrot.lane.b32.xlu0 %v835, 80
        %v1425 = vpop.permute.xlu0 %1424
        %1426 = vrot.lane.b32.xlu0 %v836, 80
        %v1427 = vpop.permute.xlu0 %1426
        %1428 = vrot.lane.b32.xlu0 %v837, 80
        %v1429 = vpop.permute.xlu0 %1428
        %1430 = vrot.lane.b32.xlu0 %v838, 80
        %v1431 = vpop.permute.xlu0 %1430
        %1432 = vrot.lane.b32.xlu0 %v839, 80
        %v1433 = vpop.permute.xlu0 %1432
        %1434 = vrot.lane.b32.xlu0 %v840, 80
        %v1435 = vpop.permute.xlu0 %1434
        %1436 = vrot.lane.b32.xlu0 %v841, 80
        %v1437 = vpop.permute.xlu0 %1436
        %1438 = vrot.lane.b32.xlu0 %v842, 80
        %v1439 = vpop.permute.xlu0 %1438
        %1440 = vrot.lane.b32.xlu0 %v843, 80
        %v1441 = vpop.permute.xlu0 %1440
        %1442 = vrot.lane.b32.xlu0 %v844, 80
        %v1443 = vpop.permute.xlu0 %1442
        %s1460 = scalar_lea.vmem %s270, 192 [#allocation2]
        %1461 = vst.msk [vmem:[%s1460] sm:$0xf] %vm861, %v1413
        %1462 = vst.msk [vmem:[%s1460 + $0x4] sm:$0xf] %vm861, %v1415
        %1463 = vst.msk [vmem:[%s1460 + $0x8] sm:$0xf] %vm861, %v1417
        %1464 = vst.msk [vmem:[%s1460 + $0xc] sm:$0xf] %vm861, %v1419
        %1465 = vst.msk [vmem:[%s1460 + $0x10] sm:$0xf] %vm861, %v1421
        %1466 = vst.msk [vmem:[%s1460 + $0x14] sm:$0xf] %vm861, %v1423
        %1467 = vst.msk [vmem:[%s1460 + $0x18] sm:$0xf] %vm861, %v1425
        %1468 = vst.msk [vmem:[%s1460 + $0x1c] sm:$0xf] %vm861, %v1427
        %1469 = vst.msk [vmem:[%s1460 + $0x20] sm:$0xf] %vm861, %v1429
        %1470 = vst.msk [vmem:[%s1460 + $0x24] sm:$0xf] %vm861, %v1431
        %1471 = vst.msk [vmem:[%s1460 + $0x28] sm:$0xf] %vm861, %v1433
        %1472 = vst.msk [vmem:[%s1460 + $0x2c] sm:$0xf] %vm861, %v1435
        %1473 = vst.msk [vmem:[%s1460 + $0x30] sm:$0xf] %vm861, %v1437
        %1474 = vst.msk [vmem:[%s1460 + $0x34] sm:$0xf] %vm861, %v1439
        %1475 = vst.msk [vmem:[%s1460 + $0x38] sm:$0xf] %vm861, %v1441
        %1476 = vst.msk [vmem:[%s1460 + $0x3c] sm:$0xf] %vm861, %v1443
        %1477 = vrot.lane.b32.xlu0 %v902, 80
        %v1478 = vpop.permute.xlu0 %1477
        %1479 = vrot.lane.b32.xlu0 %v903, 80
        %v1480 = vpop.permute.xlu0 %1479
        %1481 = vrot.lane.b32.xlu0 %v904, 80
        %v1482 = vpop.permute.xlu0 %1481
        %1483 = vrot.lane.b32.xlu0 %v905, 80
        %v1484 = vpop.permute.xlu0 %1483
        %1485 = vrot.lane.b32.xlu0 %v906, 80
        %v1486 = vpop.permute.xlu0 %1485
        %1487 = vrot.lane.b32.xlu0 %v907, 80
        %v1488 = vpop.permute.xlu0 %1487
        %1489 = vrot.lane.b32.xlu0 %v908, 80
        %v1490 = vpop.permute.xlu0 %1489
        %1491 = vrot.lane.b32.xlu0 %v909, 80
        %v1492 = vpop.permute.xlu0 %1491
        %1493 = vrot.lane.b32.xlu0 %v910, 80
        %v1494 = vpop.permute.xlu0 %1493
        %1495 = vrot.lane.b32.xlu0 %v911, 80
        %v1496 = vpop.permute.xlu0 %1495
        %1497 = vrot.lane.b32.xlu0 %v912, 80
        %v1498 = vpop.permute.xlu0 %1497
        %1499 = vrot.lane.b32.xlu0 %v913, 80
        %v1500 = vpop.permute.xlu0 %1499
        %1501 = vrot.lane.b32.xlu0 %v914, 80
        %v1502 = vpop.permute.xlu0 %1501
        %1503 = vrot.lane.b32.xlu0 %v915, 80
        %v1504 = vpop.permute.xlu0 %1503
        %1505 = vrot.lane.b32.xlu0 %v916, 80
        %v1506 = vpop.permute.xlu0 %1505
        %1507 = vrot.lane.b32.xlu0 %v917, 80
        %v1508 = vpop.permute.xlu0 %1507
        %s1525 = scalar_lea.vmem %s276, 192 [#allocation3]
        %1526 = vst.msk [vmem:[%s1525] sm:$0xf] %vm861, %v1478
        %1527 = vst.msk [vmem:[%s1525 + $0x4] sm:$0xf] %vm861, %v1480
        %1528 = vst.msk [vmem:[%s1525 + $0x8] sm:$0xf] %vm861, %v1482
        %1529 = vst.msk [vmem:[%s1525 + $0xc] sm:$0xf] %vm861, %v1484
        %1530 = vst.msk [vmem:[%s1525 + $0x10] sm:$0xf] %vm861, %v1486
        %1531 = vst.msk [vmem:[%s1525 + $0x14] sm:$0xf] %vm861, %v1488
        %1532 = vst.msk [vmem:[%s1525 + $0x18] sm:$0xf] %vm861, %v1490
        %1533 = vst.msk [vmem:[%s1525 + $0x1c] sm:$0xf] %vm861, %v1492
        %1534 = vst.msk [vmem:[%s1525 + $0x20] sm:$0xf] %vm861, %v1494
        %1535 = vst.msk [vmem:[%s1525 + $0x24] sm:$0xf] %vm861, %v1496
        %1536 = vst.msk [vmem:[%s1525 + $0x28] sm:$0xf] %vm861, %v1498
        %1537 = vst.msk [vmem:[%s1525 + $0x2c] sm:$0xf] %vm861, %v1500
        %1538 = vst.msk [vmem:[%s1525 + $0x30] sm:$0xf] %vm861, %v1502
        %1539 = vst.msk [vmem:[%s1525 + $0x34] sm:$0xf] %vm861, %v1504
        %1540 = vst.msk [vmem:[%s1525 + $0x38] sm:$0xf] %vm861, %v1506
        %1541 = vst.msk [vmem:[%s1525 + $0x3c] sm:$0xf] %vm861, %v1508
        %1542 = vrot.lane.b32.xlu0 %v974, 80
        %v1543 = vpop.permute.xlu0 %1542
        %1544 = vrot.lane.b32.xlu0 %v975, 80
        %v1545 = vpop.permute.xlu0 %1544
        %1546 = vrot.lane.b32.xlu0 %v976, 80
        %v1547 = vpop.permute.xlu0 %1546
        %1548 = vrot.lane.b32.xlu0 %v977, 80
        %v1549 = vpop.permute.xlu0 %1548
        %1550 = vrot.lane.b32.xlu0 %v978, 80
        %v1551 = vpop.permute.xlu0 %1550
        %1552 = vrot.lane.b32.xlu0 %v979, 80
        %v1553 = vpop.permute.xlu0 %1552
        %1554 = vrot.lane.b32.xlu0 %v980, 80
        %v1555 = vpop.permute.xlu0 %1554
        %1556 = vrot.lane.b32.xlu0 %v981, 80
        %v1557 = vpop.permute.xlu0 %1556
        %1558 = vrot.lane.b32.xlu0 %v982, 80
        %v1559 = vpop.permute.xlu0 %1558
        %1560 = vrot.lane.b32.xlu0 %v983, 80
        %v1561 = vpop.permute.xlu0 %1560
        %1562 = vrot.lane.b32.xlu0 %v984, 80
        %v1563 = vpop.permute.xlu0 %1562
        %1564 = vrot.lane.b32.xlu0 %v985, 80
        %v1565 = vpop.permute.xlu0 %1564
        %1566 = vrot.lane.b32.xlu0 %v986, 80
        %v1567 = vpop.permute.xlu0 %1566
        %1568 = vrot.lane.b32.xlu0 %v987, 80
        %v1569 = vpop.permute.xlu0 %1568
        %1570 = vrot.lane.b32.xlu0 %v988, 80
        %v1571 = vpop.permute.xlu0 %1570
        %1572 = vrot.lane.b32.xlu0 %v989, 80
        %v1573 = vpop.permute.xlu0 %1572
        %s1590 = scalar_lea.vmem %s282, 192 [#allocation4]
        %1591 = vst.msk [vmem:[%s1590] sm:$0xf] %vm861, %v1543
        %1592 = vst.msk [vmem:[%s1590 + $0x4] sm:$0xf] %vm861, %v1545
        %1593 = vst.msk [vmem:[%s1590 + $0x8] sm:$0xf] %vm861, %v1547
        %1594 = vst.msk [vmem:[%s1590 + $0xc] sm:$0xf] %vm861, %v1549
        %1595 = vst.msk [vmem:[%s1590 + $0x10] sm:$0xf] %vm861, %v1551
        %1596 = vst.msk [vmem:[%s1590 + $0x14] sm:$0xf] %vm861, %v1553
        %1597 = vst.msk [vmem:[%s1590 + $0x18] sm:$0xf] %vm861, %v1555
        %1598 = vst.msk [vmem:[%s1590 + $0x1c] sm:$0xf] %vm861, %v1557
        %1599 = vst.msk [vmem:[%s1590 + $0x20] sm:$0xf] %vm861, %v1559
        %1600 = vst.msk [vmem:[%s1590 + $0x24] sm:$0xf] %vm861, %v1561
        %1601 = vst.msk [vmem:[%s1590 + $0x28] sm:$0xf] %vm861, %v1563
        %1602 = vst.msk [vmem:[%s1590 + $0x2c] sm:$0xf] %vm861, %v1565
        %1603 = vst.msk [vmem:[%s1590 + $0x30] sm:$0xf] %vm861, %v1567
        %1604 = vst.msk [vmem:[%s1590 + $0x34] sm:$0xf] %vm861, %v1569
        %1605 = vst.msk [vmem:[%s1590 + $0x38] sm:$0xf] %vm861, %v1571
        %1606 = vst.msk [vmem:[%s1590 + $0x3c] sm:$0xf] %vm861, %v1573
        %s1607 = sand.u32 %s131, 1
        %s1608 = sand.u32 %s131, 1
        %s1609 = smul.addr %s1608, 256
        %s1610 = scalar_lea.vmem [#allocation2], %s1609
        %s1611 = sand.u32 %s159, 1
        %s1612 = sand.u32 %s159, 1
        %s1613 = smul.addr %s1612, 256
        %s1614 = scalar_lea.vmem [#allocation3], %s1613
        %s1615 = sand.u32 %s187, 1
        %s1616 = sand.u32 %s187, 1
        %s1617 = smul.addr %s1616, 256
        %s1618 = scalar_lea.vmem [#allocation4], %s1617
        // Predicated region
        $region37: #{tpu_custom_call.1} parent=35 // pred_check
          %p1619 = pneg %p141
        $region38: #{tpu_custom_call.1} parent=35 // pred_check_branch
          %1621 = sbr.rel (%p1619) target = $region40
        $region39: #{tpu_custom_call.1} parent=35 // pred_region
          %s1622 = smul.u32 16, %s23
          %s1623 = smul.addr %s22, 128
          %s1624 = sadd.s32 %s1622, %s1623
          %s1625 = smul.addr %s1624, 4
          %s1626 = scalar_lea.vmem %s4, %s1625
          // Predicated region
          $region41: #{tpu_custom_call.1} parent=39 // pred_check
            _
          $region42: #{tpu_custom_call.1} parent=39 // pred_check_branch
            %1628 = sbr.rel (0) target = $region44
          $region43: #{tpu_custom_call.1} parent=39 // pred_region
            // Predicated region
            $region45: #{tpu_custom_call.1} parent=43 // pred_check
              _
            $region46: #{tpu_custom_call.1} parent=43 // pred_check_branch
              %1630 = sbr.rel target = $region48
            $region47: #{tpu_custom_call.1} parent=43 // pred_region
              // Predicated region
              $region60: #{tpu_custom_call.1} parent=47 // pred_check
                _
              $region61: #{tpu_custom_call.1} parent=47 // pred_check_branch
                %1772 = sbr.rel (0) target = $region63
              $region62: #{tpu_custom_call.1} parent=47 // pred_region
                loop: start=0, step=1, limit=1
                $region64: #{tpu_custom_call.1} parent=62 // loop_pre_header
                  _
                $region65: #{tpu_custom_call.1} parent=62 // loop_header
                  %s1774 = sphi 0, %s1778
                  %p1775 = scmp.ge.s32.totalorder %s1774, 1
                  %s1779 = sphi %s1610, %s1610
                  %s1780 = sphi %s1626, %s1626
                $region66: #{tpu_custom_call.1} parent=62 // loop_header_branch
                  %1777 = sbr.rel (%p1775) target = $region70
                $region67: #{tpu_custom_call.1} parent=62 // loop_body
                  _
                $region68: #{tpu_custom_call.1} parent=62 // loop_footer
                  %s1778 = sadd.s32 1, %s1774
                $region69: #{tpu_custom_call.1} parent=62 // loop_footer_branch
                  %1773 = sbr.rel target = $region65
                $region70: #{tpu_custom_call.1} parent=62 // loop_exit
                  _
                %s1782 = ssub.s32 16, 1
                loop: start=0, step=1, limit=1
                $region71: #{tpu_custom_call.1} parent=62 // loop_pre_header
                  _
                $region72: #{tpu_custom_call.1} parent=62 // loop_header
                  %s1784 = sphi 0, %s1788
                  %p1785 = scmp.ge.s32.totalorder %s1784, 1
                  %s1789 = sphi %s1610, %s1610
                  %s1790 = sphi %s1626, %s1626
                $region73: #{tpu_custom_call.1} parent=62 // loop_header_branch
                  %1787 = sbr.rel (%p1785) target = $region77
                $region74: #{tpu_custom_call.1} parent=62 // loop_body
                  %v1791 = vld [vmem:[%s1789] sm:%s1782]
                  %1792 = vst [vmem:[%s1790] sm:%s1782] %v1791
                  %v1793 = vld [vmem:[%s1789 + $0x4] sm:%s1782]
                  %1794 = vst [vmem:[%s1790 + $0x4] sm:%s1782] %v1793
                  %v1795 = vld [vmem:[%s1789 + $0x8] sm:%s1782]
                  %1796 = vst [vmem:[%s1790 + $0x8] sm:%s1782] %v1795
                  %v1797 = vld [vmem:[%s1789 + $0xc] sm:%s1782]
                  %1798 = vst [vmem:[%s1790 + $0xc] sm:%s1782] %v1797
                  %v1799 = vld [vmem:[%s1789 + $0x10] sm:%s1782]
                  %1800 = vst [vmem:[%s1790 + $0x10] sm:%s1782] %v1799
                  %v1801 = vld [vmem:[%s1789 + $0x14] sm:%s1782]
                  %1802 = vst [vmem:[%s1790 + $0x14] sm:%s1782] %v1801
                  %v1803 = vld [vmem:[%s1789 + $0x18] sm:%s1782]
                  %1804 = vst [vmem:[%s1790 + $0x18] sm:%s1782] %v1803
                  %v1805 = vld [vmem:[%s1789 + $0x1c] sm:%s1782]
                  %1806 = vst [vmem:[%s1790 + $0x1c] sm:%s1782] %v1805
                  %v1807 = vld [vmem:[%s1789 + $0x20] sm:%s1782]
                  %1808 = vst [vmem:[%s1790 + $0x20] sm:%s1782] %v1807
                  %v1809 = vld [vmem:[%s1789 + $0x24] sm:%s1782]
                  %1810 = vst [vmem:[%s1790 + $0x24] sm:%s1782] %v1809
                  %v1811 = vld [vmem:[%s1789 + $0x28] sm:%s1782]
                  %1812 = vst [vmem:[%s1790 + $0x28] sm:%s1782] %v1811
                  %v1813 = vld [vmem:[%s1789 + $0x2c] sm:%s1782]
                  %1814 = vst [vmem:[%s1790 + $0x2c] sm:%s1782] %v1813
                  %v1815 = vld [vmem:[%s1789 + $0x30] sm:%s1782]
                  %1816 = vst [vmem:[%s1790 + $0x30] sm:%s1782] %v1815
                  %v1817 = vld [vmem:[%s1789 + $0x34] sm:%s1782]
                  %1818 = vst [vmem:[%s1790 + $0x34] sm:%s1782] %v1817
                  %v1819 = vld [vmem:[%s1789 + $0x38] sm:%s1782]
                  %1820 = vst [vmem:[%s1790 + $0x38] sm:%s1782] %v1819
                  %v1821 = vld [vmem:[%s1789 + $0x3c] sm:%s1782]
                  %1822 = vst [vmem:[%s1790 + $0x3c] sm:%s1782] %v1821
                  %v1823 = vld [vmem:[%s1789 + $0x40] sm:%s1782]
                  %1824 = vst [vmem:[%s1790 + $0x80] sm:%s1782] %v1823
                  %v1825 = vld [vmem:[%s1789 + $0x44] sm:%s1782]
                  %1826 = vst [vmem:[%s1790 + $0x84] sm:%s1782] %v1825
                  %v1827 = vld [vmem:[%s1789 + $0x48] sm:%s1782]
                  %1828 = vst [vmem:[%s1790 + $0x88] sm:%s1782] %v1827
                  %v1829 = vld [vmem:[%s1789 + $0x4c] sm:%s1782]
                  %1830 = vst [vmem:[%s1790 + $0x8c] sm:%s1782] %v1829
                  %v1831 = vld [vmem:[%s1789 + $0x50] sm:%s1782]
                  %1832 = vst [vmem:[%s1790 + $0x90] sm:%s1782] %v1831
                  %v1833 = vld [vmem:[%s1789 + $0x54] sm:%s1782]
                  %1834 = vst [vmem:[%s1790 + $0x94] sm:%s1782] %v1833
                  %v1835 = vld [vmem:[%s1789 + $0x58] sm:%s1782]
                  %1836 = vst [vmem:[%s1790 + $0x98] sm:%s1782] %v1835
                  %v1837 = vld [vmem:[%s1789 + $0x5c] sm:%s1782]
                  %1838 = vst [vmem:[%s1790 + $0x9c] sm:%s1782] %v1837
                  %v1839 = vld [vmem:[%s1789 + $0x60] sm:%s1782]
                  %1840 = vst [vmem:[%s1790 + $0xa0] sm:%s1782] %v1839
                  %v1841 = vld [vmem:[%s1789 + $0x64] sm:%s1782]
                  %1842 = vst [vmem:[%s1790 + $0xa4] sm:%s1782] %v1841
                  %v1843 = vld [vmem:[%s1789 + $0x68] sm:%s1782]
                  %1844 = vst [vmem:[%s1790 + $0xa8] sm:%s1782] %v1843
                  %v1845 = vld [vmem:[%s1789 + $0x6c] sm:%s1782]
                  %1846 = vst [vmem:[%s1790 + $0xac] sm:%s1782] %v1845
                  %v1847 = vld [vmem:[%s1789 + $0x70] sm:%s1782]
                  %1848 = vst [vmem:[%s1790 + $0xb0] sm:%s1782] %v1847
                  %v1849 = vld [vmem:[%s1789 + $0x74] sm:%s1782]
                  %1850 = vst [vmem:[%s1790 + $0xb4] sm:%s1782] %v1849
                  %v1851 = vld [vmem:[%s1789 + $0x78] sm:%s1782]
                  %1852 = vst [vmem:[%s1790 + $0xb8] sm:%s1782] %v1851
                  %v1853 = vld [vmem:[%s1789 + $0x7c] sm:%s1782]
                  %1854 = vst [vmem:[%s1790 + $0xbc] sm:%s1782] %v1853
                  %v1855 = vld [vmem:[%s1789 + $0x80] sm:%s1782]
                  %1856 = vst [vmem:[%s1790 + $0x100] sm:%s1782] %v1855
                  %v1857 = vld [vmem:[%s1789 + $0x84] sm:%s1782]
                  %1858 = vst [vmem:[%s1790 + $0x104] sm:%s1782] %v1857
                  %v1859 = vld [vmem:[%s1789 + $0x88] sm:%s1782]
                  %1860 = vst [vmem:[%s1790 + $0x108] sm:%s1782] %v1859
                  %v1861 = vld [vmem:[%s1789 + $0x8c] sm:%s1782]
                  %1862 = vst [vmem:[%s1790 + $0x10c] sm:%s1782] %v1861
                  %v1863 = vld [vmem:[%s1789 + $0x90] sm:%s1782]
                  %1864 = vst [vmem:[%s1790 + $0x110] sm:%s1782] %v1863
                  %v1865 = vld [vmem:[%s1789 + $0x94] sm:%s1782]
                  %1866 = vst [vmem:[%s1790 + $0x114] sm:%s1782] %v1865
                  %v1867 = vld [vmem:[%s1789 + $0x98] sm:%s1782]
                  %1868 = vst [vmem:[%s1790 + $0x118] sm:%s1782] %v1867
                  %v1869 = vld [vmem:[%s1789 + $0x9c] sm:%s1782]
                  %1870 = vst [vmem:[%s1790 + $0x11c] sm:%s1782] %v1869
                  %v1871 = vld [vmem:[%s1789 + $0xa0] sm:%s1782]
                  %1872 = vst [vmem:[%s1790 + $0x120] sm:%s1782] %v1871
                  %v1873 = vld [vmem:[%s1789 + $0xa4] sm:%s1782]
                  %1874 = vst [vmem:[%s1790 + $0x124] sm:%s1782] %v1873
                  %v1875 = vld [vmem:[%s1789 + $0xa8] sm:%s1782]
                  %1876 = vst [vmem:[%s1790 + $0x128] sm:%s1782] %v1875
                  %v1877 = vld [vmem:[%s1789 + $0xac] sm:%s1782]
                  %1878 = vst [vmem:[%s1790 + $0x12c] sm:%s1782] %v1877
                  %v1879 = vld [vmem:[%s1789 + $0xb0] sm:%s1782]
                  %1880 = vst [vmem:[%s1790 + $0x130] sm:%s1782] %v1879
                  %v1881 = vld [vmem:[%s1789 + $0xb4] sm:%s1782]
                  %1882 = vst [vmem:[%s1790 + $0x134] sm:%s1782] %v1881
                  %v1883 = vld [vmem:[%s1789 + $0xb8] sm:%s1782]
                  %1884 = vst [vmem:[%s1790 + $0x138] sm:%s1782] %v1883
                  %v1885 = vld [vmem:[%s1789 + $0xbc] sm:%s1782]
                  %1886 = vst [vmem:[%s1790 + $0x13c] sm:%s1782] %v1885
                  %v1887 = vld [vmem:[%s1789 + $0xc0] sm:%s1782]
                  %1888 = vst [vmem:[%s1790 + $0x180] sm:%s1782] %v1887
                  %v1889 = vld [vmem:[%s1789 + $0xc4] sm:%s1782]
                  %1890 = vst [vmem:[%s1790 + $0x184] sm:%s1782] %v1889
                  %v1891 = vld [vmem:[%s1789 + $0xc8] sm:%s1782]
                  %1892 = vst [vmem:[%s1790 + $0x188] sm:%s1782] %v1891
                  %v1893 = vld [vmem:[%s1789 + $0xcc] sm:%s1782]
                  %1894 = vst [vmem:[%s1790 + $0x18c] sm:%s1782] %v1893
                  %v1895 = vld [vmem:[%s1789 + $0xd0] sm:%s1782]
                  %1896 = vst [vmem:[%s1790 + $0x190] sm:%s1782] %v1895
                  %v1897 = vld [vmem:[%s1789 + $0xd4] sm:%s1782]
                  %1898 = vst [vmem:[%s1790 + $0x194] sm:%s1782] %v1897
                  %v1899 = vld [vmem:[%s1789 + $0xd8] sm:%s1782]
                  %1900 = vst [vmem:[%s1790 + $0x198] sm:%s1782] %v1899
                  %v1901 = vld [vmem:[%s1789 + $0xdc] sm:%s1782]
                  %1902 = vst [vmem:[%s1790 + $0x19c] sm:%s1782] %v1901
                  %v1903 = vld [vmem:[%s1789 + $0xe0] sm:%s1782]
                  %1904 = vst [vmem:[%s1790 + $0x1a0] sm:%s1782] %v1903
                  %v1905 = vld [vmem:[%s1789 + $0xe4] sm:%s1782]
                  %1906 = vst [vmem:[%s1790 + $0x1a4] sm:%s1782] %v1905
                  %v1907 = vld [vmem:[%s1789 + $0xe8] sm:%s1782]
                  %1908 = vst [vmem:[%s1790 + $0x1a8] sm:%s1782] %v1907
                  %v1909 = vld [vmem:[%s1789 + $0xec] sm:%s1782]
                  %1910 = vst [vmem:[%s1790 + $0x1ac] sm:%s1782] %v1909
                  %v1911 = vld [vmem:[%s1789 + $0xf0] sm:%s1782]
                  %1912 = vst [vmem:[%s1790 + $0x1b0] sm:%s1782] %v1911
                  %v1913 = vld [vmem:[%s1789 + $0xf4] sm:%s1782]
                  %1914 = vst [vmem:[%s1790 + $0x1b4] sm:%s1782] %v1913
                  %v1915 = vld [vmem:[%s1789 + $0xf8] sm:%s1782]
                  %1916 = vst [vmem:[%s1790 + $0x1b8] sm:%s1782] %v1915
                  %v1917 = vld [vmem:[%s1789 + $0xfc] sm:%s1782]
                  %1918 = vst [vmem:[%s1790 + $0x1bc] sm:%s1782] %v1917
                $region75: #{tpu_custom_call.1} parent=62 // loop_footer
                  %s1788 = sadd.s32 1, %s1784
                $region76: #{tpu_custom_call.1} parent=62 // loop_footer_branch
                  %1783 = sbr.rel target = $region72
                $region77: #{tpu_custom_call.1} parent=62 // loop_exit
                  _
              $region63: #{tpu_custom_call.1} parent=47 // pred_fallthru
                _
            $region48: #{tpu_custom_call.1} parent=43 // pred_fallthru
              _
            // Predicated region
            $region49: #{tpu_custom_call.1} parent=43 // pred_check
              _
            $region50: #{tpu_custom_call.1} parent=43 // pred_check_branch
              %1632 = sbr.rel (0) target = $region52
            $region51: #{tpu_custom_call.1} parent=43 // pred_region
              %s1634 = ssub.s32 16, 1
              loop: start=0, step=1, limit=1
              $region53: #{tpu_custom_call.1} parent=51 // loop_pre_header
                _
              $region54: #{tpu_custom_call.1} parent=51 // loop_header
                %s1636 = sphi 0, %s1640
                %p1637 = scmp.ge.s32.totalorder %s1636, 1
                %s1641 = sphi %s1610, %s1610
                %s1642 = sphi %s1626, %s1626
              $region55: #{tpu_custom_call.1} parent=51 // loop_header_branch
                %1639 = sbr.rel (%p1637) target = $region59
              $region56: #{tpu_custom_call.1} parent=51 // loop_body
                %v1643 = vld [vmem:[%s1641] sm:%s1634]
                %1644 = vst [vmem:[%s1642] sm:%s1634] %v1643
                %v1645 = vld [vmem:[%s1641 + $0x4] sm:%s1634]
                %1646 = vst [vmem:[%s1642 + $0x4] sm:%s1634] %v1645
                %v1647 = vld [vmem:[%s1641 + $0x8] sm:%s1634]
                %1648 = vst [vmem:[%s1642 + $0x8] sm:%s1634] %v1647
                %v1649 = vld [vmem:[%s1641 + $0xc] sm:%s1634]
                %1650 = vst [vmem:[%s1642 + $0xc] sm:%s1634] %v1649
                %v1651 = vld [vmem:[%s1641 + $0x10] sm:%s1634]
                %1652 = vst [vmem:[%s1642 + $0x10] sm:%s1634] %v1651
                %v1653 = vld [vmem:[%s1641 + $0x14] sm:%s1634]
                %1654 = vst [vmem:[%s1642 + $0x14] sm:%s1634] %v1653
                %v1655 = vld [vmem:[%s1641 + $0x18] sm:%s1634]
                %1656 = vst [vmem:[%s1642 + $0x18] sm:%s1634] %v1655
                %v1657 = vld [vmem:[%s1641 + $0x1c] sm:%s1634]
                %1658 = vst [vmem:[%s1642 + $0x1c] sm:%s1634] %v1657
                %v1659 = vld [vmem:[%s1641 + $0x20] sm:%s1634]
                %1660 = vst [vmem:[%s1642 + $0x20] sm:%s1634] %v1659
                %v1661 = vld [vmem:[%s1641 + $0x24] sm:%s1634]
                %1662 = vst [vmem:[%s1642 + $0x24] sm:%s1634] %v1661
                %v1663 = vld [vmem:[%s1641 + $0x28] sm:%s1634]
                %1664 = vst [vmem:[%s1642 + $0x28] sm:%s1634] %v1663
                %v1665 = vld [vmem:[%s1641 + $0x2c] sm:%s1634]
                %1666 = vst [vmem:[%s1642 + $0x2c] sm:%s1634] %v1665
                %v1667 = vld [vmem:[%s1641 + $0x30] sm:%s1634]
                %1668 = vst [vmem:[%s1642 + $0x30] sm:%s1634] %v1667
                %v1669 = vld [vmem:[%s1641 + $0x34] sm:%s1634]
                %1670 = vst [vmem:[%s1642 + $0x34] sm:%s1634] %v1669
                %v1671 = vld [vmem:[%s1641 + $0x38] sm:%s1634]
                %1672 = vst [vmem:[%s1642 + $0x38] sm:%s1634] %v1671
                %v1673 = vld [vmem:[%s1641 + $0x3c] sm:%s1634]
                %1674 = vst [vmem:[%s1642 + $0x3c] sm:%s1634] %v1673
                %v1675 = vld [vmem:[%s1641 + $0x40] sm:%s1634]
                %1676 = vst [vmem:[%s1642 + $0x80] sm:%s1634] %v1675
                %v1677 = vld [vmem:[%s1641 + $0x44] sm:%s1634]
                %1678 = vst [vmem:[%s1642 + $0x84] sm:%s1634] %v1677
                %v1679 = vld [vmem:[%s1641 + $0x48] sm:%s1634]
                %1680 = vst [vmem:[%s1642 + $0x88] sm:%s1634] %v1679
                %v1681 = vld [vmem:[%s1641 + $0x4c] sm:%s1634]
                %1682 = vst [vmem:[%s1642 + $0x8c] sm:%s1634] %v1681
                %v1683 = vld [vmem:[%s1641 + $0x50] sm:%s1634]
                %1684 = vst [vmem:[%s1642 + $0x90] sm:%s1634] %v1683
                %v1685 = vld [vmem:[%s1641 + $0x54] sm:%s1634]
                %1686 = vst [vmem:[%s1642 + $0x94] sm:%s1634] %v1685
                %v1687 = vld [vmem:[%s1641 + $0x58] sm:%s1634]
                %1688 = vst [vmem:[%s1642 + $0x98] sm:%s1634] %v1687
                %v1689 = vld [vmem:[%s1641 + $0x5c] sm:%s1634]
                %1690 = vst [vmem:[%s1642 + $0x9c] sm:%s1634] %v1689
                %v1691 = vld [vmem:[%s1641 + $0x60] sm:%s1634]
                %1692 = vst [vmem:[%s1642 + $0xa0] sm:%s1634] %v1691
                %v1693 = vld [vmem:[%s1641 + $0x64] sm:%s1634]
                %1694 = vst [vmem:[%s1642 + $0xa4] sm:%s1634] %v1693
                %v1695 = vld [vmem:[%s1641 + $0x68] sm:%s1634]
                %1696 = vst [vmem:[%s1642 + $0xa8] sm:%s1634] %v1695
                %v1697 = vld [vmem:[%s1641 + $0x6c] sm:%s1634]
                %1698 = vst [vmem:[%s1642 + $0xac] sm:%s1634] %v1697
                %v1699 = vld [vmem:[%s1641 + $0x70] sm:%s1634]
                %1700 = vst [vmem:[%s1642 + $0xb0] sm:%s1634] %v1699
                %v1701 = vld [vmem:[%s1641 + $0x74] sm:%s1634]
                %1702 = vst [vmem:[%s1642 + $0xb4] sm:%s1634] %v1701
                %v1703 = vld [vmem:[%s1641 + $0x78] sm:%s1634]
                %1704 = vst [vmem:[%s1642 + $0xb8] sm:%s1634] %v1703
                %v1705 = vld [vmem:[%s1641 + $0x7c] sm:%s1634]
                %1706 = vst [vmem:[%s1642 + $0xbc] sm:%s1634] %v1705
                %v1707 = vld [vmem:[%s1641 + $0x80] sm:%s1634]
                %1708 = vst [vmem:[%s1642 + $0x100] sm:%s1634] %v1707
                %v1709 = vld [vmem:[%s1641 + $0x84] sm:%s1634]
                %1710 = vst [vmem:[%s1642 + $0x104] sm:%s1634] %v1709
                %v1711 = vld [vmem:[%s1641 + $0x88] sm:%s1634]
                %1712 = vst [vmem:[%s1642 + $0x108] sm:%s1634] %v1711
                %v1713 = vld [vmem:[%s1641 + $0x8c] sm:%s1634]
                %1714 = vst [vmem:[%s1642 + $0x10c] sm:%s1634] %v1713
                %v1715 = vld [vmem:[%s1641 + $0x90] sm:%s1634]
                %1716 = vst [vmem:[%s1642 + $0x110] sm:%s1634] %v1715
                %v1717 = vld [vmem:[%s1641 + $0x94] sm:%s1634]
                %1718 = vst [vmem:[%s1642 + $0x114] sm:%s1634] %v1717
                %v1719 = vld [vmem:[%s1641 + $0x98] sm:%s1634]
                %1720 = vst [vmem:[%s1642 + $0x118] sm:%s1634] %v1719
                %v1721 = vld [vmem:[%s1641 + $0x9c] sm:%s1634]
                %1722 = vst [vmem:[%s1642 + $0x11c] sm:%s1634] %v1721
                %v1723 = vld [vmem:[%s1641 + $0xa0] sm:%s1634]
                %1724 = vst [vmem:[%s1642 + $0x120] sm:%s1634] %v1723
                %v1725 = vld [vmem:[%s1641 + $0xa4] sm:%s1634]
                %1726 = vst [vmem:[%s1642 + $0x124] sm:%s1634] %v1725
                %v1727 = vld [vmem:[%s1641 + $0xa8] sm:%s1634]
                %1728 = vst [vmem:[%s1642 + $0x128] sm:%s1634] %v1727
                %v1729 = vld [vmem:[%s1641 + $0xac] sm:%s1634]
                %1730 = vst [vmem:[%s1642 + $0x12c] sm:%s1634] %v1729
                %v1731 = vld [vmem:[%s1641 + $0xb0] sm:%s1634]
                %1732 = vst [vmem:[%s1642 + $0x130] sm:%s1634] %v1731
                %v1733 = vld [vmem:[%s1641 + $0xb4] sm:%s1634]
                %1734 = vst [vmem:[%s1642 + $0x134] sm:%s1634] %v1733
                %v1735 = vld [vmem:[%s1641 + $0xb8] sm:%s1634]
                %1736 = vst [vmem:[%s1642 + $0x138] sm:%s1634] %v1735
                %v1737 = vld [vmem:[%s1641 + $0xbc] sm:%s1634]
                %1738 = vst [vmem:[%s1642 + $0x13c] sm:%s1634] %v1737
                %v1739 = vld [vmem:[%s1641 + $0xc0] sm:%s1634]
                %1740 = vst [vmem:[%s1642 + $0x180] sm:%s1634] %v1739
                %v1741 = vld [vmem:[%s1641 + $0xc4] sm:%s1634]
                %1742 = vst [vmem:[%s1642 + $0x184] sm:%s1634] %v1741
                %v1743 = vld [vmem:[%s1641 + $0xc8] sm:%s1634]
                %1744 = vst [vmem:[%s1642 + $0x188] sm:%s1634] %v1743
                %v1745 = vld [vmem:[%s1641 + $0xcc] sm:%s1634]
                %1746 = vst [vmem:[%s1642 + $0x18c] sm:%s1634] %v1745
                %v1747 = vld [vmem:[%s1641 + $0xd0] sm:%s1634]
                %1748 = vst [vmem:[%s1642 + $0x190] sm:%s1634] %v1747
                %v1749 = vld [vmem:[%s1641 + $0xd4] sm:%s1634]
                %1750 = vst [vmem:[%s1642 + $0x194] sm:%s1634] %v1749
                %v1751 = vld [vmem:[%s1641 + $0xd8] sm:%s1634]
                %1752 = vst [vmem:[%s1642 + $0x198] sm:%s1634] %v1751
                %v1753 = vld [vmem:[%s1641 + $0xdc] sm:%s1634]
                %1754 = vst [vmem:[%s1642 + $0x19c] sm:%s1634] %v1753
                %v1755 = vld [vmem:[%s1641 + $0xe0] sm:%s1634]
                %1756 = vst [vmem:[%s1642 + $0x1a0] sm:%s1634] %v1755
                %v1757 = vld [vmem:[%s1641 + $0xe4] sm:%s1634]
                %1758 = vst [vmem:[%s1642 + $0x1a4] sm:%s1634] %v1757
                %v1759 = vld [vmem:[%s1641 + $0xe8] sm:%s1634]
                %1760 = vst [vmem:[%s1642 + $0x1a8] sm:%s1634] %v1759
                %v1761 = vld [vmem:[%s1641 + $0xec] sm:%s1634]
                %1762 = vst [vmem:[%s1642 + $0x1ac] sm:%s1634] %v1761
                %v1763 = vld [vmem:[%s1641 + $0xf0] sm:%s1634]
                %1764 = vst [vmem:[%s1642 + $0x1b0] sm:%s1634] %v1763
                %v1765 = vld [vmem:[%s1641 + $0xf4] sm:%s1634]
                %1766 = vst [vmem:[%s1642 + $0x1b4] sm:%s1634] %v1765
                %v1767 = vld [vmem:[%s1641 + $0xf8] sm:%s1634]
                %1768 = vst [vmem:[%s1642 + $0x1b8] sm:%s1634] %v1767
                %v1769 = vld [vmem:[%s1641 + $0xfc] sm:%s1634]
                %1770 = vst [vmem:[%s1642 + $0x1bc] sm:%s1634] %v1769
              $region57: #{tpu_custom_call.1} parent=51 // loop_footer
                %s1640 = sadd.s32 1, %s1636
              $region58: #{tpu_custom_call.1} parent=51 // loop_footer_branch
                %1635 = sbr.rel target = $region54
              $region59: #{tpu_custom_call.1} parent=51 // loop_exit
                _
            $region52: #{tpu_custom_call.1} parent=43 // pred_fallthru
              _
          $region44: #{tpu_custom_call.1} parent=39 // pred_fallthru
            _
          %1919 = vnop
        $region40: #{tpu_custom_call.1} parent=35 // pred_fallthru
          _
        // Predicated region
        $region78: #{tpu_custom_call.1} parent=35 // pred_check
          %p1920 = pneg %p169
        $region79: #{tpu_custom_call.1} parent=35 // pred_check_branch
          %1922 = sbr.rel (%p1920) target = $region81
        $region80: #{tpu_custom_call.1} parent=35 // pred_region
          %s1923 = smul.u32 16, %s23
          %s1924 = smul.addr %s22, 128
          %s1925 = sadd.s32 %s1923, %s1924
          %s1926 = smul.addr %s1925, 4
          %s1927 = scalar_lea.vmem %s5, %s1926
          // Predicated region
          $region82: #{tpu_custom_call.1} parent=80 // pred_check
            _
          $region83: #{tpu_custom_call.1} parent=80 // pred_check_branch
            %1929 = sbr.rel (0) target = $region85
          $region84: #{tpu_custom_call.1} parent=80 // pred_region
            // Predicated region
            $region86: #{tpu_custom_call.1} parent=84 // pred_check
              _
            $region87: #{tpu_custom_call.1} parent=84 // pred_check_branch
              %1931 = sbr.rel target = $region89
            $region88: #{tpu_custom_call.1} parent=84 // pred_region
              // Predicated region
              $region101: #{tpu_custom_call.1} parent=88 // pred_check
                _
              $region102: #{tpu_custom_call.1} parent=88 // pred_check_branch
                %2073 = sbr.rel (0) target = $region104
              $region103: #{tpu_custom_call.1} parent=88 // pred_region
                loop: start=0, step=1, limit=1
                $region105: #{tpu_custom_call.1} parent=103 // loop_pre_header
                  _
                $region106: #{tpu_custom_call.1} parent=103 // loop_header
                  %s2075 = sphi 0, %s2079
                  %p2076 = scmp.ge.s32.totalorder %s2075, 1
                  %s2080 = sphi %s1614, %s1614
                  %s2081 = sphi %s1927, %s1927
                $region107: #{tpu_custom_call.1} parent=103 // loop_header_branch
                  %2078 = sbr.rel (%p2076) target = $region111
                $region108: #{tpu_custom_call.1} parent=103 // loop_body
                  _
                $region109: #{tpu_custom_call.1} parent=103 // loop_footer
                  %s2079 = sadd.s32 1, %s2075
                $region110: #{tpu_custom_call.1} parent=103 // loop_footer_branch
                  %2074 = sbr.rel target = $region106
                $region111: #{tpu_custom_call.1} parent=103 // loop_exit
                  _
                %s2083 = ssub.s32 16, 1
                loop: start=0, step=1, limit=1
                $region112: #{tpu_custom_call.1} parent=103 // loop_pre_header
                  _
                $region113: #{tpu_custom_call.1} parent=103 // loop_header
                  %s2085 = sphi 0, %s2089
                  %p2086 = scmp.ge.s32.totalorder %s2085, 1
                  %s2090 = sphi %s1614, %s1614
                  %s2091 = sphi %s1927, %s1927
                $region114: #{tpu_custom_call.1} parent=103 // loop_header_branch
                  %2088 = sbr.rel (%p2086) target = $region118
                $region115: #{tpu_custom_call.1} parent=103 // loop_body
                  %v2092 = vld [vmem:[%s2090] sm:%s2083]
                  %2093 = vst [vmem:[%s2091] sm:%s2083] %v2092
                  %v2094 = vld [vmem:[%s2090 + $0x4] sm:%s2083]
                  %2095 = vst [vmem:[%s2091 + $0x4] sm:%s2083] %v2094
                  %v2096 = vld [vmem:[%s2090 + $0x8] sm:%s2083]
                  %2097 = vst [vmem:[%s2091 + $0x8] sm:%s2083] %v2096
                  %v2098 = vld [vmem:[%s2090 + $0xc] sm:%s2083]
                  %2099 = vst [vmem:[%s2091 + $0xc] sm:%s2083] %v2098
                  %v2100 = vld [vmem:[%s2090 + $0x10] sm:%s2083]
                  %2101 = vst [vmem:[%s2091 + $0x10] sm:%s2083] %v2100
                  %v2102 = vld [vmem:[%s2090 + $0x14] sm:%s2083]
                  %2103 = vst [vmem:[%s2091 + $0x14] sm:%s2083] %v2102
                  %v2104 = vld [vmem:[%s2090 + $0x18] sm:%s2083]
                  %2105 = vst [vmem:[%s2091 + $0x18] sm:%s2083] %v2104
                  %v2106 = vld [vmem:[%s2090 + $0x1c] sm:%s2083]
                  %2107 = vst [vmem:[%s2091 + $0x1c] sm:%s2083] %v2106
                  %v2108 = vld [vmem:[%s2090 + $0x20] sm:%s2083]
                  %2109 = vst [vmem:[%s2091 + $0x20] sm:%s2083] %v2108
                  %v2110 = vld [vmem:[%s2090 + $0x24] sm:%s2083]
                  %2111 = vst [vmem:[%s2091 + $0x24] sm:%s2083] %v2110
                  %v2112 = vld [vmem:[%s2090 + $0x28] sm:%s2083]
                  %2113 = vst [vmem:[%s2091 + $0x28] sm:%s2083] %v2112
                  %v2114 = vld [vmem:[%s2090 + $0x2c] sm:%s2083]
                  %2115 = vst [vmem:[%s2091 + $0x2c] sm:%s2083] %v2114
                  %v2116 = vld [vmem:[%s2090 + $0x30] sm:%s2083]
                  %2117 = vst [vmem:[%s2091 + $0x30] sm:%s2083] %v2116
                  %v2118 = vld [vmem:[%s2090 + $0x34] sm:%s2083]
                  %2119 = vst [vmem:[%s2091 + $0x34] sm:%s2083] %v2118
                  %v2120 = vld [vmem:[%s2090 + $0x38] sm:%s2083]
                  %2121 = vst [vmem:[%s2091 + $0x38] sm:%s2083] %v2120
                  %v2122 = vld [vmem:[%s2090 + $0x3c] sm:%s2083]
                  %2123 = vst [vmem:[%s2091 + $0x3c] sm:%s2083] %v2122
                  %v2124 = vld [vmem:[%s2090 + $0x40] sm:%s2083]
                  %2125 = vst [vmem:[%s2091 + $0x80] sm:%s2083] %v2124
                  %v2126 = vld [vmem:[%s2090 + $0x44] sm:%s2083]
                  %2127 = vst [vmem:[%s2091 + $0x84] sm:%s2083] %v2126
                  %v2128 = vld [vmem:[%s2090 + $0x48] sm:%s2083]
                  %2129 = vst [vmem:[%s2091 + $0x88] sm:%s2083] %v2128
                  %v2130 = vld [vmem:[%s2090 + $0x4c] sm:%s2083]
                  %2131 = vst [vmem:[%s2091 + $0x8c] sm:%s2083] %v2130
                  %v2132 = vld [vmem:[%s2090 + $0x50] sm:%s2083]
                  %2133 = vst [vmem:[%s2091 + $0x90] sm:%s2083] %v2132
                  %v2134 = vld [vmem:[%s2090 + $0x54] sm:%s2083]
                  %2135 = vst [vmem:[%s2091 + $0x94] sm:%s2083] %v2134
                  %v2136 = vld [vmem:[%s2090 + $0x58] sm:%s2083]
                  %2137 = vst [vmem:[%s2091 + $0x98] sm:%s2083] %v2136
                  %v2138 = vld [vmem:[%s2090 + $0x5c] sm:%s2083]
                  %2139 = vst [vmem:[%s2091 + $0x9c] sm:%s2083] %v2138
                  %v2140 = vld [vmem:[%s2090 + $0x60] sm:%s2083]
                  %2141 = vst [vmem:[%s2091 + $0xa0] sm:%s2083] %v2140
                  %v2142 = vld [vmem:[%s2090 + $0x64] sm:%s2083]
                  %2143 = vst [vmem:[%s2091 + $0xa4] sm:%s2083] %v2142
                  %v2144 = vld [vmem:[%s2090 + $0x68] sm:%s2083]
                  %2145 = vst [vmem:[%s2091 + $0xa8] sm:%s2083] %v2144
                  %v2146 = vld [vmem:[%s2090 + $0x6c] sm:%s2083]
                  %2147 = vst [vmem:[%s2091 + $0xac] sm:%s2083] %v2146
                  %v2148 = vld [vmem:[%s2090 + $0x70] sm:%s2083]
                  %2149 = vst [vmem:[%s2091 + $0xb0] sm:%s2083] %v2148
                  %v2150 = vld [vmem:[%s2090 + $0x74] sm:%s2083]
                  %2151 = vst [vmem:[%s2091 + $0xb4] sm:%s2083] %v2150
                  %v2152 = vld [vmem:[%s2090 + $0x78] sm:%s2083]
                  %2153 = vst [vmem:[%s2091 + $0xb8] sm:%s2083] %v2152
                  %v2154 = vld [vmem:[%s2090 + $0x7c] sm:%s2083]
                  %2155 = vst [vmem:[%s2091 + $0xbc] sm:%s2083] %v2154
                  %v2156 = vld [vmem:[%s2090 + $0x80] sm:%s2083]
                  %2157 = vst [vmem:[%s2091 + $0x100] sm:%s2083] %v2156
                  %v2158 = vld [vmem:[%s2090 + $0x84] sm:%s2083]
                  %2159 = vst [vmem:[%s2091 + $0x104] sm:%s2083] %v2158
                  %v2160 = vld [vmem:[%s2090 + $0x88] sm:%s2083]
                  %2161 = vst [vmem:[%s2091 + $0x108] sm:%s2083] %v2160
                  %v2162 = vld [vmem:[%s2090 + $0x8c] sm:%s2083]
                  %2163 = vst [vmem:[%s2091 + $0x10c] sm:%s2083] %v2162
                  %v2164 = vld [vmem:[%s2090 + $0x90] sm:%s2083]
                  %2165 = vst [vmem:[%s2091 + $0x110] sm:%s2083] %v2164
                  %v2166 = vld [vmem:[%s2090 + $0x94] sm:%s2083]
                  %2167 = vst [vmem:[%s2091 + $0x114] sm:%s2083] %v2166
                  %v2168 = vld [vmem:[%s2090 + $0x98] sm:%s2083]
                  %2169 = vst [vmem:[%s2091 + $0x118] sm:%s2083] %v2168
                  %v2170 = vld [vmem:[%s2090 + $0x9c] sm:%s2083]
                  %2171 = vst [vmem:[%s2091 + $0x11c] sm:%s2083] %v2170
                  %v2172 = vld [vmem:[%s2090 + $0xa0] sm:%s2083]
                  %2173 = vst [vmem:[%s2091 + $0x120] sm:%s2083] %v2172
                  %v2174 = vld [vmem:[%s2090 + $0xa4] sm:%s2083]
                  %2175 = vst [vmem:[%s2091 + $0x124] sm:%s2083] %v2174
                  %v2176 = vld [vmem:[%s2090 + $0xa8] sm:%s2083]
                  %2177 = vst [vmem:[%s2091 + $0x128] sm:%s2083] %v2176
                  %v2178 = vld [vmem:[%s2090 + $0xac] sm:%s2083]
                  %2179 = vst [vmem:[%s2091 + $0x12c] sm:%s2083] %v2178
                  %v2180 = vld [vmem:[%s2090 + $0xb0] sm:%s2083]
                  %2181 = vst [vmem:[%s2091 + $0x130] sm:%s2083] %v2180
                  %v2182 = vld [vmem:[%s2090 + $0xb4] sm:%s2083]
                  %2183 = vst [vmem:[%s2091 + $0x134] sm:%s2083] %v2182
                  %v2184 = vld [vmem:[%s2090 + $0xb8] sm:%s2083]
                  %2185 = vst [vmem:[%s2091 + $0x138] sm:%s2083] %v2184
                  %v2186 = vld [vmem:[%s2090 + $0xbc] sm:%s2083]
                  %2187 = vst [vmem:[%s2091 + $0x13c] sm:%s2083] %v2186
                  %v2188 = vld [vmem:[%s2090 + $0xc0] sm:%s2083]
                  %2189 = vst [vmem:[%s2091 + $0x180] sm:%s2083] %v2188
                  %v2190 = vld [vmem:[%s2090 + $0xc4] sm:%s2083]
                  %2191 = vst [vmem:[%s2091 + $0x184] sm:%s2083] %v2190
                  %v2192 = vld [vmem:[%s2090 + $0xc8] sm:%s2083]
                  %2193 = vst [vmem:[%s2091 + $0x188] sm:%s2083] %v2192
                  %v2194 = vld [vmem:[%s2090 + $0xcc] sm:%s2083]
                  %2195 = vst [vmem:[%s2091 + $0x18c] sm:%s2083] %v2194
                  %v2196 = vld [vmem:[%s2090 + $0xd0] sm:%s2083]
                  %2197 = vst [vmem:[%s2091 + $0x190] sm:%s2083] %v2196
                  %v2198 = vld [vmem:[%s2090 + $0xd4] sm:%s2083]
                  %2199 = vst [vmem:[%s2091 + $0x194] sm:%s2083] %v2198
                  %v2200 = vld [vmem:[%s2090 + $0xd8] sm:%s2083]
                  %2201 = vst [vmem:[%s2091 + $0x198] sm:%s2083] %v2200
                  %v2202 = vld [vmem:[%s2090 + $0xdc] sm:%s2083]
                  %2203 = vst [vmem:[%s2091 + $0x19c] sm:%s2083] %v2202
                  %v2204 = vld [vmem:[%s2090 + $0xe0] sm:%s2083]
                  %2205 = vst [vmem:[%s2091 + $0x1a0] sm:%s2083] %v2204
                  %v2206 = vld [vmem:[%s2090 + $0xe4] sm:%s2083]
                  %2207 = vst [vmem:[%s2091 + $0x1a4] sm:%s2083] %v2206
                  %v2208 = vld [vmem:[%s2090 + $0xe8] sm:%s2083]
                  %2209 = vst [vmem:[%s2091 + $0x1a8] sm:%s2083] %v2208
                  %v2210 = vld [vmem:[%s2090 + $0xec] sm:%s2083]
                  %2211 = vst [vmem:[%s2091 + $0x1ac] sm:%s2083] %v2210
                  %v2212 = vld [vmem:[%s2090 + $0xf0] sm:%s2083]
                  %2213 = vst [vmem:[%s2091 + $0x1b0] sm:%s2083] %v2212
                  %v2214 = vld [vmem:[%s2090 + $0xf4] sm:%s2083]
                  %2215 = vst [vmem:[%s2091 + $0x1b4] sm:%s2083] %v2214
                  %v2216 = vld [vmem:[%s2090 + $0xf8] sm:%s2083]
                  %2217 = vst [vmem:[%s2091 + $0x1b8] sm:%s2083] %v2216
                  %v2218 = vld [vmem:[%s2090 + $0xfc] sm:%s2083]
                  %2219 = vst [vmem:[%s2091 + $0x1bc] sm:%s2083] %v2218
                $region116: #{tpu_custom_call.1} parent=103 // loop_footer
                  %s2089 = sadd.s32 1, %s2085
                $region117: #{tpu_custom_call.1} parent=103 // loop_footer_branch
                  %2084 = sbr.rel target = $region113
                $region118: #{tpu_custom_call.1} parent=103 // loop_exit
                  _
              $region104: #{tpu_custom_call.1} parent=88 // pred_fallthru
                _
            $region89: #{tpu_custom_call.1} parent=84 // pred_fallthru
              _
            // Predicated region
            $region90: #{tpu_custom_call.1} parent=84 // pred_check
              _
            $region91: #{tpu_custom_call.1} parent=84 // pred_check_branch
              %1933 = sbr.rel (0) target = $region93
            $region92: #{tpu_custom_call.1} parent=84 // pred_region
              %s1935 = ssub.s32 16, 1
              loop: start=0, step=1, limit=1
              $region94: #{tpu_custom_call.1} parent=92 // loop_pre_header
                _
              $region95: #{tpu_custom_call.1} parent=92 // loop_header
                %s1937 = sphi 0, %s1941
                %p1938 = scmp.ge.s32.totalorder %s1937, 1
                %s1942 = sphi %s1614, %s1614
                %s1943 = sphi %s1927, %s1927
              $region96: #{tpu_custom_call.1} parent=92 // loop_header_branch
                %1940 = sbr.rel (%p1938) target = $region100
              $region97: #{tpu_custom_call.1} parent=92 // loop_body
                %v1944 = vld [vmem:[%s1942] sm:%s1935]
                %1945 = vst [vmem:[%s1943] sm:%s1935] %v1944
                %v1946 = vld [vmem:[%s1942 + $0x4] sm:%s1935]
                %1947 = vst [vmem:[%s1943 + $0x4] sm:%s1935] %v1946
                %v1948 = vld [vmem:[%s1942 + $0x8] sm:%s1935]
                %1949 = vst [vmem:[%s1943 + $0x8] sm:%s1935] %v1948
                %v1950 = vld [vmem:[%s1942 + $0xc] sm:%s1935]
                %1951 = vst [vmem:[%s1943 + $0xc] sm:%s1935] %v1950
                %v1952 = vld [vmem:[%s1942 + $0x10] sm:%s1935]
                %1953 = vst [vmem:[%s1943 + $0x10] sm:%s1935] %v1952
                %v1954 = vld [vmem:[%s1942 + $0x14] sm:%s1935]
                %1955 = vst [vmem:[%s1943 + $0x14] sm:%s1935] %v1954
                %v1956 = vld [vmem:[%s1942 + $0x18] sm:%s1935]
                %1957 = vst [vmem:[%s1943 + $0x18] sm:%s1935] %v1956
                %v1958 = vld [vmem:[%s1942 + $0x1c] sm:%s1935]
                %1959 = vst [vmem:[%s1943 + $0x1c] sm:%s1935] %v1958
                %v1960 = vld [vmem:[%s1942 + $0x20] sm:%s1935]
                %1961 = vst [vmem:[%s1943 + $0x20] sm:%s1935] %v1960
                %v1962 = vld [vmem:[%s1942 + $0x24] sm:%s1935]
                %1963 = vst [vmem:[%s1943 + $0x24] sm:%s1935] %v1962
                %v1964 = vld [vmem:[%s1942 + $0x28] sm:%s1935]
                %1965 = vst [vmem:[%s1943 + $0x28] sm:%s1935] %v1964
                %v1966 = vld [vmem:[%s1942 + $0x2c] sm:%s1935]
                %1967 = vst [vmem:[%s1943 + $0x2c] sm:%s1935] %v1966
                %v1968 = vld [vmem:[%s1942 + $0x30] sm:%s1935]
                %1969 = vst [vmem:[%s1943 + $0x30] sm:%s1935] %v1968
                %v1970 = vld [vmem:[%s1942 + $0x34] sm:%s1935]
                %1971 = vst [vmem:[%s1943 + $0x34] sm:%s1935] %v1970
                %v1972 = vld [vmem:[%s1942 + $0x38] sm:%s1935]
                %1973 = vst [vmem:[%s1943 + $0x38] sm:%s1935] %v1972
                %v1974 = vld [vmem:[%s1942 + $0x3c] sm:%s1935]
                %1975 = vst [vmem:[%s1943 + $0x3c] sm:%s1935] %v1974
                %v1976 = vld [vmem:[%s1942 + $0x40] sm:%s1935]
                %1977 = vst [vmem:[%s1943 + $0x80] sm:%s1935] %v1976
                %v1978 = vld [vmem:[%s1942 + $0x44] sm:%s1935]
                %1979 = vst [vmem:[%s1943 + $0x84] sm:%s1935] %v1978
                %v1980 = vld [vmem:[%s1942 + $0x48] sm:%s1935]
                %1981 = vst [vmem:[%s1943 + $0x88] sm:%s1935] %v1980
                %v1982 = vld [vmem:[%s1942 + $0x4c] sm:%s1935]
                %1983 = vst [vmem:[%s1943 + $0x8c] sm:%s1935] %v1982
                %v1984 = vld [vmem:[%s1942 + $0x50] sm:%s1935]
                %1985 = vst [vmem:[%s1943 + $0x90] sm:%s1935] %v1984
                %v1986 = vld [vmem:[%s1942 + $0x54] sm:%s1935]
                %1987 = vst [vmem:[%s1943 + $0x94] sm:%s1935] %v1986
                %v1988 = vld [vmem:[%s1942 + $0x58] sm:%s1935]
                %1989 = vst [vmem:[%s1943 + $0x98] sm:%s1935] %v1988
                %v1990 = vld [vmem:[%s1942 + $0x5c] sm:%s1935]
                %1991 = vst [vmem:[%s1943 + $0x9c] sm:%s1935] %v1990
                %v1992 = vld [vmem:[%s1942 + $0x60] sm:%s1935]
                %1993 = vst [vmem:[%s1943 + $0xa0] sm:%s1935] %v1992
                %v1994 = vld [vmem:[%s1942 + $0x64] sm:%s1935]
                %1995 = vst [vmem:[%s1943 + $0xa4] sm:%s1935] %v1994
                %v1996 = vld [vmem:[%s1942 + $0x68] sm:%s1935]
                %1997 = vst [vmem:[%s1943 + $0xa8] sm:%s1935] %v1996
                %v1998 = vld [vmem:[%s1942 + $0x6c] sm:%s1935]
                %1999 = vst [vmem:[%s1943 + $0xac] sm:%s1935] %v1998
                %v2000 = vld [vmem:[%s1942 + $0x70] sm:%s1935]
                %2001 = vst [vmem:[%s1943 + $0xb0] sm:%s1935] %v2000
                %v2002 = vld [vmem:[%s1942 + $0x74] sm:%s1935]
                %2003 = vst [vmem:[%s1943 + $0xb4] sm:%s1935] %v2002
                %v2004 = vld [vmem:[%s1942 + $0x78] sm:%s1935]
                %2005 = vst [vmem:[%s1943 + $0xb8] sm:%s1935] %v2004
                %v2006 = vld [vmem:[%s1942 + $0x7c] sm:%s1935]
                %2007 = vst [vmem:[%s1943 + $0xbc] sm:%s1935] %v2006
                %v2008 = vld [vmem:[%s1942 + $0x80] sm:%s1935]
                %2009 = vst [vmem:[%s1943 + $0x100] sm:%s1935] %v2008
                %v2010 = vld [vmem:[%s1942 + $0x84] sm:%s1935]
                %2011 = vst [vmem:[%s1943 + $0x104] sm:%s1935] %v2010
                %v2012 = vld [vmem:[%s1942 + $0x88] sm:%s1935]
                %2013 = vst [vmem:[%s1943 + $0x108] sm:%s1935] %v2012
                %v2014 = vld [vmem:[%s1942 + $0x8c] sm:%s1935]
                %2015 = vst [vmem:[%s1943 + $0x10c] sm:%s1935] %v2014
                %v2016 = vld [vmem:[%s1942 + $0x90] sm:%s1935]
                %2017 = vst [vmem:[%s1943 + $0x110] sm:%s1935] %v2016
                %v2018 = vld [vmem:[%s1942 + $0x94] sm:%s1935]
                %2019 = vst [vmem:[%s1943 + $0x114] sm:%s1935] %v2018
                %v2020 = vld [vmem:[%s1942 + $0x98] sm:%s1935]
                %2021 = vst [vmem:[%s1943 + $0x118] sm:%s1935] %v2020
                %v2022 = vld [vmem:[%s1942 + $0x9c] sm:%s1935]
                %2023 = vst [vmem:[%s1943 + $0x11c] sm:%s1935] %v2022
                %v2024 = vld [vmem:[%s1942 + $0xa0] sm:%s1935]
                %2025 = vst [vmem:[%s1943 + $0x120] sm:%s1935] %v2024
                %v2026 = vld [vmem:[%s1942 + $0xa4] sm:%s1935]
                %2027 = vst [vmem:[%s1943 + $0x124] sm:%s1935] %v2026
                %v2028 = vld [vmem:[%s1942 + $0xa8] sm:%s1935]
                %2029 = vst [vmem:[%s1943 + $0x128] sm:%s1935] %v2028
                %v2030 = vld [vmem:[%s1942 + $0xac] sm:%s1935]
                %2031 = vst [vmem:[%s1943 + $0x12c] sm:%s1935] %v2030
                %v2032 = vld [vmem:[%s1942 + $0xb0] sm:%s1935]
                %2033 = vst [vmem:[%s1943 + $0x130] sm:%s1935] %v2032
                %v2034 = vld [vmem:[%s1942 + $0xb4] sm:%s1935]
                %2035 = vst [vmem:[%s1943 + $0x134] sm:%s1935] %v2034
                %v2036 = vld [vmem:[%s1942 + $0xb8] sm:%s1935]
                %2037 = vst [vmem:[%s1943 + $0x138] sm:%s1935] %v2036
                %v2038 = vld [vmem:[%s1942 + $0xbc] sm:%s1935]
                %2039 = vst [vmem:[%s1943 + $0x13c] sm:%s1935] %v2038
                %v2040 = vld [vmem:[%s1942 + $0xc0] sm:%s1935]
                %2041 = vst [vmem:[%s1943 + $0x180] sm:%s1935] %v2040
                %v2042 = vld [vmem:[%s1942 + $0xc4] sm:%s1935]
                %2043 = vst [vmem:[%s1943 + $0x184] sm:%s1935] %v2042
                %v2044 = vld [vmem:[%s1942 + $0xc8] sm:%s1935]
                %2045 = vst [vmem:[%s1943 + $0x188] sm:%s1935] %v2044
                %v2046 = vld [vmem:[%s1942 + $0xcc] sm:%s1935]
                %2047 = vst [vmem:[%s1943 + $0x18c] sm:%s1935] %v2046
                %v2048 = vld [vmem:[%s1942 + $0xd0] sm:%s1935]
                %2049 = vst [vmem:[%s1943 + $0x190] sm:%s1935] %v2048
                %v2050 = vld [vmem:[%s1942 + $0xd4] sm:%s1935]
                %2051 = vst [vmem:[%s1943 + $0x194] sm:%s1935] %v2050
                %v2052 = vld [vmem:[%s1942 + $0xd8] sm:%s1935]
                %2053 = vst [vmem:[%s1943 + $0x198] sm:%s1935] %v2052
                %v2054 = vld [vmem:[%s1942 + $0xdc] sm:%s1935]
                %2055 = vst [vmem:[%s1943 + $0x19c] sm:%s1935] %v2054
                %v2056 = vld [vmem:[%s1942 + $0xe0] sm:%s1935]
                %2057 = vst [vmem:[%s1943 + $0x1a0] sm:%s1935] %v2056
                %v2058 = vld [vmem:[%s1942 + $0xe4] sm:%s1935]
                %2059 = vst [vmem:[%s1943 + $0x1a4] sm:%s1935] %v2058
                %v2060 = vld [vmem:[%s1942 + $0xe8] sm:%s1935]
                %2061 = vst [vmem:[%s1943 + $0x1a8] sm:%s1935] %v2060
                %v2062 = vld [vmem:[%s1942 + $0xec] sm:%s1935]
                %2063 = vst [vmem:[%s1943 + $0x1ac] sm:%s1935] %v2062
                %v2064 = vld [vmem:[%s1942 + $0xf0] sm:%s1935]
                %2065 = vst [vmem:[%s1943 + $0x1b0] sm:%s1935] %v2064
                %v2066 = vld [vmem:[%s1942 + $0xf4] sm:%s1935]
                %2067 = vst [vmem:[%s1943 + $0x1b4] sm:%s1935] %v2066
                %v2068 = vld [vmem:[%s1942 + $0xf8] sm:%s1935]
                %2069 = vst [vmem:[%s1943 + $0x1b8] sm:%s1935] %v2068
                %v2070 = vld [vmem:[%s1942 + $0xfc] sm:%s1935]
                %2071 = vst [vmem:[%s1943 + $0x1bc] sm:%s1935] %v2070
              $region98: #{tpu_custom_call.1} parent=92 // loop_footer
                %s1941 = sadd.s32 1, %s1937
              $region99: #{tpu_custom_call.1} parent=92 // loop_footer_branch
                %1936 = sbr.rel target = $region95
              $region100: #{tpu_custom_call.1} parent=92 // loop_exit
                _
            $region93: #{tpu_custom_call.1} parent=84 // pred_fallthru
              _
          $region85: #{tpu_custom_call.1} parent=80 // pred_fallthru
            _
          %2220 = vnop
        $region81: #{tpu_custom_call.1} parent=35 // pred_fallthru
          _
        // Predicated region
        $region119: #{tpu_custom_call.1} parent=35 // pred_check
          %p2221 = pneg %p197
        $region120: #{tpu_custom_call.1} parent=35 // pred_check_branch
          %2223 = sbr.rel (%p2221) target = $region122
        $region121: #{tpu_custom_call.1} parent=35 // pred_region
          %s2224 = smul.u32 16, %s23
          %s2225 = smul.addr %s22, 128
          %s2226 = sadd.s32 %s2224, %s2225
          %s2227 = smul.addr %s2226, 4
          %s2228 = scalar_lea.vmem %s6, %s2227
          // Predicated region
          $region123: #{tpu_custom_call.1} parent=121 // pred_check
            _
          $region124: #{tpu_custom_call.1} parent=121 // pred_check_branch
            %2230 = sbr.rel (0) target = $region126
          $region125: #{tpu_custom_call.1} parent=121 // pred_region
            // Predicated region
            $region127: #{tpu_custom_call.1} parent=125 // pred_check
              _
            $region128: #{tpu_custom_call.1} parent=125 // pred_check_branch
              %2232 = sbr.rel target = $region130
            $region129: #{tpu_custom_call.1} parent=125 // pred_region
              // Predicated region
              $region142: #{tpu_custom_call.1} parent=129 // pred_check
                _
              $region143: #{tpu_custom_call.1} parent=129 // pred_check_branch
                %2374 = sbr.rel (0) target = $region145
              $region144: #{tpu_custom_call.1} parent=129 // pred_region
                loop: start=0, step=1, limit=1
                $region146: #{tpu_custom_call.1} parent=144 // loop_pre_header
                  _
                $region147: #{tpu_custom_call.1} parent=144 // loop_header
                  %s2376 = sphi 0, %s2380
                  %p2377 = scmp.ge.s32.totalorder %s2376, 1
                  %s2381 = sphi %s1618, %s1618
                  %s2382 = sphi %s2228, %s2228
                $region148: #{tpu_custom_call.1} parent=144 // loop_header_branch
                  %2379 = sbr.rel (%p2377) target = $region152
                $region149: #{tpu_custom_call.1} parent=144 // loop_body
                  _
                $region150: #{tpu_custom_call.1} parent=144 // loop_footer
                  %s2380 = sadd.s32 1, %s2376
                $region151: #{tpu_custom_call.1} parent=144 // loop_footer_branch
                  %2375 = sbr.rel target = $region147
                $region152: #{tpu_custom_call.1} parent=144 // loop_exit
                  _
                %s2384 = ssub.s32 16, 1
                loop: start=0, step=1, limit=1
                $region153: #{tpu_custom_call.1} parent=144 // loop_pre_header
                  _
                $region154: #{tpu_custom_call.1} parent=144 // loop_header
                  %s2386 = sphi 0, %s2390
                  %p2387 = scmp.ge.s32.totalorder %s2386, 1
                  %s2391 = sphi %s1618, %s1618
                  %s2392 = sphi %s2228, %s2228
                $region155: #{tpu_custom_call.1} parent=144 // loop_header_branch
                  %2389 = sbr.rel (%p2387) target = $region159
                $region156: #{tpu_custom_call.1} parent=144 // loop_body
                  %v2393 = vld [vmem:[%s2391] sm:%s2384]
                  %2394 = vst [vmem:[%s2392] sm:%s2384] %v2393
                  %v2395 = vld [vmem:[%s2391 + $0x4] sm:%s2384]
                  %2396 = vst [vmem:[%s2392 + $0x4] sm:%s2384] %v2395
                  %v2397 = vld [vmem:[%s2391 + $0x8] sm:%s2384]
                  %2398 = vst [vmem:[%s2392 + $0x8] sm:%s2384] %v2397
                  %v2399 = vld [vmem:[%s2391 + $0xc] sm:%s2384]
                  %2400 = vst [vmem:[%s2392 + $0xc] sm:%s2384] %v2399
                  %v2401 = vld [vmem:[%s2391 + $0x10] sm:%s2384]
                  %2402 = vst [vmem:[%s2392 + $0x10] sm:%s2384] %v2401
                  %v2403 = vld [vmem:[%s2391 + $0x14] sm:%s2384]
                  %2404 = vst [vmem:[%s2392 + $0x14] sm:%s2384] %v2403
                  %v2405 = vld [vmem:[%s2391 + $0x18] sm:%s2384]
                  %2406 = vst [vmem:[%s2392 + $0x18] sm:%s2384] %v2405
                  %v2407 = vld [vmem:[%s2391 + $0x1c] sm:%s2384]
                  %2408 = vst [vmem:[%s2392 + $0x1c] sm:%s2384] %v2407
                  %v2409 = vld [vmem:[%s2391 + $0x20] sm:%s2384]
                  %2410 = vst [vmem:[%s2392 + $0x20] sm:%s2384] %v2409
                  %v2411 = vld [vmem:[%s2391 + $0x24] sm:%s2384]
                  %2412 = vst [vmem:[%s2392 + $0x24] sm:%s2384] %v2411
                  %v2413 = vld [vmem:[%s2391 + $0x28] sm:%s2384]
                  %2414 = vst [vmem:[%s2392 + $0x28] sm:%s2384] %v2413
                  %v2415 = vld [vmem:[%s2391 + $0x2c] sm:%s2384]
                  %2416 = vst [vmem:[%s2392 + $0x2c] sm:%s2384] %v2415
                  %v2417 = vld [vmem:[%s2391 + $0x30] sm:%s2384]
                  %2418 = vst [vmem:[%s2392 + $0x30] sm:%s2384] %v2417
                  %v2419 = vld [vmem:[%s2391 + $0x34] sm:%s2384]
                  %2420 = vst [vmem:[%s2392 + $0x34] sm:%s2384] %v2419
                  %v2421 = vld [vmem:[%s2391 + $0x38] sm:%s2384]
                  %2422 = vst [vmem:[%s2392 + $0x38] sm:%s2384] %v2421
                  %v2423 = vld [vmem:[%s2391 + $0x3c] sm:%s2384]
                  %2424 = vst [vmem:[%s2392 + $0x3c] sm:%s2384] %v2423
                  %v2425 = vld [vmem:[%s2391 + $0x40] sm:%s2384]
                  %2426 = vst [vmem:[%s2392 + $0x80] sm:%s2384] %v2425
                  %v2427 = vld [vmem:[%s2391 + $0x44] sm:%s2384]
                  %2428 = vst [vmem:[%s2392 + $0x84] sm:%s2384] %v2427
                  %v2429 = vld [vmem:[%s2391 + $0x48] sm:%s2384]
                  %2430 = vst [vmem:[%s2392 + $0x88] sm:%s2384] %v2429
                  %v2431 = vld [vmem:[%s2391 + $0x4c] sm:%s2384]
                  %2432 = vst [vmem:[%s2392 + $0x8c] sm:%s2384] %v2431
                  %v2433 = vld [vmem:[%s2391 + $0x50] sm:%s2384]
                  %2434 = vst [vmem:[%s2392 + $0x90] sm:%s2384] %v2433
                  %v2435 = vld [vmem:[%s2391 + $0x54] sm:%s2384]
                  %2436 = vst [vmem:[%s2392 + $0x94] sm:%s2384] %v2435
                  %v2437 = vld [vmem:[%s2391 + $0x58] sm:%s2384]
                  %2438 = vst [vmem:[%s2392 + $0x98] sm:%s2384] %v2437
                  %v2439 = vld [vmem:[%s2391 + $0x5c] sm:%s2384]
                  %2440 = vst [vmem:[%s2392 + $0x9c] sm:%s2384] %v2439
                  %v2441 = vld [vmem:[%s2391 + $0x60] sm:%s2384]
                  %2442 = vst [vmem:[%s2392 + $0xa0] sm:%s2384] %v2441
                  %v2443 = vld [vmem:[%s2391 + $0x64] sm:%s2384]
                  %2444 = vst [vmem:[%s2392 + $0xa4] sm:%s2384] %v2443
                  %v2445 = vld [vmem:[%s2391 + $0x68] sm:%s2384]
                  %2446 = vst [vmem:[%s2392 + $0xa8] sm:%s2384] %v2445
                  %v2447 = vld [vmem:[%s2391 + $0x6c] sm:%s2384]
                  %2448 = vst [vmem:[%s2392 + $0xac] sm:%s2384] %v2447
                  %v2449 = vld [vmem:[%s2391 + $0x70] sm:%s2384]
                  %2450 = vst [vmem:[%s2392 + $0xb0] sm:%s2384] %v2449
                  %v2451 = vld [vmem:[%s2391 + $0x74] sm:%s2384]
                  %2452 = vst [vmem:[%s2392 + $0xb4] sm:%s2384] %v2451
                  %v2453 = vld [vmem:[%s2391 + $0x78] sm:%s2384]
                  %2454 = vst [vmem:[%s2392 + $0xb8] sm:%s2384] %v2453
                  %v2455 = vld [vmem:[%s2391 + $0x7c] sm:%s2384]
                  %2456 = vst [vmem:[%s2392 + $0xbc] sm:%s2384] %v2455
                  %v2457 = vld [vmem:[%s2391 + $0x80] sm:%s2384]
                  %2458 = vst [vmem:[%s2392 + $0x100] sm:%s2384] %v2457
                  %v2459 = vld [vmem:[%s2391 + $0x84] sm:%s2384]
                  %2460 = vst [vmem:[%s2392 + $0x104] sm:%s2384] %v2459
                  %v2461 = vld [vmem:[%s2391 + $0x88] sm:%s2384]
                  %2462 = vst [vmem:[%s2392 + $0x108] sm:%s2384] %v2461
                  %v2463 = vld [vmem:[%s2391 + $0x8c] sm:%s2384]
                  %2464 = vst [vmem:[%s2392 + $0x10c] sm:%s2384] %v2463
                  %v2465 = vld [vmem:[%s2391 + $0x90] sm:%s2384]
                  %2466 = vst [vmem:[%s2392 + $0x110] sm:%s2384] %v2465
                  %v2467 = vld [vmem:[%s2391 + $0x94] sm:%s2384]
                  %2468 = vst [vmem:[%s2392 + $0x114] sm:%s2384] %v2467
                  %v2469 = vld [vmem:[%s2391 + $0x98] sm:%s2384]
                  %2470 = vst [vmem:[%s2392 + $0x118] sm:%s2384] %v2469
                  %v2471 = vld [vmem:[%s2391 + $0x9c] sm:%s2384]
                  %2472 = vst [vmem:[%s2392 + $0x11c] sm:%s2384] %v2471
                  %v2473 = vld [vmem:[%s2391 + $0xa0] sm:%s2384]
                  %2474 = vst [vmem:[%s2392 + $0x120] sm:%s2384] %v2473
                  %v2475 = vld [vmem:[%s2391 + $0xa4] sm:%s2384]
                  %2476 = vst [vmem:[%s2392 + $0x124] sm:%s2384] %v2475
                  %v2477 = vld [vmem:[%s2391 + $0xa8] sm:%s2384]
                  %2478 = vst [vmem:[%s2392 + $0x128] sm:%s2384] %v2477
                  %v2479 = vld [vmem:[%s2391 + $0xac] sm:%s2384]
                  %2480 = vst [vmem:[%s2392 + $0x12c] sm:%s2384] %v2479
                  %v2481 = vld [vmem:[%s2391 + $0xb0] sm:%s2384]
                  %2482 = vst [vmem:[%s2392 + $0x130] sm:%s2384] %v2481
                  %v2483 = vld [vmem:[%s2391 + $0xb4] sm:%s2384]
                  %2484 = vst [vmem:[%s2392 + $0x134] sm:%s2384] %v2483
                  %v2485 = vld [vmem:[%s2391 + $0xb8] sm:%s2384]
                  %2486 = vst [vmem:[%s2392 + $0x138] sm:%s2384] %v2485
                  %v2487 = vld [vmem:[%s2391 + $0xbc] sm:%s2384]
                  %2488 = vst [vmem:[%s2392 + $0x13c] sm:%s2384] %v2487
                  %v2489 = vld [vmem:[%s2391 + $0xc0] sm:%s2384]
                  %2490 = vst [vmem:[%s2392 + $0x180] sm:%s2384] %v2489
                  %v2491 = vld [vmem:[%s2391 + $0xc4] sm:%s2384]
                  %2492 = vst [vmem:[%s2392 + $0x184] sm:%s2384] %v2491
                  %v2493 = vld [vmem:[%s2391 + $0xc8] sm:%s2384]
                  %2494 = vst [vmem:[%s2392 + $0x188] sm:%s2384] %v2493
                  %v2495 = vld [vmem:[%s2391 + $0xcc] sm:%s2384]
                  %2496 = vst [vmem:[%s2392 + $0x18c] sm:%s2384] %v2495
                  %v2497 = vld [vmem:[%s2391 + $0xd0] sm:%s2384]
                  %2498 = vst [vmem:[%s2392 + $0x190] sm:%s2384] %v2497
                  %v2499 = vld [vmem:[%s2391 + $0xd4] sm:%s2384]
                  %2500 = vst [vmem:[%s2392 + $0x194] sm:%s2384] %v2499
                  %v2501 = vld [vmem:[%s2391 + $0xd8] sm:%s2384]
                  %2502 = vst [vmem:[%s2392 + $0x198] sm:%s2384] %v2501
                  %v2503 = vld [vmem:[%s2391 + $0xdc] sm:%s2384]
                  %2504 = vst [vmem:[%s2392 + $0x19c] sm:%s2384] %v2503
                  %v2505 = vld [vmem:[%s2391 + $0xe0] sm:%s2384]
                  %2506 = vst [vmem:[%s2392 + $0x1a0] sm:%s2384] %v2505
                  %v2507 = vld [vmem:[%s2391 + $0xe4] sm:%s2384]
                  %2508 = vst [vmem:[%s2392 + $0x1a4] sm:%s2384] %v2507
                  %v2509 = vld [vmem:[%s2391 + $0xe8] sm:%s2384]
                  %2510 = vst [vmem:[%s2392 + $0x1a8] sm:%s2384] %v2509
                  %v2511 = vld [vmem:[%s2391 + $0xec] sm:%s2384]
                  %2512 = vst [vmem:[%s2392 + $0x1ac] sm:%s2384] %v2511
                  %v2513 = vld [vmem:[%s2391 + $0xf0] sm:%s2384]
                  %2514 = vst [vmem:[%s2392 + $0x1b0] sm:%s2384] %v2513
                  %v2515 = vld [vmem:[%s2391 + $0xf4] sm:%s2384]
                  %2516 = vst [vmem:[%s2392 + $0x1b4] sm:%s2384] %v2515
                  %v2517 = vld [vmem:[%s2391 + $0xf8] sm:%s2384]
                  %2518 = vst [vmem:[%s2392 + $0x1b8] sm:%s2384] %v2517
                  %v2519 = vld [vmem:[%s2391 + $0xfc] sm:%s2384]
                  %2520 = vst [vmem:[%s2392 + $0x1bc] sm:%s2384] %v2519
                $region157: #{tpu_custom_call.1} parent=144 // loop_footer
                  %s2390 = sadd.s32 1, %s2386
                $region158: #{tpu_custom_call.1} parent=144 // loop_footer_branch
                  %2385 = sbr.rel target = $region154
                $region159: #{tpu_custom_call.1} parent=144 // loop_exit
                  _
              $region145: #{tpu_custom_call.1} parent=129 // pred_fallthru
                _
            $region130: #{tpu_custom_call.1} parent=125 // pred_fallthru
              _
            // Predicated region
            $region131: #{tpu_custom_call.1} parent=125 // pred_check
              _
            $region132: #{tpu_custom_call.1} parent=125 // pred_check_branch
              %2234 = sbr.rel (0) target = $region134
            $region133: #{tpu_custom_call.1} parent=125 // pred_region
              %s2236 = ssub.s32 16, 1
              loop: start=0, step=1, limit=1
              $region135: #{tpu_custom_call.1} parent=133 // loop_pre_header
                _
              $region136: #{tpu_custom_call.1} parent=133 // loop_header
                %s2238 = sphi 0, %s2242
                %p2239 = scmp.ge.s32.totalorder %s2238, 1
                %s2243 = sphi %s1618, %s1618
                %s2244 = sphi %s2228, %s2228
              $region137: #{tpu_custom_call.1} parent=133 // loop_header_branch
                %2241 = sbr.rel (%p2239) target = $region141
              $region138: #{tpu_custom_call.1} parent=133 // loop_body
                %v2245 = vld [vmem:[%s2243] sm:%s2236]
                %2246 = vst [vmem:[%s2244] sm:%s2236] %v2245
                %v2247 = vld [vmem:[%s2243 + $0x4] sm:%s2236]
                %2248 = vst [vmem:[%s2244 + $0x4] sm:%s2236] %v2247
                %v2249 = vld [vmem:[%s2243 + $0x8] sm:%s2236]
                %2250 = vst [vmem:[%s2244 + $0x8] sm:%s2236] %v2249
                %v2251 = vld [vmem:[%s2243 + $0xc] sm:%s2236]
                %2252 = vst [vmem:[%s2244 + $0xc] sm:%s2236] %v2251
                %v2253 = vld [vmem:[%s2243 + $0x10] sm:%s2236]
                %2254 = vst [vmem:[%s2244 + $0x10] sm:%s2236] %v2253
                %v2255 = vld [vmem:[%s2243 + $0x14] sm:%s2236]
                %2256 = vst [vmem:[%s2244 + $0x14] sm:%s2236] %v2255
                %v2257 = vld [vmem:[%s2243 + $0x18] sm:%s2236]
                %2258 = vst [vmem:[%s2244 + $0x18] sm:%s2236] %v2257
                %v2259 = vld [vmem:[%s2243 + $0x1c] sm:%s2236]
                %2260 = vst [vmem:[%s2244 + $0x1c] sm:%s2236] %v2259
                %v2261 = vld [vmem:[%s2243 + $0x20] sm:%s2236]
                %2262 = vst [vmem:[%s2244 + $0x20] sm:%s2236] %v2261
                %v2263 = vld [vmem:[%s2243 + $0x24] sm:%s2236]
                %2264 = vst [vmem:[%s2244 + $0x24] sm:%s2236] %v2263
                %v2265 = vld [vmem:[%s2243 + $0x28] sm:%s2236]
                %2266 = vst [vmem:[%s2244 + $0x28] sm:%s2236] %v2265
                %v2267 = vld [vmem:[%s2243 + $0x2c] sm:%s2236]
                %2268 = vst [vmem:[%s2244 + $0x2c] sm:%s2236] %v2267
                %v2269 = vld [vmem:[%s2243 + $0x30] sm:%s2236]
                %2270 = vst [vmem:[%s2244 + $0x30] sm:%s2236] %v2269
                %v2271 = vld [vmem:[%s2243 + $0x34] sm:%s2236]
                %2272 = vst [vmem:[%s2244 + $0x34] sm:%s2236] %v2271
                %v2273 = vld [vmem:[%s2243 + $0x38] sm:%s2236]
                %2274 = vst [vmem:[%s2244 + $0x38] sm:%s2236] %v2273
                %v2275 = vld [vmem:[%s2243 + $0x3c] sm:%s2236]
                %2276 = vst [vmem:[%s2244 + $0x3c] sm:%s2236] %v2275
                %v2277 = vld [vmem:[%s2243 + $0x40] sm:%s2236]
                %2278 = vst [vmem:[%s2244 + $0x80] sm:%s2236] %v2277
                %v2279 = vld [vmem:[%s2243 + $0x44] sm:%s2236]
                %2280 = vst [vmem:[%s2244 + $0x84] sm:%s2236] %v2279
                %v2281 = vld [vmem:[%s2243 + $0x48] sm:%s2236]
                %2282 = vst [vmem:[%s2244 + $0x88] sm:%s2236] %v2281
                %v2283 = vld [vmem:[%s2243 + $0x4c] sm:%s2236]
                %2284 = vst [vmem:[%s2244 + $0x8c] sm:%s2236] %v2283
                %v2285 = vld [vmem:[%s2243 + $0x50] sm:%s2236]
                %2286 = vst [vmem:[%s2244 + $0x90] sm:%s2236] %v2285
                %v2287 = vld [vmem:[%s2243 + $0x54] sm:%s2236]
                %2288 = vst [vmem:[%s2244 + $0x94] sm:%s2236] %v2287
                %v2289 = vld [vmem:[%s2243 + $0x58] sm:%s2236]
                %2290 = vst [vmem:[%s2244 + $0x98] sm:%s2236] %v2289
                %v2291 = vld [vmem:[%s2243 + $0x5c] sm:%s2236]
                %2292 = vst [vmem:[%s2244 + $0x9c] sm:%s2236] %v2291
                %v2293 = vld [vmem:[%s2243 + $0x60] sm:%s2236]
                %2294 = vst [vmem:[%s2244 + $0xa0] sm:%s2236] %v2293
                %v2295 = vld [vmem:[%s2243 + $0x64] sm:%s2236]
                %2296 = vst [vmem:[%s2244 + $0xa4] sm:%s2236] %v2295
                %v2297 = vld [vmem:[%s2243 + $0x68] sm:%s2236]
                %2298 = vst [vmem:[%s2244 + $0xa8] sm:%s2236] %v2297
                %v2299 = vld [vmem:[%s2243 + $0x6c] sm:%s2236]
                %2300 = vst [vmem:[%s2244 + $0xac] sm:%s2236] %v2299
                %v2301 = vld [vmem:[%s2243 + $0x70] sm:%s2236]
                %2302 = vst [vmem:[%s2244 + $0xb0] sm:%s2236] %v2301
                %v2303 = vld [vmem:[%s2243 + $0x74] sm:%s2236]
                %2304 = vst [vmem:[%s2244 + $0xb4] sm:%s2236] %v2303
                %v2305 = vld [vmem:[%s2243 + $0x78] sm:%s2236]
                %2306 = vst [vmem:[%s2244 + $0xb8] sm:%s2236] %v2305
                %v2307 = vld [vmem:[%s2243 + $0x7c] sm:%s2236]
                %2308 = vst [vmem:[%s2244 + $0xbc] sm:%s2236] %v2307
                %v2309 = vld [vmem:[%s2243 + $0x80] sm:%s2236]
                %2310 = vst [vmem:[%s2244 + $0x100] sm:%s2236] %v2309
                %v2311 = vld [vmem:[%s2243 + $0x84] sm:%s2236]
                %2312 = vst [vmem:[%s2244 + $0x104] sm:%s2236] %v2311
                %v2313 = vld [vmem:[%s2243 + $0x88] sm:%s2236]
                %2314 = vst [vmem:[%s2244 + $0x108] sm:%s2236] %v2313
                %v2315 = vld [vmem:[%s2243 + $0x8c] sm:%s2236]
                %2316 = vst [vmem:[%s2244 + $0x10c] sm:%s2236] %v2315
                %v2317 = vld [vmem:[%s2243 + $0x90] sm:%s2236]
                %2318 = vst [vmem:[%s2244 + $0x110] sm:%s2236] %v2317
                %v2319 = vld [vmem:[%s2243 + $0x94] sm:%s2236]
                %2320 = vst [vmem:[%s2244 + $0x114] sm:%s2236] %v2319
                %v2321 = vld [vmem:[%s2243 + $0x98] sm:%s2236]
                %2322 = vst [vmem:[%s2244 + $0x118] sm:%s2236] %v2321
                %v2323 = vld [vmem:[%s2243 + $0x9c] sm:%s2236]
                %2324 = vst [vmem:[%s2244 + $0x11c] sm:%s2236] %v2323
                %v2325 = vld [vmem:[%s2243 + $0xa0] sm:%s2236]
                %2326 = vst [vmem:[%s2244 + $0x120] sm:%s2236] %v2325
                %v2327 = vld [vmem:[%s2243 + $0xa4] sm:%s2236]
                %2328 = vst [vmem:[%s2244 + $0x124] sm:%s2236] %v2327
                %v2329 = vld [vmem:[%s2243 + $0xa8] sm:%s2236]
                %2330 = vst [vmem:[%s2244 + $0x128] sm:%s2236] %v2329
                %v2331 = vld [vmem:[%s2243 + $0xac] sm:%s2236]
                %2332 = vst [vmem:[%s2244 + $0x12c] sm:%s2236] %v2331
                %v2333 = vld [vmem:[%s2243 + $0xb0] sm:%s2236]
                %2334 = vst [vmem:[%s2244 + $0x130] sm:%s2236] %v2333
                %v2335 = vld [vmem:[%s2243 + $0xb4] sm:%s2236]
                %2336 = vst [vmem:[%s2244 + $0x134] sm:%s2236] %v2335
                %v2337 = vld [vmem:[%s2243 + $0xb8] sm:%s2236]
                %2338 = vst [vmem:[%s2244 + $0x138] sm:%s2236] %v2337
                %v2339 = vld [vmem:[%s2243 + $0xbc] sm:%s2236]
                %2340 = vst [vmem:[%s2244 + $0x13c] sm:%s2236] %v2339
                %v2341 = vld [vmem:[%s2243 + $0xc0] sm:%s2236]
                %2342 = vst [vmem:[%s2244 + $0x180] sm:%s2236] %v2341
                %v2343 = vld [vmem:[%s2243 + $0xc4] sm:%s2236]
                %2344 = vst [vmem:[%s2244 + $0x184] sm:%s2236] %v2343
                %v2345 = vld [vmem:[%s2243 + $0xc8] sm:%s2236]
                %2346 = vst [vmem:[%s2244 + $0x188] sm:%s2236] %v2345
                %v2347 = vld [vmem:[%s2243 + $0xcc] sm:%s2236]
                %2348 = vst [vmem:[%s2244 + $0x18c] sm:%s2236] %v2347
                %v2349 = vld [vmem:[%s2243 + $0xd0] sm:%s2236]
                %2350 = vst [vmem:[%s2244 + $0x190] sm:%s2236] %v2349
                %v2351 = vld [vmem:[%s2243 + $0xd4] sm:%s2236]
                %2352 = vst [vmem:[%s2244 + $0x194] sm:%s2236] %v2351
                %v2353 = vld [vmem:[%s2243 + $0xd8] sm:%s2236]
                %2354 = vst [vmem:[%s2244 + $0x198] sm:%s2236] %v2353
                %v2355 = vld [vmem:[%s2243 + $0xdc] sm:%s2236]
                %2356 = vst [vmem:[%s2244 + $0x19c] sm:%s2236] %v2355
                %v2357 = vld [vmem:[%s2243 + $0xe0] sm:%s2236]
                %2358 = vst [vmem:[%s2244 + $0x1a0] sm:%s2236] %v2357
                %v2359 = vld [vmem:[%s2243 + $0xe4] sm:%s2236]
                %2360 = vst [vmem:[%s2244 + $0x1a4] sm:%s2236] %v2359
                %v2361 = vld [vmem:[%s2243 + $0xe8] sm:%s2236]
                %2362 = vst [vmem:[%s2244 + $0x1a8] sm:%s2236] %v2361
                %v2363 = vld [vmem:[%s2243 + $0xec] sm:%s2236]
                %2364 = vst [vmem:[%s2244 + $0x1ac] sm:%s2236] %v2363
                %v2365 = vld [vmem:[%s2243 + $0xf0] sm:%s2236]
                %2366 = vst [vmem:[%s2244 + $0x1b0] sm:%s2236] %v2365
                %v2367 = vld [vmem:[%s2243 + $0xf4] sm:%s2236]
                %2368 = vst [vmem:[%s2244 + $0x1b4] sm:%s2236] %v2367
                %v2369 = vld [vmem:[%s2243 + $0xf8] sm:%s2236]
                %2370 = vst [vmem:[%s2244 + $0x1b8] sm:%s2236] %v2369
                %v2371 = vld [vmem:[%s2243 + $0xfc] sm:%s2236]
                %2372 = vst [vmem:[%s2244 + $0x1bc] sm:%s2236] %v2371
              $region139: #{tpu_custom_call.1} parent=133 // loop_footer
                %s2242 = sadd.s32 1, %s2238
              $region140: #{tpu_custom_call.1} parent=133 // loop_footer_branch
                %2237 = sbr.rel target = $region136
              $region141: #{tpu_custom_call.1} parent=133 // loop_exit
                _
            $region134: #{tpu_custom_call.1} parent=125 // pred_fallthru
              _
          $region126: #{tpu_custom_call.1} parent=121 // pred_fallthru
            _
          %2521 = vnop
        $region122: #{tpu_custom_call.1} parent=35 // pred_fallthru
          _
      $region36: #{tpu_custom_call.1} parent=5 // pred_fallthru
        _
      %p2522 = scmp.le.s32.totalorder 2, %s13
      // Predicated region
      $region160: #{tpu_custom_call.1} parent=5 // pred_check
        %p2523 = pneg %p2522
      $region161: #{tpu_custom_call.1} parent=5 // pred_check_branch
        %2525 = sbr.rel (%p2523) target = $region163
      $region162: #{tpu_custom_call.1} parent=5 // pred_region
        %s2526 = ssub.s32 %s13, 2
        // Predicated region
        $region164: #{tpu_custom_call.1} parent=162 // pred_check
          %p2527 = pneg %p147
        $region165: #{tpu_custom_call.1} parent=162 // pred_check_branch
          %2529 = sbr.rel (%p2527) target = $region167
        $region166: #{tpu_custom_call.1} parent=162 // pred_region
          %s2530 = sand.u32 %s132, 1
          %s2531 = sand.u32 %s132, 1
          %s2532 = smul.addr %s2531, 256
          %s2533 = scalar_lea.vmem [#allocation2], %s2532
        $region167: #{tpu_custom_call.1} parent=162 // pred_fallthru
          _
        // Predicated region
        $region168: #{tpu_custom_call.1} parent=162 // pred_check
          %p2534 = pneg %p175
        $region169: #{tpu_custom_call.1} parent=162 // pred_check_branch
          %2536 = sbr.rel (%p2534) target = $region171
        $region170: #{tpu_custom_call.1} parent=162 // pred_region
          %s2537 = sand.u32 %s160, 1
          %s2538 = sand.u32 %s160, 1
          %s2539 = smul.addr %s2538, 256
          %s2540 = scalar_lea.vmem [#allocation3], %s2539
        $region171: #{tpu_custom_call.1} parent=162 // pred_fallthru
          _
        // Predicated region
        $region172: #{tpu_custom_call.1} parent=162 // pred_check
          %p2541 = pneg %p203
        $region173: #{tpu_custom_call.1} parent=162 // pred_check_branch
          %2543 = sbr.rel (%p2541) target = $region175
        $region174: #{tpu_custom_call.1} parent=162 // pred_region
          %s2544 = sand.u32 %s188, 1
          %s2545 = sand.u32 %s188, 1
          %s2546 = smul.addr %s2545, 256
          %s2547 = scalar_lea.vmem [#allocation4], %s2546
        $region175: #{tpu_custom_call.1} parent=162 // pred_fallthru
          _
      $region163: #{tpu_custom_call.1} parent=5 // pred_fallthru
        _
    $region6: #{tpu_custom_call.1} parent=1 // loop_footer
      %s17 = sadd.s32 1, %s13
    $region7: #{tpu_custom_call.1} parent=1 // loop_footer_branch
      %12 = sbr.rel target = $region3
    $region8: #{tpu_custom_call.1} parent=1 // loop_exit
      _

</llo_original>
